<compile_context>
chip_gen: v7x
topology: tpu7x:2x2x1
jax: 0.10.0
libtpu: 0.0.40
codegen_flags: <defaults>
</compile_context>

<pallas_src>
import functools

import jax
import jax.numpy as jnp
from jax.experimental import pallas as pl
from jax.experimental.pallas import tpu as pltpu

EPS = 1e-5
LANE = 128


def _round_up(v, m):
    return (v + m - 1) // m * m


def _graphsage_kernel(A_ref, x_ref, P_ref, arow_ref, cnt_ref,
                      wl1_ref, wr1_ref, b1_ref, g1_ref, be1_ref,
                      wl2_ref, wr2_ref, b2_ref, g2_ref, be2_ref,
                      wfc_ref, bfc_ref,
                      out_ref,
                      h1_ref, sum_ref, sq_ref, sc1_ref, sh1_ref, pool_ref,
                      *, tm, n_valid, eps, a_resident):
    p = pl.program_id(0)            # 0: SAGE layer 1, 1: SAGE layer 2 + head
    i = pl.program_id(1)            # destination-row tile index
    nt = pl.num_programs(1)
    row0 = pl.multiple_of(i * tm, tm)
    inv_n = 1.0 / float(n_valid)

    # Row-validity mask so padded node rows don't pollute BatchNorm statistics.
    rows = jax.lax.broadcasted_iota(jnp.int32, (tm, 1), 0) + row0
    mask = (rows < n_valid).astype(jnp.float32)

    if a_resident:
        a_tile = A_ref[pl.ds(row0, tm), :]      # A fully resident in VMEM
    else:
        a_tile = A_ref[...]                     # streamed (tm, npad) row tile
    rs = arow_ref[...]                          # (tm, 1) f32 row sums of A (1 if in-edges, else 0)

    @pl.when(jnp.logical_and(p == 0, i == 0))
    def _init():
        sum_ref[...] = jnp.zeros_like(sum_ref)
        sq_ref[...] = jnp.zeros_like(sq_ref)

    # ---------------- phase 0 : SAGE layer 1 (pre-BN), accumulate BN1 stats -------------
    @pl.when(p == 0)
    def _layer1():
        agg = jnp.dot(a_tile, x_ref[...], preferred_element_type=jnp.float32)
        x_self = x_ref[pl.ds(row0, tm), :]
        z = (jnp.dot(agg.astype(jnp.bfloat16), wl1_ref[...],
                     preferred_element_type=jnp.float32)
             + jnp.dot(x_self, wr1_ref[...], preferred_element_type=jnp.float32)
             + b1_ref[...])
        z = jnp.maximum(z, 0.0)
        h1_ref[pl.ds(row0, tm), :] = z.astype(jnp.bfloat16)
        zm = z * mask
        sum_ref[...] += jnp.sum(zm, axis=0, keepdims=True)
        sq_ref[...] += jnp.sum(zm * z, axis=0, keepdims=True)

    # -------- phase 1 : BN1 (folded) -> SAGE layer 2 -> pooled accum -> BN2/fc head -----
    @pl.when(p == 1)
    def _layer2():
        @pl.when(i == 0)
        def _finalize_bn1():
            mu = sum_ref[...] * inv_n
            var = jnp.maximum(sq_ref[...] * inv_n - mu * mu, 0.0)
            scale = g1_ref[...] * jax.lax.rsqrt(var + eps)
            sc1_ref[...] = scale
            sh1_ref[...] = be1_ref[...] - mu * scale
            sum_ref[...] = jnp.zeros_like(sum_ref)
            sq_ref[...] = jnp.zeros_like(sq_ref)
            pool_ref[...] = jnp.zeros_like(pool_ref)

        scale1 = sc1_ref[...]
        shift1 = sh1_ref[...]
        # BN1 folded into aggregation: A @ (h1*scale + shift) = (A@h1)*scale + rowsum(A)*shift
        agg = jnp.dot(a_tile, h1_ref[...], preferred_element_type=jnp.float32)
        agg = agg * scale1 + rs * shift1
        h_self = h1_ref[pl.ds(row0, tm), :].astype(jnp.float32) * scale1 + shift1
        z = (jnp.dot(agg.astype(jnp.bfloat16), wl2_ref[...],
                     preferred_element_type=jnp.float32)
             + jnp.dot(h_self.astype(jnp.bfloat16), wr2_ref[...],
                       preferred_element_type=jnp.float32)
             + b2_ref[...])
        z = jnp.maximum(z, 0.0)
        zm = z * mask
        sum_ref[...] += jnp.sum(zm, axis=0, keepdims=True)
        sq_ref[...] += jnp.sum(zm * z, axis=0, keepdims=True)
        # global_add_pool accumulated per tile on the raw (pre-BN2) activations.
        pool_ref[...] += jnp.dot(P_ref[...], z.astype(jnp.bfloat16),
                                 preferred_element_type=jnp.float32)

        @pl.when(i == nt - 1)
        def _head():
            mu = sum_ref[...] * inv_n
            var = jnp.maximum(sq_ref[...] * inv_n - mu * mu, 0.0)
            scale = g2_ref[...] * jax.lax.rsqrt(var + eps)
            shift = be2_ref[...] - mu * scale
            # sum_n P[g,n]*(z[n]*scale + shift) = (P@z)*scale + count[g]*shift
            pooled = pool_ref[...] * scale + cnt_ref[...] * shift
            logits = jnp.dot(pooled, wfc_ref[...],
                             preferred_element_type=jnp.float32) + bfc_ref[...]
            out_ref[...] = jax.nn.sigmoid(logits)


def graphsage_forward(x, A, P, params, *, tm=256, a_resident_bytes=4 * 2**20):
    n, f = x.shape
    g = P.shape[0]
    h = params["wl1"].shape[1]

    assert tm > 0 and tm % LANE == 0, "tm must be a positive multiple of 128"
    fp = _round_up(f, LANE)
    hp = _round_up(h, LANE)
    outp = LANE
    npad = _round_up(n, tm)
    gpad = _round_up(g, 8)
    nt = npad // tm

    f32, bf16 = jnp.float32, jnp.bfloat16

    def pad2(arr, shape):
        out = jnp.zeros(shape, f32)
        return out.at[:arr.shape[0], :arr.shape[1]].set(arr.astype(f32))

    A_f32 = pad2(A, (npad, npad))                       # padded rows/cols are exactly zero
    arow = jnp.sum(A_f32, axis=1, keepdims=True)        # (npad, 1): 1 if node has in-edges
    A_p = A_f32.astype(bf16)
    x_p = pad2(x, (npad, fp)).astype(bf16)
    P_f32 = pad2(P, (gpad, npad))
    cnt = jnp.sum(P_f32, axis=1, keepdims=True)         # (gpad, 1): nodes per graph
    P_p = P_f32.astype(bf16)                            # entries 0/1 -> exact in bf16

    wl1 = pad2(params["wl1"], (fp, hp)).astype(bf16)
    wr1 = pad2(params["wr1"], (fp, hp)).astype(bf16)
    wl2 = pad2(params["wl2"], (hp, hp)).astype(bf16)
    wr2 = pad2(params["wr2"], (hp, hp)).astype(bf16)
    b1 = pad2(params["bl1"], (1, hp))
    g1 = pad2(params["g1"], (1, hp))
    be1 = pad2(params["be1"], (1, hp))
    b2 = pad2(params["bl2"], (1, hp))
    g2 = pad2(params["g2"], (1, hp))
    be2 = pad2(params["be2"], (1, hp))
    wfc = pad2(params["wfc"], (hp, outp))
    bfc = pad2(params["bfc"], (1, outp))

    # Keep A fully VMEM-resident when small: read from HBM once instead of once per phase.
    a_resident = 2 * npad * npad * 2 <= a_resident_bytes

    kernel = functools.partial(_graphsage_kernel, tm=tm, n_valid=n, eps=EPS,
                               a_resident=a_resident)

    def resident(shape):
        return pl.BlockSpec(shape, lambda p, i: (0, 0))

    if a_resident:
        a_spec = resident((npad, npad))
    else:
        a_spec = pl.BlockSpec((tm, npad), lambda p, i: (i, 0))

    # Rough VMEM budget (double-buffered inputs + scratch), clamped to a range that is safe on
    # v5e/v6e (128 MiB physical) and v7x (64 MiB physical).
    est = (2 * (npad * npad if a_resident else tm * npad) * 2     # A
           + 2 * npad * fp * 2                                    # x
           + 2 * gpad * tm * 2                                    # P column tiles
           + 2 * tm * LANE * 4                                    # rowsum(A) tiles (lane-padded)
           + 2 * (2 * fp * hp + 2 * hp * hp) * 2                  # SAGE weights
           + 2 * hp * outp * 4                                    # fc weight
           + npad * hp * 2                                        # h1 scratch (bf16)
           + gpad * hp * 4                                        # pooled accumulator
           + 32 * hp * 4                                          # small params / accumulators
           + 2 * gpad * outp * 4)                                 # output
    vmem_limit = int(min(56 * 2**20, max(32 * 2**20, 2 * est)))

    out = pl.pallas_call(
        kernel,
        out_shape=jax.ShapeDtypeStruct((gpad, outp), f32),
        grid=(2, nt),
        in_specs=[
            a_spec,                                               # A (resident or row tiles)
            resident((npad, fp)),                                 # x
            pl.BlockSpec((gpad, tm), lambda p, i: (0, i)),        # P column tiles
            pl.BlockSpec((tm, 1), lambda p, i: (i, 0)),           # rowsum(A) row tiles
            resident((gpad, 1)),                                  # nodes per graph
            resident((fp, hp)), resident((fp, hp)),               # W_l1, W_r1
            resident((1, hp)), resident((1, hp)), resident((1, hp)),   # b1, g1, be1
            resident((hp, hp)), resident((hp, hp)),               # W_l2, W_r2
            resident((1, hp)), resident((1, hp)), resident((1, hp)),   # b2, g2, be2
            resident((hp, outp)), resident((1, outp)),            # W_fc, b_fc
        ],
        out_specs=resident((gpad, outp)),
        scratch_shapes=[
            pltpu.VMEM((npad, hp), bf16),   # h1 (post-ReLU, pre-BN) in bf16
            pltpu.VMEM((1, hp), f32),       # BN sum accumulator
            pltpu.VMEM((1, hp), f32),       # BN sum-of-squares accumulator
            pltpu.VMEM((1, hp), f32),       # folded BN1 scale
            pltpu.VMEM((1, hp), f32),       # folded BN1 shift
            pltpu.VMEM((gpad, hp), f32),    # pooled raw layer-2 activations per graph
        ],
        compiler_params=pltpu.CompilerParams(
            # both axes carry cross-iteration state (BN accumulators / h1 / pool) -> sequential
            dimension_semantics=("arbitrary", "arbitrary"),
            vmem_limit_bytes=vmem_limit),
    )(A_p, x_p, P_p, arow, cnt,
      wl1, wr1, b1, g1, be1,
      wl2, wr2, b2, g2, be2, wfc, bfc)
    return out[:g, :1]


def graphsage_reference(x, A, P, params):
    def bn(v, gamma, beta):
        mu = jnp.mean(v, axis=0, keepdims=True)
        var = jnp.mean((v - mu) ** 2, axis=0, keepdims=True)
        return (v - mu) * jax.lax.rsqrt(var + EPS) * gamma + beta

    agg = A @ x
    h = jnp.maximum(agg @ params["wl1"] + params["bl1"] + x @ params["wr1"], 0.0)
    h = bn(h, params["g1"], params["be1"])
    agg2 = A @ h
    h2 = jnp.maximum(agg2 @ params["wl2"] + params["bl2"] + h @ params["wr2"], 0.0)
    h2 = bn(h2, params["g2"], params["be2"])
    pooled = P @ h2
    return jax.nn.sigmoid(pooled @ params["wfc"] + params["bfc"])


if __name__ == "__main__":
    key = jax.random.PRNGKey(0)
    N, IN_DIM, HIDDEN, G, E = 320, 16, 32, 4, 1024      # 4 graphs x 80 nodes

    ks = jax.random.split(key, 16)

    # node features
    x = jax.random.normal(ks[0], (N, IN_DIM), dtype=jnp.float32)

    # graph assignment: 80 nodes per graph
    batch = jnp.repeat(jnp.arange(G, dtype=jnp.int32), N // G)

    # random edge_index (src -> dst), kept within each graph
    graph_of_edge = jax.random.randint(ks[1], (E,), 0, G)
    src_local = jax.random.randint(ks[2], (E,), 0, N // G)
    dst_local = jax.random.randint(ks[3], (E,), 0, N // G)
    src = graph_of_edge * (N // G) + src_local
    dst = graph_of_edge * (N // G) + dst_local

    # dense mean-aggregation matrix A[i, j] = count(j->i) / deg_in(i)
    counts = jnp.zeros((N, N), dtype=jnp.float32).at[dst, src].add(1.0)
    deg = jnp.sum(counts, axis=1, keepdims=True)
    A = counts / jnp.maximum(deg, 1.0)                  # nodes with no in-edges aggregate to 0

    # pooling matrix P[g, n] = 1 if batch[n] == g
    P = jnp.zeros((G, N), dtype=jnp.float32).at[batch, jnp.arange(N)].set(1.0)

    # deterministic parameter init (weights stored as [in, out], i.e. pre-transposed)
    def w(k, shape, scale=0.1):
        return (scale * jax.random.normal(k, shape)).astype(jnp.float32)

    params = {
        "wl1": w(ks[4], (IN_DIM, HIDDEN)),  "bl1": w(ks[5], (1, HIDDEN)),
        "wr1": w(ks[6], (IN_DIM, HIDDEN)),
        "g1":  jnp.ones((1, HIDDEN), jnp.float32), "be1": jnp.zeros((1, HIDDEN), jnp.float32),
        "wl2": w(ks[7], (HIDDEN, HIDDEN)),  "bl2": w(ks[8], (1, HIDDEN)),
        "wr2": w(ks[9], (HIDDEN, HIDDEN)),
        "g2":  jnp.ones((1, HIDDEN), jnp.float32), "be2": jnp.zeros((1, HIDDEN), jnp.float32),
        "wfc": w(ks[10], (HIDDEN, 1)),      "bfc": w(ks[11], (1, 1)),
    }

    ref = graphsage_reference(x, A, P, params)

    # streamed-A path with several row tiles (exercises the cross-tile BN carries)
    out_stream = graphsage_forward(x, A, P, params, tm=128, a_resident_bytes=0)
    jax.block_until_ready(out_stream)
    # resident-A path with the default larger row tile
    out_res = graphsage_forward(x, A, P, params, tm=256)
    jax.block_until_ready(out_res)

    for out in (out_stream, out_res):
        assert out.shape == (G, 1) and out.dtype == jnp.float32
        assert bool(jnp.all(jnp.isfinite(out)))
        # bf16 matmul operands -> compare against the f32 reference with a loose tolerance
        assert float(jnp.max(jnp.abs(out - ref))) < 5e-2
    print("KERNEL_OK")
</pallas_src>

<mosaic_0001>
module attributes {stable_mosaic.version = 11 : i64} {
  func.func @_graphsage_kernel(%arg0: i32, %arg1: i32, %arg2: memref<128x384xbf16, #tpu.memory_space<vmem>>, %arg3: memref<384x128xbf16, #tpu.memory_space<vmem>>, %arg4: memref<8x128xbf16, #tpu.memory_space<vmem>>, %arg5: memref<128x1xf32, #tpu.memory_space<vmem>>, %arg6: memref<8x1xf32, #tpu.memory_space<vmem>>, %arg7: memref<128x128xbf16, #tpu.memory_space<vmem>>, %arg8: memref<128x128xbf16, #tpu.memory_space<vmem>>, %arg9: memref<1x128xf32, #tpu.memory_space<vmem>>, %arg10: memref<1x128xf32, #tpu.memory_space<vmem>>, %arg11: memref<1x128xf32, #tpu.memory_space<vmem>>, %arg12: memref<128x128xbf16, #tpu.memory_space<vmem>>, %arg13: memref<128x128xbf16, #tpu.memory_space<vmem>>, %arg14: memref<1x128xf32, #tpu.memory_space<vmem>>, %arg15: memref<1x128xf32, #tpu.memory_space<vmem>>, %arg16: memref<1x128xf32, #tpu.memory_space<vmem>>, %arg17: memref<128x128xf32, #tpu.memory_space<vmem>>, %arg18: memref<1x128xf32, #tpu.memory_space<vmem>>, %arg19: memref<8x128xf32, #tpu.memory_space<vmem>>, %arg20: memref<384x128xbf16, #tpu.memory_space<vmem>>, %arg21: memref<1x128xf32, #tpu.memory_space<vmem>>, %arg22: memref<1x128xf32, #tpu.memory_space<vmem>>, %arg23: memref<1x128xf32, #tpu.memory_space<vmem>>, %arg24: memref<1x128xf32, #tpu.memory_space<vmem>>, %arg25: memref<8x128xf32, #tpu.memory_space<vmem>>) attributes {dimension_semantics = [#tpu.dimension_semantics<arbitrary>, #tpu.dimension_semantics<arbitrary>], iteration_bounds = array<i64: 2, 3>, scalar_prefetch = 0 : i64, scratch_operands = 6 : i64, tpu.core_type = #tpu.core_type<tc>, window_params = [{transform_indices = @transform_0, window_bounds = array<i64: 128, 384>}, {pipeline_mode = #tpu.pipeline_mode<synchronous>, transform_indices = @transform_1, window_bounds = array<i64: 384, 128>}, {transform_indices = @transform_2, window_bounds = array<i64: 8, 128>}, {transform_indices = @transform_3, window_bounds = array<i64: 128, 1>}, {pipeline_mode = #tpu.pipeline_mode<synchronous>, transform_indices = @transform_4, window_bounds = array<i64: 8, 1>}, {pipeline_mode = #tpu.pipeline_mode<synchronous>, transform_indices = @transform_5, window_bounds = array<i64: 128, 128>}, {pipeline_mode = #tpu.pipeline_mode<synchronous>, transform_indices = @transform_6, window_bounds = array<i64: 128, 128>}, {pipeline_mode = #tpu.pipeline_mode<synchronous>, transform_indices = @transform_7, window_bounds = array<i64: 1, 128>}, {pipeline_mode = #tpu.pipeline_mode<synchronous>, transform_indices = @transform_8, window_bounds = array<i64: 1, 128>}, {pipeline_mode = #tpu.pipeline_mode<synchronous>, transform_indices = @transform_9, window_bounds = array<i64: 1, 128>}, {pipeline_mode = #tpu.pipeline_mode<synchronous>, transform_indices = @transform_10, window_bounds = array<i64: 128, 128>}, {pipeline_mode = #tpu.pipeline_mode<synchronous>, transform_indices = @transform_11, window_bounds = array<i64: 128, 128>}, {pipeline_mode = #tpu.pipeline_mode<synchronous>, transform_indices = @transform_12, window_bounds = array<i64: 1, 128>}, {pipeline_mode = #tpu.pipeline_mode<synchronous>, transform_indices = @transform_13, window_bounds = array<i64: 1, 128>}, {pipeline_mode = #tpu.pipeline_mode<synchronous>, transform_indices = @transform_14, window_bounds = array<i64: 1, 128>}, {pipeline_mode = #tpu.pipeline_mode<synchronous>, transform_indices = @transform_15, window_bounds = array<i64: 128, 128>}, {pipeline_mode = #tpu.pipeline_mode<synchronous>, transform_indices = @transform_16, window_bounds = array<i64: 1, 128>}, {pipeline_mode = #tpu.pipeline_mode<synchronous>, transform_indices = @transform_17, window_bounds = array<i64: 8, 128>}]} {
    %c128_i32 = arith.constant 128 : i32
    %0 = arith.muli %arg1, %c128_i32 : i32
    %1 = tpu.assume_multiple %0, 128 : i32
    %2 = tpu.iota {dimensions = array<i32: 0>} : vector<128x1xi32>
    %3 = vector.broadcast %1 : i32 to vector<128x1xi32>
    %4 = arith.addi %2, %3 : vector<128x1xi32>
    %c320_i32 = arith.constant 320 : i32
    %5 = vector.broadcast %c320_i32 : i32 to vector<128x1xi32>
    %6 = arith.cmpi slt, %4, %5 : vector<128x1xi32>
    %7 = arith.extui %6 : vector<128x1xi1> to vector<128x1xi32>
    %8 = arith.sitofp %7 : vector<128x1xi32> to vector<128x1xf32>
    %c0 = arith.constant 0 : index
    %c0_0 = arith.constant 0 : index
    %9 = vector.load %arg2[%c0, %c0_0] : memref<128x384xbf16, #tpu.memory_space<vmem>>, vector<128x384xbf16>
    %c0_1 = arith.constant 0 : index
    %c0_2 = arith.constant 0 : index
    %10 = vector.load %arg5[%c0_1, %c0_2] : memref<128x1xf32, #tpu.memory_space<vmem>>, vector<128x1xf32>
    %c0_i32 = arith.constant 0 : i32
    %11 = arith.cmpi eq, %arg0, %c0_i32 : i32
    %c0_i32_3 = arith.constant 0 : i32
    %12 = arith.cmpi eq, %arg1, %c0_i32_3 : i32
    %13 = arith.andi %11, %12 : i1
    %14 = arith.extui %13 : i1 to i32
    %c0_i32_4 = arith.constant 0 : i32
    %15 = arith.cmpi ne, %14, %c0_i32_4 : i32
    scf.if %15 {
      %cst = arith.constant 0.000000e+00 : f32
      %22 = vector.broadcast %cst : f32 to vector<1x128xf32>
      %c0_8 = arith.constant 0 : index
      %c0_9 = arith.constant 0 : index
      %23 = vector.load %arg21[%c0_8, %c0_9] : memref<1x128xf32, #tpu.memory_space<vmem>>, vector<1x128xf32>
      tpu.vector_store %arg21[%c0_8, %c0_9], %22 {strides = array<i32>} : memref<1x128xf32, #tpu.memory_space<vmem>>, vector<1x128xf32>,
      %cst_10 = arith.constant 0.000000e+00 : f32
      %24 = vector.broadcast %cst_10 : f32 to vector<1x128xf32>
      %c0_11 = arith.constant 0 : index
      %c0_12 = arith.constant 0 : index
      %25 = vector.load %arg22[%c0_11, %c0_12] : memref<1x128xf32, #tpu.memory_space<vmem>>, vector<1x128xf32>
      tpu.vector_store %arg22[%c0_11, %c0_12], %24 {strides = array<i32>} : memref<1x128xf32, #tpu.memory_space<vmem>>, vector<1x128xf32>,
    } else {
    }
    %c0_i32_5 = arith.constant 0 : i32
    %16 = arith.cmpi eq, %arg0, %c0_i32_5 : i32
    %17 = arith.extui %16 : i1 to i32
    %c0_i32_6 = arith.constant 0 : i32
    %18 = arith.cmpi ne, %17, %c0_i32_6 : i32
    scf.if %18 {
      %c0_8 = arith.constant 0 : index
      %c0_9 = arith.constant 0 : index
      %22 = vector.load %arg3[%c0_8, %c0_9] : memref<384x128xbf16, #tpu.memory_space<vmem>>, vector<384x128xbf16>
      %cst = arith.constant dense<0.000000e+00> : vector<128x128xf32>
      %23 = tpu.matmul %9, %22, %cst {dimension_numbers = #tpu.dot_dimension_numbers<[1], [0], [0], [1], [0, 0, 1, 1], [], []>} : vector<128x384xbf16>, vector<384x128xbf16>, vector<128x128xf32> -> vector<128x128xf32>
      %24 = arith.index_cast %1 : i32 to index
      %c0_10 = arith.constant 0 : index
      %25 = vector.load %arg3[%24, %c0_10] : memref<384x128xbf16, #tpu.memory_space<vmem>>, vector<128x128xbf16>
      %26 = arith.truncf %23 : vector<128x128xf32> to vector<128x128xbf16>
      %c0_11 = arith.constant 0 : index
      %c0_12 = arith.constant 0 : index
      %27 = vector.load %arg7[%c0_11, %c0_12] : memref<128x128xbf16, #tpu.memory_space<vmem>>, vector<128x128xbf16>
      %cst_13 = arith.constant dense<0.000000e+00> : vector<128x128xf32>
      %28 = tpu.matmul %26, %27, %cst_13 {dimension_numbers = #tpu.dot_dimension_numbers<[1], [0], [0], [1], [0, 0, 1, 1], [], []>} : vector<128x128xbf16>, vector<128x128xbf16>, vector<128x128xf32> -> vector<128x128xf32>
      %c0_14 = arith.constant 0 : index
      %c0_15 = arith.constant 0 : index
      %29 = vector.load %arg8[%c0_14, %c0_15] : memref<128x128xbf16, #tpu.memory_space<vmem>>, vector<128x128xbf16>
      %cst_16 = arith.constant dense<0.000000e+00> : vector<128x128xf32>
      %30 = tpu.matmul %25, %29, %cst_16 {dimension_numbers = #tpu.dot_dimension_numbers<[1], [0], [0], [1], [0, 0, 1, 1], [], []>} : vector<128x128xbf16>, vector<128x128xbf16>, vector<128x128xf32> -> vector<128x128xf32>
      %31 = arith.addf %28, %30 : vector<128x128xf32>
      %c0_17 = arith.constant 0 : index
      %c0_18 = arith.constant 0 : index
      %32 = vector.load %arg9[%c0_17, %c0_18] : memref<1x128xf32, #tpu.memory_space<vmem>>, vector<1x128xf32>
      %33 = vector.broadcast %32 : vector<1x128xf32> to vector<128x128xf32>
      %34 = arith.addf %31, %33 : vector<128x128xf32>
      %cst_19 = arith.constant 0.000000e+00 : f32
      %35 = vector.broadcast %cst_19 : f32 to vector<128x128xf32>
      %36 = arith.maximumf %34, %35 : vector<128x128xf32>
      %37 = arith.truncf %36 : vector<128x128xf32> to vector<128x128xbf16>
      %38 = arith.index_cast %1 : i32 to index
      %c0_20 = arith.constant 0 : index
      %39 = vector.load %arg20[%38, %c0_20] : memref<384x128xbf16, #tpu.memory_space<vmem>>, vector<128x128xbf16>
      tpu.vector_store %arg20[%38, %c0_20], %37 {strides = array<i32>} : memref<384x128xbf16, #tpu.memory_space<vmem>>, vector<128x128xbf16>,
      %40 = vector.broadcast %8 : vector<128x1xf32> to vector<128x128xf32>
      %41 = arith.mulf %36, %40 : vector<128x128xf32>
      %c0_21 = arith.constant 0 : index
      %c0_22 = arith.constant 0 : index
      %42 = vector.load %arg21[%c0_21, %c0_22] : memref<1x128xf32, #tpu.memory_space<vmem>>, vector<1x128xf32>
      %cst_23 = arith.constant dense<0.000000e+00> : vector<128xf32>
      %43 = vector.multi_reduction <add>, %41, %cst_23 [0] : vector<128x128xf32> to vector<128xf32>
      %44 = vector.shape_cast %43 : vector<128xf32> to vector<1x128xf32>
      %45 = arith.addf %42, %44 : vector<1x128xf32>
      %c0_24 = arith.constant 0 : index
      %c0_25 = arith.constant 0 : index
      %46 = vector.load %arg21[%c0_24, %c0_25] : memref<1x128xf32, #tpu.memory_space<vmem>>, vector<1x128xf32>
      tpu.vector_store %arg21[%c0_24, %c0_25], %45 {strides = array<i32>} : memref<1x128xf32, #tpu.memory_space<vmem>>, vector<1x128xf32>,
      %c0_26 = arith.constant 0 : index
      %c0_27 = arith.constant 0 : index
      %47 = vector.load %arg22[%c0_26, %c0_27] : memref<1x128xf32, #tpu.memory_space<vmem>>, vector<1x128xf32>
      %48 = arith.mulf %41, %36 : vector<128x128xf32>
      %cst_28 = arith.constant dense<0.000000e+00> : vector<128xf32>
      %49 = vector.multi_reduction <add>, %48, %cst_28 [0] : vector<128x128xf32> to vector<128xf32>
      %50 = vector.shape_cast %49 : vector<128xf32> to vector<1x128xf32>
      %51 = arith.addf %47, %50 : vector<1x128xf32>
      %c0_29 = arith.constant 0 : index
      %c0_30 = arith.constant 0 : index
      %52 = vector.load %arg22[%c0_29, %c0_30] : memref<1x128xf32, #tpu.memory_space<vmem>>, vector<1x128xf32>
      tpu.vector_store %arg22[%c0_29, %c0_30], %51 {strides = array<i32>} : memref<1x128xf32, #tpu.memory_space<vmem>>, vector<1x128xf32>,
    } else {
    }
    %c1_i32 = arith.constant 1 : i32
    %19 = arith.cmpi eq, %arg0, %c1_i32 : i32
    %20 = arith.extui %19 : i1 to i32
    %c0_i32_7 = arith.constant 0 : i32
    %21 = arith.cmpi ne, %20, %c0_i32_7 : i32
    scf.if %21 {
      %c0_i32_8 = arith.constant 0 : i32
      %22 = arith.cmpi eq, %arg1, %c0_i32_8 : i32
      %23 = arith.extui %22 : i1 to i32
      %c0_i32_9 = arith.constant 0 : i32
      %24 = arith.cmpi ne, %23, %c0_i32_9 : i32
      scf.if %24 {
        %c0_44 = arith.constant 0 : index
        %c0_45 = arith.constant 0 : index
        %76 = vector.load %arg21[%c0_44, %c0_45] : memref<1x128xf32, #tpu.memory_space<vmem>>, vector<1x128xf32>
        %cst_46 = arith.constant 3.125000e-03 : f32
        %77 = vector.broadcast %cst_46 : f32 to vector<1x128xf32>
        %78 = arith.mulf %76, %77 : vector<1x128xf32>
        %c0_47 = arith.constant 0 : index
        %c0_48 = arith.constant 0 : index
        %79 = vector.load %arg22[%c0_47, %c0_48] : memref<1x128xf32, #tpu.memory_space<vmem>>, vector<1x128xf32>
        %cst_49 = arith.constant 3.125000e-03 : f32
        %80 = vector.broadcast %cst_49 : f32 to vector<1x128xf32>
        %81 = arith.mulf %79, %80 : vector<1x128xf32>
        %82 = arith.mulf %78, %78 : vector<1x128xf32>
        %83 = arith.subf %81, %82 : vector<1x128xf32>
        %cst_50 = arith.constant 0.000000e+00 : f32
        %84 = vector.broadcast %cst_50 : f32 to vector<1x128xf32>
        %85 = arith.maximumf %83, %84 : vector<1x128xf32>
        %c0_51 = arith.constant 0 : index
        %c0_52 = arith.constant 0 : index
        %86 = vector.load %arg10[%c0_51, %c0_52] : memref<1x128xf32, #tpu.memory_space<vmem>>, vector<1x128xf32>
        %cst_53 = arith.constant 9.99999974E-6 : f32
        %87 = vector.broadcast %cst_53 : f32 to vector<1x128xf32>
        %88 = arith.addf %85, %87 : vector<1x128xf32>
        %89 = math.rsqrt %88 : vector<1x128xf32>
        %90 = arith.mulf %86, %89 : vector<1x128xf32>
        %c0_54 = arith.constant 0 : index
        %c0_55 = arith.constant 0 : index
        %91 = vector.load %arg23[%c0_54, %c0_55] : memref<1x128xf32, #tpu.memory_space<vmem>>, vector<1x128xf32>
        tpu.vector_store %arg23[%c0_54, %c0_55], %90 {strides = array<i32>} : memref<1x128xf32, #tpu.memory_space<vmem>>, vector<1x128xf32>,
        %c0_56 = arith.constant 0 : index
        %c0_57 = arith.constant 0 : index
        %92 = vector.load %arg11[%c0_56, %c0_57] : memref<1x128xf32, #tpu.memory_space<vmem>>, vector<1x128xf32>
        %93 = arith.mulf %78, %90 : vector<1x128xf32>
        %94 = arith.subf %92, %93 : vector<1x128xf32>
        %c0_58 = arith.constant 0 : index
        %c0_59 = arith.constant 0 : index
        %95 = vector.load %arg24[%c0_58, %c0_59] : memref<1x128xf32, #tpu.memory_space<vmem>>, vector<1x128xf32>
        tpu.vector_store %arg24[%c0_58, %c0_59], %94 {strides = array<i32>} : memref<1x128xf32, #tpu.memory_space<vmem>>, vector<1x128xf32>,
        %cst_60 = arith.constant 0.000000e+00 : f32
        %96 = vector.broadcast %cst_60 : f32 to vector<1x128xf32>
        %c0_61 = arith.constant 0 : index
        %c0_62 = arith.constant 0 : index
        %97 = vector.load %arg21[%c0_61, %c0_62] : memref<1x128xf32, #tpu.memory_space<vmem>>, vector<1x128xf32>
        tpu.vector_store %arg21[%c0_61, %c0_62], %96 {strides = array<i32>} : memref<1x128xf32, #tpu.memory_space<vmem>>, vector<1x128xf32>,
        %cst_63 = arith.constant 0.000000e+00 : f32
        %98 = vector.broadcast %cst_63 : f32 to vector<1x128xf32>
        %c0_64 = arith.constant 0 : index
        %c0_65 = arith.constant 0 : index
        %99 = vector.load %arg22[%c0_64, %c0_65] : memref<1x128xf32, #tpu.memory_space<vmem>>, vector<1x128xf32>
        tpu.vector_store %arg22[%c0_64, %c0_65], %98 {strides = array<i32>} : memref<1x128xf32, #tpu.memory_space<vmem>>, vector<1x128xf32>,
        %cst_66 = arith.constant 0.000000e+00 : f32
        %100 = vector.broadcast %cst_66 : f32 to vector<8x128xf32>
        %c0_67 = arith.constant 0 : index
        %c0_68 = arith.constant 0 : index
        %101 = vector.load %arg25[%c0_67, %c0_68] : memref<8x128xf32, #tpu.memory_space<vmem>>, vector<8x128xf32>
        tpu.vector_store %arg25[%c0_67, %c0_68], %100 {strides = array<i32>} : memref<8x128xf32, #tpu.memory_space<vmem>>, vector<8x128xf32>,
      } else {
      }
      %c0_10 = arith.constant 0 : index
      %c0_11 = arith.constant 0 : index
      %25 = vector.load %arg23[%c0_10, %c0_11] : memref<1x128xf32, #tpu.memory_space<vmem>>, vector<1x128xf32>
      %c0_12 = arith.constant 0 : index
      %c0_13 = arith.constant 0 : index
      %26 = vector.load %arg24[%c0_12, %c0_13] : memref<1x128xf32, #tpu.memory_space<vmem>>, vector<1x128xf32>
      %c0_14 = arith.constant 0 : index
      %c0_15 = arith.constant 0 : index
      %27 = vector.load %arg20[%c0_14, %c0_15] : memref<384x128xbf16, #tpu.memory_space<vmem>>, vector<384x128xbf16>
      %cst = arith.constant dense<0.000000e+00> : vector<128x128xf32>
      %28 = tpu.matmul %9, %27, %cst {dimension_numbers = #tpu.dot_dimension_numbers<[1], [0], [0], [1], [0, 0, 1, 1], [], []>} : vector<128x384xbf16>, vector<384x128xbf16>, vector<128x128xf32> -> vector<128x128xf32>
      %29 = vector.broadcast %25 : vector<1x128xf32> to vector<128x128xf32>
      %30 = arith.mulf %28, %29 : vector<128x128xf32>
      %31 = vector.broadcast %10 : vector<128x1xf32> to vector<128x128xf32>
      %32 = vector.broadcast %26 : vector<1x128xf32> to vector<128x128xf32>
      %33 = arith.mulf %31, %32 : vector<128x128xf32>
      %34 = arith.addf %30, %33 : vector<128x128xf32>
      %35 = arith.index_cast %1 : i32 to index
      %c0_16 = arith.constant 0 : index
      %36 = vector.load %arg20[%35, %c0_16] : memref<384x128xbf16, #tpu.memory_space<vmem>>, vector<128x128xbf16>
      %37 = arith.extf %36 : vector<128x128xbf16> to vector<128x128xf32>
      %38 = vector.broadcast %25 : vector<1x128xf32> to vector<128x128xf32>
      %39 = arith.mulf %37, %38 : vector<128x128xf32>
      %40 = vector.broadcast %26 : vector<1x128xf32> to vector<128x128xf32>
      %41 = arith.addf %39, %40 : vector<128x128xf32>
      %42 = arith.truncf %34 : vector<128x128xf32> to vector<128x128xbf16>
      %c0_17 = arith.constant 0 : index
      %c0_18 = arith.constant 0 : index
      %43 = vector.load %arg12[%c0_17, %c0_18] : memref<128x128xbf16, #tpu.memory_space<vmem>>, vector<128x128xbf16>
      %cst_19 = arith.constant dense<0.000000e+00> : vector<128x128xf32>
      %44 = tpu.matmul %42, %43, %cst_19 {dimension_numbers = #tpu.dot_dimension_numbers<[1], [0], [0], [1], [0, 0, 1, 1], [], []>} : vector<128x128xbf16>, vector<128x128xbf16>, vector<128x128xf32> -> vector<128x128xf32>
      %45 = arith.truncf %41 : vector<128x128xf32> to vector<128x128xbf16>
      %c0_20 = arith.constant 0 : index
      %c0_21 = arith.constant 0 : index
      %46 = vector.load %arg13[%c0_20, %c0_21] : memref<128x128xbf16, #tpu.memory_space<vmem>>, vector<128x128xbf16>
      %cst_22 = arith.constant dense<0.000000e+00> : vector<128x128xf32>
      %47 = tpu.matmul %45, %46, %cst_22 {dimension_numbers = #tpu.dot_dimension_numbers<[1], [0], [0], [1], [0, 0, 1, 1], [], []>} : vector<128x128xbf16>, vector<128x128xbf16>, vector<128x128xf32> -> vector<128x128xf32>
      %48 = arith.addf %44, %47 : vector<128x128xf32>
      %c0_23 = arith.constant 0 : index
      %c0_24 = arith.constant 0 : index
      %49 = vector.load %arg14[%c0_23, %c0_24] : memref<1x128xf32, #tpu.memory_space<vmem>>, vector<1x128xf32>
      %50 = vector.broadcast %49 : vector<1x128xf32> to vector<128x128xf32>
      %51 = arith.addf %48, %50 : vector<128x128xf32>
      %cst_25 = arith.constant 0.000000e+00 : f32
      %52 = vector.broadcast %cst_25 : f32 to vector<128x128xf32>
      %53 = arith.maximumf %51, %52 : vector<128x128xf32>
      %54 = vector.broadcast %8 : vector<128x1xf32> to vector<128x128xf32>
      %55 = arith.mulf %53, %54 : vector<128x128xf32>
      %c0_26 = arith.constant 0 : index
      %c0_27 = arith.constant 0 : index
      %56 = vector.load %arg21[%c0_26, %c0_27] : memref<1x128xf32, #tpu.memory_space<vmem>>, vector<1x128xf32>
      %cst_28 = arith.constant dense<0.000000e+00> : vector<128xf32>
      %57 = vector.multi_reduction <add>, %55, %cst_28 [0] : vector<128x128xf32> to vector<128xf32>
      %58 = vector.shape_cast %57 : vector<128xf32> to vector<1x128xf32>
      %59 = arith.addf %56, %58 : vector<1x128xf32>
      %c0_29 = arith.constant 0 : index
      %c0_30 = arith.constant 0 : index
      %60 = vector.load %arg21[%c0_29, %c0_30] : memref<1x128xf32, #tpu.memory_space<vmem>>, vector<1x128xf32>
      tpu.vector_store %arg21[%c0_29, %c0_30], %59 {strides = array<i32>} : memref<1x128xf32, #tpu.memory_space<vmem>>, vector<1x128xf32>,
      %c0_31 = arith.constant 0 : index
      %c0_32 = arith.constant 0 : index
      %61 = vector.load %arg22[%c0_31, %c0_32] : memref<1x128xf32, #tpu.memory_space<vmem>>, vector<1x128xf32>
      %62 = arith.mulf %55, %53 : vector<128x128xf32>
      %cst_33 = arith.constant dense<0.000000e+00> : vector<128xf32>
      %63 = vector.multi_reduction <add>, %62, %cst_33 [0] : vector<128x128xf32> to vector<128xf32>
      %64 = vector.shape_cast %63 : vector<128xf32> to vector<1x128xf32>
      %65 = arith.addf %61, %64 : vector<1x128xf32>
      %c0_34 = arith.constant 0 : index
      %c0_35 = arith.constant 0 : index
      %66 = vector.load %arg22[%c0_34, %c0_35] : memref<1x128xf32, #tpu.memory_space<vmem>>, vector<1x128xf32>
      tpu.vector_store %arg22[%c0_34, %c0_35], %65 {strides = array<i32>} : memref<1x128xf32, #tpu.memory_space<vmem>>, vector<1x128xf32>,
      %c0_36 = arith.constant 0 : index
      %c0_37 = arith.constant 0 : index
      %67 = vector.load %arg25[%c0_36, %c0_37] : memref<8x128xf32, #tpu.memory_space<vmem>>, vector<8x128xf32>
      %c0_38 = arith.constant 0 : index
      %c0_39 = arith.constant 0 : index
      %68 = vector.load %arg4[%c0_38, %c0_39] : memref<8x128xbf16, #tpu.memory_space<vmem>>, vector<8x128xbf16>
      %69 = arith.truncf %53 : vector<128x128xf32> to vector<128x128xbf16>
      %cst_40 = arith.constant dense<0.000000e+00> : vector<8x128xf32>
      %70 = tpu.matmul %68, %69, %cst_40 {dimension_numbers = #tpu.dot_dimension_numbers<[1], [0], [0], [1], [0, 0, 1, 1], [], []>} : vector<8x128xbf16>, vector<128x128xbf16>, vector<8x128xf32> -> vector<8x128xf32>
      %71 = arith.addf %67, %70 : vector<8x128xf32>
      %c0_41 = arith.constant 0 : index
      %c0_42 = arith.constant 0 : index
      %72 = vector.load %arg25[%c0_41, %c0_42] : memref<8x128xf32, #tpu.memory_space<vmem>>, vector<8x128xf32>
      tpu.vector_store %arg25[%c0_41, %c0_42], %71 {strides = array<i32>} : memref<8x128xf32, #tpu.memory_space<vmem>>, vector<8x128xf32>,
      %c2_i32 = arith.constant 2 : i32
      %73 = arith.cmpi eq, %arg1, %c2_i32 : i32
      %74 = arith.extui %73 : i1 to i32
      %c0_i32_43 = arith.constant 0 : i32
      %75 = arith.cmpi ne, %74, %c0_i32_43 : i32
      scf.if %75 {
        %c0_44 = arith.constant 0 : index
        %c0_45 = arith.constant 0 : index
        %76 = vector.load %arg21[%c0_44, %c0_45] : memref<1x128xf32, #tpu.memory_space<vmem>>, vector<1x128xf32>
        %cst_46 = arith.constant 3.125000e-03 : f32
        %77 = vector.broadcast %cst_46 : f32 to vector<1x128xf32>
        %78 = arith.mulf %76, %77 : vector<1x128xf32>
        %c0_47 = arith.constant 0 : index
        %c0_48 = arith.constant 0 : index
        %79 = vector.load %arg22[%c0_47, %c0_48] : memref<1x128xf32, #tpu.memory_space<vmem>>, vector<1x128xf32>
        %cst_49 = arith.constant 3.125000e-03 : f32
        %80 = vector.broadcast %cst_49 : f32 to vector<1x128xf32>
        %81 = arith.mulf %79, %80 : vector<1x128xf32>
        %82 = arith.mulf %78, %78 : vector<1x128xf32>
        %83 = arith.subf %81, %82 : vector<1x128xf32>
        %cst_50 = arith.constant 0.000000e+00 : f32
        %84 = vector.broadcast %cst_50 : f32 to vector<1x128xf32>
        %85 = arith.maximumf %83, %84 : vector<1x128xf32>
        %c0_51 = arith.constant 0 : index
        %c0_52 = arith.constant 0 : index
        %86 = vector.load %arg15[%c0_51, %c0_52] : memref<1x128xf32, #tpu.memory_space<vmem>>, vector<1x128xf32>
        %cst_53 = arith.constant 9.99999974E-6 : f32
        %87 = vector.broadcast %cst_53 : f32 to vector<1x128xf32>
        %88 = arith.addf %85, %87 : vector<1x128xf32>
        %89 = math.rsqrt %88 : vector<1x128xf32>
        %90 = arith.mulf %86, %89 : vector<1x128xf32>
        %c0_54 = arith.constant 0 : index
        %c0_55 = arith.constant 0 : index
        %91 = vector.load %arg16[%c0_54, %c0_55] : memref<1x128xf32, #tpu.memory_space<vmem>>, vector<1x128xf32>
        %92 = arith.mulf %78, %90 : vector<1x128xf32>
        %93 = arith.subf %91, %92 : vector<1x128xf32>
        %c0_56 = arith.constant 0 : index
        %c0_57 = arith.constant 0 : index
        %94 = vector.load %arg25[%c0_56, %c0_57] : memref<8x128xf32, #tpu.memory_space<vmem>>, vector<8x128xf32>
        %95 = vector.broadcast %90 : vector<1x128xf32> to vector<8x128xf32>
        %96 = arith.mulf %94, %95 : vector<8x128xf32>
        %c0_58 = arith.constant 0 : index
        %c0_59 = arith.constant 0 : index
        %97 = vector.load %arg6[%c0_58, %c0_59] : memref<8x1xf32, #tpu.memory_space<vmem>>, vector<8x1xf32>
        %98 = vector.broadcast %97 : vector<8x1xf32> to vector<8x128xf32>
        %99 = vector.broadcast %93 : vector<1x128xf32> to vector<8x128xf32>
        %100 = arith.mulf %98, %99 : vector<8x128xf32>
        %101 = arith.addf %96, %100 : vector<8x128xf32>
        %c0_60 = arith.constant 0 : index
        %c0_61 = arith.constant 0 : index
        %102 = vector.load %arg17[%c0_60, %c0_61] : memref<128x128xf32, #tpu.memory_space<vmem>>, vector<128x128xf32>
        %cst_62 = arith.constant dense<0.000000e+00> : vector<8x128xf32>
        %103 = tpu.matmul %101, %102, %cst_62 {dimension_numbers = #tpu.dot_dimension_numbers<[1], [0], [0], [1], [0, 0, 1, 1], [], []>} : vector<8x128xf32>, vector<128x128xf32>, vector<8x128xf32> -> vector<8x128xf32>
        %c0_63 = arith.constant 0 : index
        %c0_64 = arith.constant 0 : index
        %104 = vector.load %arg18[%c0_63, %c0_64] : memref<1x128xf32, #tpu.memory_space<vmem>>, vector<1x128xf32>
        %105 = vector.broadcast %104 : vector<1x128xf32> to vector<8x128xf32>
        %106 = arith.addf %103, %105 : vector<8x128xf32>
        %107 = arith.negf %106 : vector<8x128xf32>
        %108 = math.exp %107 : vector<8x128xf32>
        %cst_65 = arith.constant 1.000000e+00 : f32
        %109 = vector.broadcast %cst_65 : f32 to vector<8x128xf32>
        %110 = arith.addf %109, %108 : vector<8x128xf32>
        %111 = arith.divf %109, %110 : vector<8x128xf32>
        %c0_66 = arith.constant 0 : index
        %c0_67 = arith.constant 0 : index
        %112 = vector.load %arg19[%c0_66, %c0_67] : memref<8x128xf32, #tpu.memory_space<vmem>>, vector<8x128xf32>
        tpu.vector_store %arg19[%c0_66, %c0_67], %111 {strides = array<i32>} : memref<8x128xf32, #tpu.memory_space<vmem>>, vector<8x128xf32>,
      } else {
      }
    } else {
    }
    return
  }
  func.func @transform_0(%arg0: i32, %arg1: i32) -> (i32, i32) {
    %c0_i32 = arith.constant 0 : i32
    %c0_i32_0 = arith.constant 0 : i32
    return %arg1, %c0_i32 : i32, i32
  }
  func.func @transform_1(%arg0: i32, %arg1: i32) -> (i32, i32) {
    %c0_i32 = arith.constant 0 : i32
    %c0_i32_0 = arith.constant 0 : i32
    %c0_i32_1 = arith.constant 0 : i32
    return %c0_i32, %c0_i32_0 : i32, i32
  }
  func.func @transform_2(%arg0: i32, %arg1: i32) -> (i32, i32) {
    %c0_i32 = arith.constant 0 : i32
    %c0_i32_0 = arith.constant 0 : i32
    return %c0_i32, %arg1 : i32, i32
  }
  func.func @transform_3(%arg0: i32, %arg1: i32) -> (i32, i32) {
    %c0_i32 = arith.constant 0 : i32
    %c0_i32_0 = arith.constant 0 : i32
    return %arg1, %c0_i32 : i32, i32
  }
  func.func @transform_4(%arg0: i32, %arg1: i32) -> (i32, i32) {
    %c0_i32 = arith.constant 0 : i32
    %c0_i32_0 = arith.constant 0 : i32
    %c0_i32_1 = arith.constant 0 : i32
    return %c0_i32, %c0_i32_0 : i32, i32
  }
  func.func @transform_5(%arg0: i32, %arg1: i32) -> (i32, i32) {
    %c0_i32 = arith.constant 0 : i32
    %c0_i32_0 = arith.constant 0 : i32
    %c0_i32_1 = arith.constant 0 : i32
    return %c0_i32, %c0_i32_0 : i32, i32
  }
  func.func @transform_6(%arg0: i32, %arg1: i32) -> (i32, i32) {
    %c0_i32 = arith.constant 0 : i32
    %c0_i32_0 = arith.constant 0 : i32
    %c0_i32_1 = arith.constant 0 : i32
    return %c0_i32, %c0_i32_0 : i32, i32
  }
  func.func @transform_7(%arg0: i32, %arg1: i32) -> (i32, i32) {
    %c0_i32 = arith.constant 0 : i32
    %c0_i32_0 = arith.constant 0 : i32
    %c0_i32_1 = arith.constant 0 : i32
    return %c0_i32, %c0_i32_0 : i32, i32
  }
  func.func @transform_8(%arg0: i32, %arg1: i32) -> (i32, i32) {
    %c0_i32 = arith.constant 0 : i32
    %c0_i32_0 = arith.constant 0 : i32
    %c0_i32_1 = arith.constant 0 : i32
    return %c0_i32, %c0_i32_0 : i32, i32
  }
  func.func @transform_9(%arg0: i32, %arg1: i32) -> (i32, i32) {
    %c0_i32 = arith.constant 0 : i32
    %c0_i32_0 = arith.constant 0 : i32
    %c0_i32_1 = arith.constant 0 : i32
    return %c0_i32, %c0_i32_0 : i32, i32
  }
  func.func @transform_10(%arg0: i32, %arg1: i32) -> (i32, i32) {
    %c0_i32 = arith.constant 0 : i32
    %c0_i32_0 = arith.constant 0 : i32
    %c0_i32_1 = arith.constant 0 : i32
    return %c0_i32, %c0_i32_0 : i32, i32
  }
  func.func @transform_11(%arg0: i32, %arg1: i32) -> (i32, i32) {
    %c0_i32 = arith.constant 0 : i32
    %c0_i32_0 = arith.constant 0 : i32
    %c0_i32_1 = arith.constant 0 : i32
    return %c0_i32, %c0_i32_0 : i32, i32
  }
  func.func @transform_12(%arg0: i32, %arg1: i32) -> (i32, i32) {
    %c0_i32 = arith.constant 0 : i32
    %c0_i32_0 = arith.constant 0 : i32
    %c0_i32_1 = arith.constant 0 : i32
    return %c0_i32, %c0_i32_0 : i32, i32
  }
  func.func @transform_13(%arg0: i32, %arg1: i32) -> (i32, i32) {
    %c0_i32 = arith.constant 0 : i32
    %c0_i32_0 = arith.constant 0 : i32
    %c0_i32_1 = arith.constant 0 : i32
    return %c0_i32, %c0_i32_0 : i32, i32
  }
  func.func @transform_14(%arg0: i32, %arg1: i32) -> (i32, i32) {
    %c0_i32 = arith.constant 0 : i32
    %c0_i32_0 = arith.constant 0 : i32
    %c0_i32_1 = arith.constant 0 : i32
    return %c0_i32, %c0_i32_0 : i32, i32
  }
  func.func @transform_15(%arg0: i32, %arg1: i32) -> (i32, i32) {
    %c0_i32 = arith.constant 0 : i32
    %c0_i32_0 = arith.constant 0 : i32
    %c0_i32_1 = arith.constant 0 : i32
    return %c0_i32, %c0_i32_0 : i32, i32
  }
  func.func @transform_16(%arg0: i32, %arg1: i32) -> (i32, i32) {
    %c0_i32 = arith.constant 0 : i32
    %c0_i32_0 = arith.constant 0 : i32
    %c0_i32_1 = arith.constant 0 : i32
    return %c0_i32, %c0_i32_0 : i32, i32
  }
  func.func @transform_17(%arg0: i32, %arg1: i32) -> (i32, i32) {
    %c0_i32 = arith.constant 0 : i32
    %c0_i32_0 = arith.constant 0 : i32
    %c0_i32_1 = arith.constant 0 : i32
    return %c0_i32, %c0_i32_0 : i32, i32
  }
}

</mosaic_0001>

<llo_original>
// kernel: tpu_custom_call.1
$region0: #{tpu_custom_call.1}
  #allocation0 [shape = 'u32[]', space=smem, size = 0x4, offset = 0x4, fixed_abs, tag = 'smem constant byte address 0x4 - core index']
  #allocation1 [shape = 'u32[144,128]{1,0:T(1,128)}', space=vmem, size = 0x12000, scoped, tag = 'internal scratch']
  #allocation2 [shape = 'bf16[384,128]{1,0:T(16,128)(2,1)}', space=vmem, size = 0x18000, scoped, tag = 'scratch operand']
  #allocation3 [shape = 'f32[1,128]{1,0:T(1,128)}', space=vmem, size = 0x200, scoped, tag = 'scratch operand']
  #allocation4 [shape = 'f32[1,128]{1,0:T(1,128)}', space=vmem, size = 0x200, scoped, tag = 'scratch operand']
  #allocation5 [shape = 'f32[1,128]{1,0:T(1,128)}', space=vmem, size = 0x200, scoped, tag = 'scratch operand']
  #allocation6 [shape = 'f32[1,128]{1,0:T(1,128)}', space=vmem, size = 0x200, scoped, tag = 'scratch operand']
  #allocation7 [shape = 'f32[8,128]{1,0:T(8,128)}', space=vmem, size = 0x1000, scoped, tag = 'scratch operand']
  %s0 = inlined_call_operand.hbm [shape: bf16[384,384], index: 0, kind: input, shape index: {}]
  %s1 = inlined_call_operand.vmem [shape: bf16[384,128], index: 1, kind: input, shape index: {}]
  %s2 = inlined_call_operand.vmem [shape: bf16[8,384], index: 2, kind: input, shape index: {}]
  %s3 = inlined_call_operand.vmem [shape: f32[384,1], index: 3, kind: input, shape index: {}]
  %s4 = inlined_call_operand.vmem [shape: f32[8,1], index: 4, kind: input, shape index: {}]
  %s5 = inlined_call_operand.vmem [shape: bf16[128,128], index: 5, kind: input, shape index: {}]
  %s6 = inlined_call_operand.hbm [shape: bf16[128,128], index: 6, kind: input, shape index: {}]
  %s7 = inlined_call_operand.vmem [shape: f32[1,128], index: 7, kind: input, shape index: {}]
  %s8 = inlined_call_operand.vmem [shape: f32[1,128], index: 8, kind: input, shape index: {}]
  %s9 = inlined_call_operand.vmem [shape: f32[1,128], index: 9, kind: input, shape index: {}]
  %s10 = inlined_call_operand.hbm [shape: bf16[128,128], index: 10, kind: input, shape index: {}]
  %s11 = inlined_call_operand.hbm [shape: bf16[128,128], index: 11, kind: input, shape index: {}]
  %s12 = inlined_call_operand.vmem [shape: f32[1,128], index: 12, kind: input, shape index: {}]
  %s13 = inlined_call_operand.vmem [shape: f32[1,128], index: 13, kind: input, shape index: {}]
  %s14 = inlined_call_operand.vmem [shape: f32[1,128], index: 14, kind: input, shape index: {}]
  %s15 = inlined_call_operand.vmem [shape: f32[128,128], index: 15, kind: input, shape index: {}]
  %s16 = inlined_call_operand.vmem [shape: f32[1,128], index: 16, kind: input, shape index: {}]
  %s17 = inlined_call_operand.hbm [shape: f32[8,128], index: 17, kind: output, shape index: {}]
  %s18 = sld [smem:[#allocation0]]
  $region137: #{tpu_custom_call.1} parent=0
    _
  %s20 = ssub.s32 1, %s18
  %s21 = scalar_select 0, %s20, %s18
  $region1: #{tpu_custom_call.1} parent=0
    #allocation8 [shape = 'u8[196608]{0}', space=vmem, size = 0x30000, scoped, tag = 'input window, operand 0']
    #allocation9 [shape = 's32[2]{0}', space=sflag, size = 0x8, scoped, tag = 'scoped memory for tpu_custom_call.1']
    #allocation10 [shape = 's32[2]{0}', space=sflag, size = 0x8, scoped, tag = 'scoped memory for tpu_custom_call.1']
    #allocation11 [shape = 'u8[32768]{0}', space=vmem, size = 0x8000, scoped, tag = 'input window, operand 6, single buffered']
    #allocation12 [shape = 's32[1]{0}', space=sflag, size = 0x4, scoped, tag = 'scoped memory for tpu_custom_call.1']
    #allocation13 [shape = 'u8[32768]{0}', space=vmem, size = 0x8000, scoped, tag = 'input window, operand 10, single buffered']
    #allocation14 [shape = 'u8[32768]{0}', space=vmem, size = 0x8000, scoped, tag = 'input window, operand 11, single buffered']
    #allocation15 [shape = 's32[1]{0}', space=sflag, size = 0x4, scoped, tag = 'scoped memory for tpu_custom_call.1']
    #allocation16 [shape = 'u8[4096]{0}', space=vmem, size = 0x1000, scoped, tag = 'output window, operand 0, single buffered']
    %22 = vsyncpa [#allocation9], 0
    %s23 = scalar_lea.sflag [#allocation9], 1
    %24 = vsyncpa %s23, 0
    %25 = vsyncpa [#allocation12], 0
    %26 = vsyncpa [#allocation15], 0
    %27 = vsyncpa [#allocation10], 0
    loop: start=0, step=1, limit=8
    $region2: #{tpu_custom_call.1} parent=1 // loop_pre_header
      _
    $region3: #{tpu_custom_call.1} parent=1 // loop_header
      %s29 = sphi 0, %s33
      %p30 = scmp.ge.s32.totalorder %s29, 8
      %s36 = sphi 0, %s48
      %s37 = sphi 0, %s44
      %s38 = sphi 0, %s36
      %s39 = sphi 0, %s37
      %s40 = sphi 0, %s38
      %s41 = sphi 0, %s39
      %s51 = sphi 0, %s53
      %s54 = sphi 0, %s51
      %s55 = sphi 0, %s54
      %s71 = sphi 0, %s55
      %s75 = sphi 0, %s75
      %s77 = sphi 0, %s75
      %s78 = sphi 0, %s77
      %s92 = sphi 0, %s78
      %s98 = sphi 0, %s100
      %s101 = sphi 0, %s98
      %s102 = sphi 0, %s101
      %s118 = sphi 0, %s102
      %s124 = sphi 0, %s126
      %s127 = sphi 0, %s124
      %s128 = sphi 0, %s127
      %s144 = sphi 0, %s128
      %s148 = sphi 0, %s148
      %s150 = sphi 0, %s148
      %s151 = sphi 0, %s150
      %s165 = sphi 0, %s151
      %s169 = sphi 0, %s169
      %s171 = sphi 0, %s169
      %s172 = sphi 0, %s171
      %s186 = sphi 0, %s172
      %s190 = sphi 0, %s190
      %s192 = sphi 0, %s190
      %s193 = sphi 0, %s192
      %s207 = sphi 0, %s193
      %s211 = sphi 0, %s211
      %s213 = sphi 0, %s211
      %s214 = sphi 0, %s213
      %s228 = sphi 0, %s214
      %s232 = sphi 0, %s232
      %s234 = sphi 0, %s232
      %s235 = sphi 0, %s234
      %s249 = sphi 0, %s235
      %s253 = sphi 0, %s253
      %s255 = sphi 0, %s253
      %s256 = sphi 0, %s255
      %s270 = sphi 0, %s256
      %s274 = sphi 0, %s274
      %s276 = sphi 0, %s274
      %s277 = sphi 0, %s276
      %s291 = sphi 0, %s277
      %s295 = sphi 0, %s295
      %s297 = sphi 0, %s295
      %s298 = sphi 0, %s297
      %s312 = sphi 0, %s298
      %s316 = sphi 0, %s316
      %s318 = sphi 0, %s316
      %s319 = sphi 0, %s318
      %s333 = sphi 0, %s319
      %s337 = sphi 0, %s337
      %s339 = sphi 0, %s337
      %s340 = sphi 0, %s339
      %s354 = sphi 0, %s340
      %s358 = sphi 0, %s358
      %s360 = sphi 0, %s358
      %s361 = sphi 0, %s360
      %s375 = sphi 0, %s361
      %s379 = sphi 0, %s379
      %s381 = sphi 0, %s379
      %s382 = sphi 0, %s381
      %s396 = sphi 0, %s382
      %s400 = sphi 0, %s400
      %s402 = sphi 0, %s400
      %s403 = sphi 0, %s402
      %s417 = sphi 0, %s403
      %s421 = sphi 0, %s421
      %s423 = sphi 0, %s421
      %s424 = sphi 0, %s423
      %s438 = sphi 0, %s424
    $region4: #{tpu_custom_call.1} parent=1 // loop_header_branch
      %32 = sbr.rel (%p30) target = $region8
    $region5: #{tpu_custom_call.1} parent=1 // loop_body
      %s34 = ssub.s32 %s29, 1
      %s35 = ssub.s32 %s29, 2
      %s42 = sadd.s32 1, %s37
      %p43 = scmp.ge.s32.totalorder %s42, 3
      %s44 = scalar_select %p43, 0, %s42
      %s45 = sadd.s32 1, %s36
      %s46 = scalar_select %p43, %s45, %s36
      %p47 = scmp.ge.s32.totalorder %s46, 2
      %s48 = scalar_select %p47, 0, %s46
      %s49 = ssub.s32 %s37, %s44
      %p50 = scmp.eq.s32.totalorder %s49, 0
      %s52 = sadd.s32 %s51, 1
      %s53 = scalar_select %p50, %s51, %s52
      %p56 = pneg %p50
      %p57 = scmp.eq.s32.totalorder %s29, 5
      %p58 = por %p56, %p57
      %p59 = scmp.ne.s32.totalorder %s51, %s54
      %p60 = scmp.eq.s32.totalorder %s29, 0
      %p61 = por %p59, %p60
      %p62 = scmp.ne.s32.totalorder %s51, %s54
      %p63 = scmp.eq.s32.totalorder %s34, 5
      %p64 = por %p62, %p63
      %p65 = scmp.ne.s32.totalorder %s54, %s55
      %p66 = scmp.eq.s32.totalorder %s34, 0
      %p67 = por %p65, %p66
      %p68 = scmp.ne.s32.totalorder %s54, %s55
      %p69 = scmp.eq.s32.totalorder %s35, 5
      %p70 = por %p68, %p69
      %p72 = scmp.ne.s32.totalorder %s55, %s71
      %p73 = scmp.eq.s32.totalorder %s35, 0
      %p74 = por %p72, %p73
      %s76 = sadd.s32 %s75, 1
      %p79 = scmp.eq.s32.totalorder %s29, 5
      %p80 = scmp.ne.s32.totalorder %s75, %s77
      %p81 = scmp.eq.s32.totalorder %s29, 0
      %p82 = por %p80, %p81
      %p83 = scmp.ne.s32.totalorder %s75, %s77
      %p84 = scmp.eq.s32.totalorder %s34, 5
      %p85 = por %p83, %p84
      %p86 = scmp.ne.s32.totalorder %s77, %s78
      %p87 = scmp.eq.s32.totalorder %s34, 0
      %p88 = por %p86, %p87
      %p89 = scmp.ne.s32.totalorder %s77, %s78
      %p90 = scmp.eq.s32.totalorder %s35, 5
      %p91 = por %p89, %p90
      %p93 = scmp.ne.s32.totalorder %s78, %s92
      %p94 = scmp.eq.s32.totalorder %s35, 0
      %p95 = por %p93, %p94
      %s96 = ssub.s32 %s37, %s44
      %p97 = scmp.eq.s32.totalorder %s96, 0
      %s99 = sadd.s32 %s98, 1
      %s100 = scalar_select %p97, %s98, %s99
      %p103 = pneg %p97
      %p104 = scmp.eq.s32.totalorder %s29, 5
      %p105 = por %p103, %p104
      %p106 = scmp.ne.s32.totalorder %s98, %s101
      %p107 = scmp.eq.s32.totalorder %s29, 0
      %p108 = por %p106, %p107
      %p109 = scmp.ne.s32.totalorder %s98, %s101
      %p110 = scmp.eq.s32.totalorder %s34, 5
      %p111 = por %p109, %p110
      %p112 = scmp.ne.s32.totalorder %s101, %s102
      %p113 = scmp.eq.s32.totalorder %s34, 0
      %p114 = por %p112, %p113
      %p115 = scmp.ne.s32.totalorder %s101, %s102
      %p116 = scmp.eq.s32.totalorder %s35, 5
      %p117 = por %p115, %p116
      %p119 = scmp.ne.s32.totalorder %s102, %s118
      %p120 = scmp.eq.s32.totalorder %s35, 0
      %p121 = por %p119, %p120
      %s122 = ssub.s32 %s37, %s44
      %p123 = scmp.eq.s32.totalorder %s122, 0
      %s125 = sadd.s32 %s124, 1
      %s126 = scalar_select %p123, %s124, %s125
      %p129 = pneg %p123
      %p130 = scmp.eq.s32.totalorder %s29, 5
      %p131 = por %p129, %p130
      %p132 = scmp.ne.s32.totalorder %s124, %s127
      %p133 = scmp.eq.s32.totalorder %s29, 0
      %p134 = por %p132, %p133
      %p135 = scmp.ne.s32.totalorder %s124, %s127
      %p136 = scmp.eq.s32.totalorder %s34, 5
      %p137 = por %p135, %p136
      %p138 = scmp.ne.s32.totalorder %s127, %s128
      %p139 = scmp.eq.s32.totalorder %s34, 0
      %p140 = por %p138, %p139
      %p141 = scmp.ne.s32.totalorder %s127, %s128
      %p142 = scmp.eq.s32.totalorder %s35, 5
      %p143 = por %p141, %p142
      %p145 = scmp.ne.s32.totalorder %s128, %s144
      %p146 = scmp.eq.s32.totalorder %s35, 0
      %p147 = por %p145, %p146
      %s149 = sadd.s32 %s148, 1
      %p152 = scmp.eq.s32.totalorder %s29, 5
      %p153 = scmp.ne.s32.totalorder %s148, %s150
      %p154 = scmp.eq.s32.totalorder %s29, 0
      %p155 = por %p153, %p154
      %p156 = scmp.ne.s32.totalorder %s148, %s150
      %p157 = scmp.eq.s32.totalorder %s34, 5
      %p158 = por %p156, %p157
      %p159 = scmp.ne.s32.totalorder %s150, %s151
      %p160 = scmp.eq.s32.totalorder %s34, 0
      %p161 = por %p159, %p160
      %p162 = scmp.ne.s32.totalorder %s150, %s151
      %p163 = scmp.eq.s32.totalorder %s35, 5
      %p164 = por %p162, %p163
      %p166 = scmp.ne.s32.totalorder %s151, %s165
      %p167 = scmp.eq.s32.totalorder %s35, 0
      %p168 = por %p166, %p167
      %s170 = sadd.s32 %s169, 1
      %p173 = scmp.eq.s32.totalorder %s29, 5
      %p174 = scmp.ne.s32.totalorder %s169, %s171
      %p175 = scmp.eq.s32.totalorder %s29, 0
      %p176 = por %p174, %p175
      %p177 = scmp.ne.s32.totalorder %s169, %s171
      %p178 = scmp.eq.s32.totalorder %s34, 5
      %p179 = por %p177, %p178
      %p180 = scmp.ne.s32.totalorder %s171, %s172
      %p181 = scmp.eq.s32.totalorder %s34, 0
      %p182 = por %p180, %p181
      %p183 = scmp.ne.s32.totalorder %s171, %s172
      %p184 = scmp.eq.s32.totalorder %s35, 5
      %p185 = por %p183, %p184
      %p187 = scmp.ne.s32.totalorder %s172, %s186
      %p188 = scmp.eq.s32.totalorder %s35, 0
      %p189 = por %p187, %p188
      %s191 = sadd.s32 %s190, 1
      %p194 = scmp.eq.s32.totalorder %s29, 5
      %p195 = scmp.ne.s32.totalorder %s190, %s192
      %p196 = scmp.eq.s32.totalorder %s29, 0
      %p197 = por %p195, %p196
      %p198 = scmp.ne.s32.totalorder %s190, %s192
      %p199 = scmp.eq.s32.totalorder %s34, 5
      %p200 = por %p198, %p199
      %p201 = scmp.ne.s32.totalorder %s192, %s193
      %p202 = scmp.eq.s32.totalorder %s34, 0
      %p203 = por %p201, %p202
      %p204 = scmp.ne.s32.totalorder %s192, %s193
      %p205 = scmp.eq.s32.totalorder %s35, 5
      %p206 = por %p204, %p205
      %p208 = scmp.ne.s32.totalorder %s193, %s207
      %p209 = scmp.eq.s32.totalorder %s35, 0
      %p210 = por %p208, %p209
      %s212 = sadd.s32 %s211, 1
      %p215 = scmp.eq.s32.totalorder %s29, 5
      %p216 = scmp.ne.s32.totalorder %s211, %s213
      %p217 = scmp.eq.s32.totalorder %s29, 0
      %p218 = por %p216, %p217
      %p219 = scmp.ne.s32.totalorder %s211, %s213
      %p220 = scmp.eq.s32.totalorder %s34, 5
      %p221 = por %p219, %p220
      %p222 = scmp.ne.s32.totalorder %s213, %s214
      %p223 = scmp.eq.s32.totalorder %s34, 0
      %p224 = por %p222, %p223
      %p225 = scmp.ne.s32.totalorder %s213, %s214
      %p226 = scmp.eq.s32.totalorder %s35, 5
      %p227 = por %p225, %p226
      %p229 = scmp.ne.s32.totalorder %s214, %s228
      %p230 = scmp.eq.s32.totalorder %s35, 0
      %p231 = por %p229, %p230
      %s233 = sadd.s32 %s232, 1
      %p236 = scmp.eq.s32.totalorder %s29, 5
      %p237 = scmp.ne.s32.totalorder %s232, %s234
      %p238 = scmp.eq.s32.totalorder %s29, 0
      %p239 = por %p237, %p238
      %p240 = scmp.ne.s32.totalorder %s232, %s234
      %p241 = scmp.eq.s32.totalorder %s34, 5
      %p242 = por %p240, %p241
      %p243 = scmp.ne.s32.totalorder %s234, %s235
      %p244 = scmp.eq.s32.totalorder %s34, 0
      %p245 = por %p243, %p244
      %p246 = scmp.ne.s32.totalorder %s234, %s235
      %p247 = scmp.eq.s32.totalorder %s35, 5
      %p248 = por %p246, %p247
      %p250 = scmp.ne.s32.totalorder %s235, %s249
      %p251 = scmp.eq.s32.totalorder %s35, 0
      %p252 = por %p250, %p251
      %s254 = sadd.s32 %s253, 1
      %p257 = scmp.eq.s32.totalorder %s29, 5
      %p258 = scmp.ne.s32.totalorder %s253, %s255
      %p259 = scmp.eq.s32.totalorder %s29, 0
      %p260 = por %p258, %p259
      %p261 = scmp.ne.s32.totalorder %s253, %s255
      %p262 = scmp.eq.s32.totalorder %s34, 5
      %p263 = por %p261, %p262
      %p264 = scmp.ne.s32.totalorder %s255, %s256
      %p265 = scmp.eq.s32.totalorder %s34, 0
      %p266 = por %p264, %p265
      %p267 = scmp.ne.s32.totalorder %s255, %s256
      %p268 = scmp.eq.s32.totalorder %s35, 5
      %p269 = por %p267, %p268
      %p271 = scmp.ne.s32.totalorder %s256, %s270
      %p272 = scmp.eq.s32.totalorder %s35, 0
      %p273 = por %p271, %p272
      %s275 = sadd.s32 %s274, 1
      %p278 = scmp.eq.s32.totalorder %s29, 5
      %p279 = scmp.ne.s32.totalorder %s274, %s276
      %p280 = scmp.eq.s32.totalorder %s29, 0
      %p281 = por %p279, %p280
      %p282 = scmp.ne.s32.totalorder %s274, %s276
      %p283 = scmp.eq.s32.totalorder %s34, 5
      %p284 = por %p282, %p283
      %p285 = scmp.ne.s32.totalorder %s276, %s277
      %p286 = scmp.eq.s32.totalorder %s34, 0
      %p287 = por %p285, %p286
      %p288 = scmp.ne.s32.totalorder %s276, %s277
      %p289 = scmp.eq.s32.totalorder %s35, 5
      %p290 = por %p288, %p289
      %p292 = scmp.ne.s32.totalorder %s277, %s291
      %p293 = scmp.eq.s32.totalorder %s35, 0
      %p294 = por %p292, %p293
      %s296 = sadd.s32 %s295, 1
      %p299 = scmp.eq.s32.totalorder %s29, 5
      %p300 = scmp.ne.s32.totalorder %s295, %s297
      %p301 = scmp.eq.s32.totalorder %s29, 0
      %p302 = por %p300, %p301
      %p303 = scmp.ne.s32.totalorder %s295, %s297
      %p304 = scmp.eq.s32.totalorder %s34, 5
      %p305 = por %p303, %p304
      %p306 = scmp.ne.s32.totalorder %s297, %s298
      %p307 = scmp.eq.s32.totalorder %s34, 0
      %p308 = por %p306, %p307
      %p309 = scmp.ne.s32.totalorder %s297, %s298
      %p310 = scmp.eq.s32.totalorder %s35, 5
      %p311 = por %p309, %p310
      %p313 = scmp.ne.s32.totalorder %s298, %s312
      %p314 = scmp.eq.s32.totalorder %s35, 0
      %p315 = por %p313, %p314
      %s317 = sadd.s32 %s316, 1
      %p320 = scmp.eq.s32.totalorder %s29, 5
      %p321 = scmp.ne.s32.totalorder %s316, %s318
      %p322 = scmp.eq.s32.totalorder %s29, 0
      %p323 = por %p321, %p322
      %p324 = scmp.ne.s32.totalorder %s316, %s318
      %p325 = scmp.eq.s32.totalorder %s34, 5
      %p326 = por %p324, %p325
      %p327 = scmp.ne.s32.totalorder %s318, %s319
      %p328 = scmp.eq.s32.totalorder %s34, 0
      %p329 = por %p327, %p328
      %p330 = scmp.ne.s32.totalorder %s318, %s319
      %p331 = scmp.eq.s32.totalorder %s35, 5
      %p332 = por %p330, %p331
      %p334 = scmp.ne.s32.totalorder %s319, %s333
      %p335 = scmp.eq.s32.totalorder %s35, 0
      %p336 = por %p334, %p335
      %s338 = sadd.s32 %s337, 1
      %p341 = scmp.eq.s32.totalorder %s29, 5
      %p342 = scmp.ne.s32.totalorder %s337, %s339
      %p343 = scmp.eq.s32.totalorder %s29, 0
      %p344 = por %p342, %p343
      %p345 = scmp.ne.s32.totalorder %s337, %s339
      %p346 = scmp.eq.s32.totalorder %s34, 5
      %p347 = por %p345, %p346
      %p348 = scmp.ne.s32.totalorder %s339, %s340
      %p349 = scmp.eq.s32.totalorder %s34, 0
      %p350 = por %p348, %p349
      %p351 = scmp.ne.s32.totalorder %s339, %s340
      %p352 = scmp.eq.s32.totalorder %s35, 5
      %p353 = por %p351, %p352
      %p355 = scmp.ne.s32.totalorder %s340, %s354
      %p356 = scmp.eq.s32.totalorder %s35, 0
      %p357 = por %p355, %p356
      %s359 = sadd.s32 %s358, 1
      %p362 = scmp.eq.s32.totalorder %s29, 5
      %p363 = scmp.ne.s32.totalorder %s358, %s360
      %p364 = scmp.eq.s32.totalorder %s29, 0
      %p365 = por %p363, %p364
      %p366 = scmp.ne.s32.totalorder %s358, %s360
      %p367 = scmp.eq.s32.totalorder %s34, 5
      %p368 = por %p366, %p367
      %p369 = scmp.ne.s32.totalorder %s360, %s361
      %p370 = scmp.eq.s32.totalorder %s34, 0
      %p371 = por %p369, %p370
      %p372 = scmp.ne.s32.totalorder %s360, %s361
      %p373 = scmp.eq.s32.totalorder %s35, 5
      %p374 = por %p372, %p373
      %p376 = scmp.ne.s32.totalorder %s361, %s375
      %p377 = scmp.eq.s32.totalorder %s35, 0
      %p378 = por %p376, %p377
      %s380 = sadd.s32 %s379, 1
      %p383 = scmp.eq.s32.totalorder %s29, 5
      %p384 = scmp.ne.s32.totalorder %s379, %s381
      %p385 = scmp.eq.s32.totalorder %s29, 0
      %p386 = por %p384, %p385
      %p387 = scmp.ne.s32.totalorder %s379, %s381
      %p388 = scmp.eq.s32.totalorder %s34, 5
      %p389 = por %p387, %p388
      %p390 = scmp.ne.s32.totalorder %s381, %s382
      %p391 = scmp.eq.s32.totalorder %s34, 0
      %p392 = por %p390, %p391
      %p393 = scmp.ne.s32.totalorder %s381, %s382
      %p394 = scmp.eq.s32.totalorder %s35, 5
      %p395 = por %p393, %p394
      %p397 = scmp.ne.s32.totalorder %s382, %s396
      %p398 = scmp.eq.s32.totalorder %s35, 0
      %p399 = por %p397, %p398
      %s401 = sadd.s32 %s400, 1
      %p404 = scmp.eq.s32.totalorder %s29, 5
      %p405 = scmp.ne.s32.totalorder %s400, %s402
      %p406 = scmp.eq.s32.totalorder %s29, 0
      %p407 = por %p405, %p406
      %p408 = scmp.ne.s32.totalorder %s400, %s402
      %p409 = scmp.eq.s32.totalorder %s34, 5
      %p410 = por %p408, %p409
      %p411 = scmp.ne.s32.totalorder %s402, %s403
      %p412 = scmp.eq.s32.totalorder %s34, 0
      %p413 = por %p411, %p412
      %p414 = scmp.ne.s32.totalorder %s402, %s403
      %p415 = scmp.eq.s32.totalorder %s35, 5
      %p416 = por %p414, %p415
      %p418 = scmp.ne.s32.totalorder %s403, %s417
      %p419 = scmp.eq.s32.totalorder %s35, 0
      %p420 = por %p418, %p419
      %s422 = sadd.s32 %s421, 1
      %p425 = scmp.eq.s32.totalorder %s29, 5
      %p426 = scmp.ne.s32.totalorder %s421, %s423
      %p427 = scmp.eq.s32.totalorder %s29, 0
      %p428 = por %p426, %p427
      %p429 = scmp.ne.s32.totalorder %s421, %s423
      %p430 = scmp.eq.s32.totalorder %s34, 5
      %p431 = por %p429, %p430
      %p432 = scmp.ne.s32.totalorder %s423, %s424
      %p433 = scmp.eq.s32.totalorder %s34, 0
      %p434 = por %p432, %p433
      %p435 = scmp.ne.s32.totalorder %s423, %s424
      %p436 = scmp.eq.s32.totalorder %s35, 5
      %p437 = por %p435, %p436
      %p439 = scmp.ne.s32.totalorder %s424, %s438
      %p440 = scmp.eq.s32.totalorder %s35, 0
      %p441 = por %p439, %p440
      %p442 = scmp.le.s32.totalorder 1, %s29
      %p443 = scmp.lt.s32.totalorder %s29, 7
      %p444 = pnand %p442, %p443
      %p445 = pneg %p444
      // Predicated region
      $region9: #{tpu_custom_call.1} parent=5 // pred_check
        _
      $region10: #{tpu_custom_call.1} parent=5 // pred_check_branch
        %447 = sbr.rel (%p444) target = $region12
      $region11: #{tpu_custom_call.1} parent=5 // pred_region
        %s448 = ssub.s32 %s29, 1
        // Predicated region
        $region13: #{tpu_custom_call.1} parent=11 // pred_check
          %p449 = pneg %p88
        $region14: #{tpu_custom_call.1} parent=11 // pred_check_branch
          %451 = sbr.rel (%p449) target = $region16
        $region15: #{tpu_custom_call.1} parent=11 // pred_region
          _
        $region16: #{tpu_custom_call.1} parent=11 // pred_fallthru
          _
        // Predicated region
        $region17: #{tpu_custom_call.1} parent=11 // pred_check
          %p452 = pneg %p161
        $region18: #{tpu_custom_call.1} parent=11 // pred_check_branch
          %454 = sbr.rel (%p452) target = $region20
        $region19: #{tpu_custom_call.1} parent=11 // pred_region
          _
        $region20: #{tpu_custom_call.1} parent=11 // pred_fallthru
          _
        // Predicated region
        $region21: #{tpu_custom_call.1} parent=11 // pred_check
          %p455 = pneg %p182
        $region22: #{tpu_custom_call.1} parent=11 // pred_check_branch
          %457 = sbr.rel (%p455) target = $region24
        $region23: #{tpu_custom_call.1} parent=11 // pred_region
          _
        $region24: #{tpu_custom_call.1} parent=11 // pred_fallthru
          _
        // Predicated region
        $region25: #{tpu_custom_call.1} parent=11 // pred_check
          %p458 = pneg %p203
        $region26: #{tpu_custom_call.1} parent=11 // pred_check_branch
          %460 = sbr.rel (%p458) target = $region28
        $region27: #{tpu_custom_call.1} parent=11 // pred_region
          %s462 = ssub.s32 1024, 1024
          %463 = vsyncadd [#allocation12], %s462
          %s464 = sshll.u32 [#allocation11], 4
          %s465 = int_to_ptr.vmem [resolvable:$true] %s464
          %470 = dma.hbm_to_vmem [thread:$0]  %s6, 1024, %s465, [#allocation12], 64, 64, 4
        $region28: #{tpu_custom_call.1} parent=11 // pred_fallthru
          _
        // Predicated region
        $region29: #{tpu_custom_call.1} parent=11 // pred_check
          %p471 = pneg %p224
        $region30: #{tpu_custom_call.1} parent=11 // pred_check_branch
          %473 = sbr.rel (%p471) target = $region32
        $region31: #{tpu_custom_call.1} parent=11 // pred_region
          _
        $region32: #{tpu_custom_call.1} parent=11 // pred_fallthru
          _
        // Predicated region
        $region33: #{tpu_custom_call.1} parent=11 // pred_check
          %p474 = pneg %p245
        $region34: #{tpu_custom_call.1} parent=11 // pred_check_branch
          %476 = sbr.rel (%p474) target = $region36
        $region35: #{tpu_custom_call.1} parent=11 // pred_region
          _
        $region36: #{tpu_custom_call.1} parent=11 // pred_fallthru
          _
        // Predicated region
        $region37: #{tpu_custom_call.1} parent=11 // pred_check
          %p477 = pneg %p266
        $region38: #{tpu_custom_call.1} parent=11 // pred_check_branch
          %479 = sbr.rel (%p477) target = $region40
        $region39: #{tpu_custom_call.1} parent=11 // pred_region
          _
        $region40: #{tpu_custom_call.1} parent=11 // pred_fallthru
          _
        // Predicated region
        $region41: #{tpu_custom_call.1} parent=11 // pred_check
          %p480 = pneg %p287
        $region42: #{tpu_custom_call.1} parent=11 // pred_check_branch
          %482 = sbr.rel (%p480) target = $region44
        $region43: #{tpu_custom_call.1} parent=11 // pred_region
          %s484 = ssub.s32 1024, 1024
          %485 = vsyncadd [#allocation12], %s484
          %s486 = sshll.u32 [#allocation13], 4
          %s487 = int_to_ptr.vmem [resolvable:$true] %s486
          %492 = dma.hbm_to_vmem [thread:$0]  %s10, 1024, %s487, [#allocation12], 64, 64, 4
        $region44: #{tpu_custom_call.1} parent=11 // pred_fallthru
          _
        // Predicated region
        $region45: #{tpu_custom_call.1} parent=11 // pred_check
          %p493 = pneg %p308
        $region46: #{tpu_custom_call.1} parent=11 // pred_check_branch
          %495 = sbr.rel (%p493) target = $region48
        $region47: #{tpu_custom_call.1} parent=11 // pred_region
          %s497 = ssub.s32 1024, 1024
          %498 = vsyncadd [#allocation15], %s497
          %s499 = sshll.u32 [#allocation14], 4
          %s500 = int_to_ptr.vmem [resolvable:$true] %s499
          %505 = dma.hbm_to_vmem [thread:$0]  %s11, 1024, %s500, [#allocation15], 64, 64, 4
        $region48: #{tpu_custom_call.1} parent=11 // pred_fallthru
          _
        // Predicated region
        $region49: #{tpu_custom_call.1} parent=11 // pred_check
          %p506 = pneg %p329
        $region50: #{tpu_custom_call.1} parent=11 // pred_check_branch
          %508 = sbr.rel (%p506) target = $region52
        $region51: #{tpu_custom_call.1} parent=11 // pred_region
          _
        $region52: #{tpu_custom_call.1} parent=11 // pred_fallthru
          _
        // Predicated region
        $region53: #{tpu_custom_call.1} parent=11 // pred_check
          %p509 = pneg %p350
        $region54: #{tpu_custom_call.1} parent=11 // pred_check_branch
          %511 = sbr.rel (%p509) target = $region56
        $region55: #{tpu_custom_call.1} parent=11 // pred_region
          _
        $region56: #{tpu_custom_call.1} parent=11 // pred_fallthru
          _
        // Predicated region
        $region57: #{tpu_custom_call.1} parent=11 // pred_check
          %p512 = pneg %p371
        $region58: #{tpu_custom_call.1} parent=11 // pred_check_branch
          %514 = sbr.rel (%p512) target = $region60
        $region59: #{tpu_custom_call.1} parent=11 // pred_region
          _
        $region60: #{tpu_custom_call.1} parent=11 // pred_fallthru
          _
        // Predicated region
        $region61: #{tpu_custom_call.1} parent=11 // pred_check
          %p515 = pneg %p392
        $region62: #{tpu_custom_call.1} parent=11 // pred_check_branch
          %517 = sbr.rel (%p515) target = $region64
        $region63: #{tpu_custom_call.1} parent=11 // pred_region
          _
        $region64: #{tpu_custom_call.1} parent=11 // pred_fallthru
          _
        // Predicated region
        $region65: #{tpu_custom_call.1} parent=11 // pred_check
          %p518 = pneg %p413
        $region66: #{tpu_custom_call.1} parent=11 // pred_check_branch
          %520 = sbr.rel (%p518) target = $region68
        $region67: #{tpu_custom_call.1} parent=11 // pred_region
          _
        $region68: #{tpu_custom_call.1} parent=11 // pred_fallthru
          _
      $region12: #{tpu_custom_call.1} parent=5 // pred_fallthru
        _
      %p521 = scmp.lt.s32.totalorder %s29, 6
      // Predicated region
      $region69: #{tpu_custom_call.1} parent=5 // pred_check
        %p522 = pneg %p521
      $region70: #{tpu_custom_call.1} parent=5 // pred_check_branch
        %524 = sbr.rel (%p522) target = $region72
      $region71: #{tpu_custom_call.1} parent=5 // pred_region
        // Predicated region
        $region73: #{tpu_custom_call.1} parent=71 // pred_check
          %p525 = pneg %p61
        $region74: #{tpu_custom_call.1} parent=71 // pred_check_branch
          %527 = sbr.rel (%p525) target = $region76
        $region75: #{tpu_custom_call.1} parent=71 // pred_region
          %s528 = sand.u32 %s51, 1
          %s529 = scalar_lea.sflag [#allocation9], %s528
          %s530 = sand.u32 %s51, 1
          %s531 = smul.addr %s530, 192
          %s532 = scalar_lea.vmem [#allocation8], %s531
          %s533 = smul.u32 16, %s37
          %s535 = ssub.s32 3072, 3072
          %536 = vsyncadd %s529, %s535
          %s537 = smul.addr %s533, 3
          %s538 = smul.addr %s537, 64
          %s539 = scalar_lea.hbm %s0, %s538
          %s540 = sshll.u32 %s532, 4
          %s541 = int_to_ptr.vmem [resolvable:$true] %s540
          %546 = dma.hbm_to_vmem [thread:$0]  %s539, 3072, %s541, %s529, 192, 192, 12
        $region76: #{tpu_custom_call.1} parent=71 // pred_fallthru
          _
        // Predicated region
        $region77: #{tpu_custom_call.1} parent=71 // pred_check
          %p547 = pneg %p108
        $region78: #{tpu_custom_call.1} parent=71 // pred_check_branch
          %549 = sbr.rel (%p547) target = $region80
        $region79: #{tpu_custom_call.1} parent=71 // pred_region
          %p550 = scmp.lt.s32.totalorder %s37, 2
          %s551 = scalar_select %p550, %s37, 2
          %s552 = smul.addr %s551, 4
          %s553 = scalar_lea.vmem %s2, %s552
        $region80: #{tpu_custom_call.1} parent=71 // pred_fallthru
          _
        // Predicated region
        $region81: #{tpu_custom_call.1} parent=71 // pred_check
          %p554 = pneg %p134
        $region82: #{tpu_custom_call.1} parent=71 // pred_check_branch
          %556 = sbr.rel (%p554) target = $region84
        $region83: #{tpu_custom_call.1} parent=71 // pred_region
          %s557 = smul.u32 16, %s37
          %p558 = scmp.lt.s32.totalorder %s557, 47
          %s559 = scalar_select %p558, %s557, 47
          %s560 = smul.addr %s559, 8
          %s561 = scalar_lea.vmem %s3, %s560
          %s562 = smul.u32 16, %s37
        $region84: #{tpu_custom_call.1} parent=71 // pred_fallthru
          _
      $region72: #{tpu_custom_call.1} parent=5 // pred_fallthru
        _
      %p563 = scmp.le.s32.totalorder 1, %s29
      %p564 = scmp.lt.s32.totalorder %s29, 7
      %p565 = pnand %p563, %p564
      %p566 = pneg %p565
      // Predicated region
      $region85: #{tpu_custom_call.1} parent=5 // pred_check
        _
      $region86: #{tpu_custom_call.1} parent=5 // pred_check_branch
        %568 = sbr.rel (%p565) target = $region88
      $region87: #{tpu_custom_call.1} parent=5 // pred_region
        %s569 = ssub.s32 %s29, 1
        %s570 = sand.u32 %s54, 1
        %s571 = scalar_lea.sflag [#allocation9], %s570
        %s572 = sand.u32 %s54, 1
        %s573 = smul.addr %s572, 192
        %s574 = scalar_lea.vmem [#allocation8], %s573
        // Predicated region
        $region89: #{tpu_custom_call.1} parent=87 // pred_check
          %p575 = pneg %p67
        $region90: #{tpu_custom_call.1} parent=87 // pred_check_branch
          %577 = sbr.rel (%p575) target = $region92
        $region91: #{tpu_custom_call.1} parent=87 // pred_region
          %578 = dma.done %s571, 3072
        $region92: #{tpu_custom_call.1} parent=87 // pred_fallthru
          _
        // Predicated region
        $region93: #{tpu_custom_call.1} parent=87 // pred_check
          %p579 = pneg %p203
        $region94: #{tpu_custom_call.1} parent=87 // pred_check_branch
          %581 = sbr.rel (%p579) target = $region96
        $region95: #{tpu_custom_call.1} parent=87 // pred_region
          %582 = dma.done [#allocation12], 1024
        $region96: #{tpu_custom_call.1} parent=87 // pred_fallthru
          _
        // Predicated region
        $region97: #{tpu_custom_call.1} parent=87 // pred_check
          %p583 = pneg %p287
        $region98: #{tpu_custom_call.1} parent=87 // pred_check_branch
          %585 = sbr.rel (%p583) target = $region100
        $region99: #{tpu_custom_call.1} parent=87 // pred_region
          %586 = dma.done [#allocation12], 1024
        $region100: #{tpu_custom_call.1} parent=87 // pred_fallthru
          _
        // Predicated region
        $region101: #{tpu_custom_call.1} parent=87 // pred_check
          %p587 = pneg %p308
        $region102: #{tpu_custom_call.1} parent=87 // pred_check_branch
          %589 = sbr.rel (%p587) target = $region104
        $region103: #{tpu_custom_call.1} parent=87 // pred_region
          %590 = dma.done [#allocation15], 1024
        $region104: #{tpu_custom_call.1} parent=87 // pred_fallthru
          _
        %s591 = sand.u32 %s54, 1
        %s592 = scalar_lea.sflag [#allocation9], %s591
        %s593 = sand.u32 %s54, 1
        %s594 = smul.addr %s593, 192
        %s595 = scalar_lea.vmem [#allocation8], %s594
        %p596 = pneg %p67
        %p597 = pneg %p64
        %p598 = pneg %p88
        %p599 = pneg %p85
        %p600 = scmp.lt.s32.totalorder %s39, 2
        %s601 = scalar_select %p600, %s39, 2
        %s602 = smul.addr %s601, 4
        %s603 = scalar_lea.vmem %s2, %s602
        %p604 = pneg %p114
        %p605 = pneg %p111
        %s606 = smul.u32 16, %s39
        %p607 = scmp.lt.s32.totalorder %s606, 47
        %s608 = scalar_select %p607, %s606, 47
        %s609 = smul.addr %s608, 8
        %s610 = scalar_lea.vmem %s3, %s609
        %p611 = pneg %p140
        %p612 = pneg %p137
        %p613 = pneg %p161
        %p614 = pneg %p158
        %p615 = pneg %p182
        %p616 = pneg %p179
        %p617 = pneg %p203
        %p618 = pneg %p200
        %p619 = pneg %p224
        %p620 = pneg %p221
        %p621 = pneg %p245
        %p622 = pneg %p242
        %p623 = pneg %p266
        %p624 = pneg %p263
        %p625 = pneg %p287
        %p626 = pneg %p284
        %p627 = pneg %p308
        %p628 = pneg %p305
        %p629 = pneg %p329
        %p630 = pneg %p326
        %p631 = pneg %p350
        %p632 = pneg %p347
        %p633 = pneg %p371
        %p634 = pneg %p368
        %p635 = pneg %p392
        %p636 = pneg %p389
        %p637 = pneg %p413
        %p638 = pneg %p410
        %p639 = pneg %p434
        %p640 = pneg %p431
        %s641 = smul.u32 16, %s39
        %p642 = scmp.lt.s32.totalorder %s39, 2
        %s643 = scalar_select %p642, %s39, 2
        %s644 = smul.addr %s643, 4
        %s645 = scalar_lea.vmem %s2, %s644
        %s646 = smul.u32 16, %s39
        %p647 = scmp.lt.s32.totalorder %s646, 47
        %s648 = scalar_select %p647, %s646, 47
        %s649 = smul.addr %s648, 8
        %s650 = scalar_lea.vmem %s3, %s649
        %s651 = smul.u32 16, %s39
        %s653 = smul.u32 %s39, 128
        %v654 = vlaneseq
        %v655 = vshrl.u32 %v654, 7
        %v656 = vadd.s32 %v655, 8
        %v657 = vadd.s32 %v655, 16
        %v658 = vadd.s32 %v655, 24
        %v659 = vadd.s32 %v655, 32
        %v660 = vadd.s32 %v655, 40
        %v661 = vadd.s32 %v655, 48
        %v662 = vadd.s32 %v655, 56
        %v663 = vadd.s32 %v655, 64
        %v664 = vadd.s32 %v655, 72
        %v665 = vadd.s32 %v655, 80
        %v666 = vadd.s32 %v655, 88
        %v667 = vadd.s32 %v655, 96
        %v668 = vadd.s32 %v655, 104
        %v669 = vadd.s32 %v655, 112
        %v670 = vadd.s32 %v655, 120
        %v671 = vstv %s653
        %v672 = vadd.s32 %v655, %v671
        %v673 = vadd.s32 %v656, %v671
        %v674 = vadd.s32 %v657, %v671
        %v675 = vadd.s32 %v658, %v671
        %v676 = vadd.s32 %v659, %v671
        %v677 = vadd.s32 %v660, %v671
        %v678 = vadd.s32 %v661, %v671
        %v679 = vadd.s32 %v662, %v671
        %v680 = vadd.s32 %v663, %v671
        %v681 = vadd.s32 %v664, %v671
        %v682 = vadd.s32 %v665, %v671
        %v683 = vadd.s32 %v666, %v671
        %v684 = vadd.s32 %v667, %v671
        %v685 = vadd.s32 %v668, %v671
        %v686 = vadd.s32 %v669, %v671
        %v687 = vadd.s32 %v670, %v671
        %vm688 = vcmp.lt.s32.totalorder %v672, 320
        %vm689 = vcmp.lt.s32.totalorder %v673, 320
        %vm690 = vcmp.lt.s32.totalorder %v674, 320
        %vm691 = vcmp.lt.s32.totalorder %v675, 320
        %vm692 = vcmp.lt.s32.totalorder %v676, 320
        %vm693 = vcmp.lt.s32.totalorder %v677, 320
        %vm694 = vcmp.lt.s32.totalorder %v678, 320
        %vm695 = vcmp.lt.s32.totalorder %v679, 320
        %vm696 = vcmp.lt.s32.totalorder %v680, 320
        %vm697 = vcmp.lt.s32.totalorder %v681, 320
        %vm698 = vcmp.lt.s32.totalorder %v682, 320
        %vm699 = vcmp.lt.s32.totalorder %v683, 320
        %vm700 = vcmp.lt.s32.totalorder %v684, 320
        %vm701 = vcmp.lt.s32.totalorder %v685, 320
        %vm702 = vcmp.lt.s32.totalorder %v686, 320
        %vm703 = vcmp.lt.s32.totalorder %v687, 320
        %v704 = vsel %vm688, 1, 0
        %v705 = vsel %vm689, 1, 0
        %v706 = vsel %vm690, 1, 0
        %v707 = vsel %vm691, 1, 0
        %v708 = vsel %vm692, 1, 0
        %v709 = vsel %vm693, 1, 0
        %v710 = vsel %vm694, 1, 0
        %v711 = vsel %vm695, 1, 0
        %v712 = vsel %vm696, 1, 0
        %v713 = vsel %vm697, 1, 0
        %v714 = vsel %vm698, 1, 0
        %v715 = vsel %vm699, 1, 0
        %v716 = vsel %vm700, 1, 0
        %v717 = vsel %vm701, 1, 0
        %v718 = vsel %vm702, 1, 0
        %v719 = vsel %vm703, 1, 0
        %v720 = vcvt.s32.f32 %v704
        %v721 = vcvt.s32.f32 %v705
        %v722 = vcvt.s32.f32 %v706
        %v723 = vcvt.s32.f32 %v707
        %v724 = vcvt.s32.f32 %v708
        %v725 = vcvt.s32.f32 %v709
        %v726 = vcvt.s32.f32 %v710
        %v727 = vcvt.s32.f32 %v711
        %v728 = vcvt.s32.f32 %v712
        %v729 = vcvt.s32.f32 %v713
        %v730 = vcvt.s32.f32 %v714
        %v731 = vcvt.s32.f32 %v715
        %v732 = vcvt.s32.f32 %v716
        %v733 = vcvt.s32.f32 %v717
        %v734 = vcvt.s32.f32 %v718
        %v735 = vcvt.s32.f32 %v719
        %v736 = vld [vmem:[%s574] sm:$0xff]
        %v737 = vld [vmem:[%s574 + $0x8] sm:$0xf]
        %v738 = vld [vmem:[%s574 + $0xc] sm:$0xff]
        %v739 = vld [vmem:[%s574 + $0x14] sm:$0xf]
        %v740 = vld [vmem:[%s574 + $0x18] sm:$0xff]
        %v741 = vld [vmem:[%s574 + $0x20] sm:$0xf]
        %v742 = vld [vmem:[%s574 + $0x24] sm:$0xff]
        %v743 = vld [vmem:[%s574 + $0x2c] sm:$0xf]
        %v744 = vld [vmem:[%s574 + $0x30] sm:$0xff]
        %v745 = vld [vmem:[%s574 + $0x38] sm:$0xf]
        %v746 = vld [vmem:[%s574 + $0x3c] sm:$0xff]
        %v747 = vld [vmem:[%s574 + $0x44] sm:$0xf]
        %v748 = vld [vmem:[%s574 + $0x48] sm:$0xff]
        %v749 = vld [vmem:[%s574 + $0x50] sm:$0xf]
        %v750 = vld [vmem:[%s574 + $0x54] sm:$0xff]
        %v751 = vld [vmem:[%s574 + $0x5c] sm:$0xf]
        %v752 = vld [vmem:[%s574 + $0x60] sm:$0xff]
        %v753 = vld [vmem:[%s574 + $0x68] sm:$0xf]
        %v754 = vld [vmem:[%s574 + $0x6c] sm:$0xff]
        %v755 = vld [vmem:[%s574 + $0x74] sm:$0xf]
        %v756 = vld [vmem:[%s574 + $0x78] sm:$0xff]
        %v757 = vld [vmem:[%s574 + $0x80] sm:$0xf]
        %v758 = vld [vmem:[%s574 + $0x84] sm:$0xff]
        %v759 = vld [vmem:[%s574 + $0x8c] sm:$0xf]
        %v760 = vld [vmem:[%s574 + $0x90] sm:$0xff]
        %v761 = vld [vmem:[%s574 + $0x98] sm:$0xf]
        %v762 = vld [vmem:[%s574 + $0x9c] sm:$0xff]
        %v763 = vld [vmem:[%s574 + $0xa4] sm:$0xf]
        %v764 = vld [vmem:[%s574 + $0xa8] sm:$0xff]
        %v765 = vld [vmem:[%s574 + $0xb0] sm:$0xf]
        %v766 = vld [vmem:[%s574 + $0xb4] sm:$0xff]
        %v767 = vld [vmem:[%s574 + $0xbc] sm:$0xf]
        %v768 = vld [vmem:[%s650] sm:$0xff]
        %v769 = vld [vmem:[%s650 + $0x8] sm:$0xff]
        %v770 = vld [vmem:[%s650 + $0x10] sm:$0xff]
        %v771 = vld [vmem:[%s650 + $0x18] sm:$0xff]
        %v772 = vld [vmem:[%s650 + $0x20] sm:$0xff]
        %v773 = vld [vmem:[%s650 + $0x28] sm:$0xff]
        %v774 = vld [vmem:[%s650 + $0x30] sm:$0xff]
        %v775 = vld [vmem:[%s650 + $0x38] sm:$0xff]
        %v776 = vld [vmem:[%s650 + $0x40] sm:$0xff]
        %v777 = vld [vmem:[%s650 + $0x48] sm:$0xff]
        %v778 = vld [vmem:[%s650 + $0x50] sm:$0xff]
        %v779 = vld [vmem:[%s650 + $0x58] sm:$0xff]
        %v780 = vld [vmem:[%s650 + $0x60] sm:$0xff]
        %v781 = vld [vmem:[%s650 + $0x68] sm:$0xff]
        %v782 = vld [vmem:[%s650 + $0x70] sm:$0xff]
        %v783 = vld [vmem:[%s650 + $0x78] sm:$0xff]
        %p784 = scmp.eq.s32.totalorder %s38, 0
        %p785 = scmp.eq.s32.totalorder %s39, 0
        %p786 = pnand %p784, %p785
        %p787 = pneg %p786
        // Predicated region
        $region105: #{tpu_custom_call.1} parent=87 // pred_check
          _
        $region106: #{tpu_custom_call.1} parent=87 // pred_check_branch
          %789 = sbr.rel (%p786) target = $region108
        $region107: #{tpu_custom_call.1} parent=87 // pred_region
          %790 = vst [vmem:[#allocation3] sm:$0x1] 0.0
          %791 = vst [vmem:[#allocation4] sm:$0x1] 0.0
        $region108: #{tpu_custom_call.1} parent=87 // pred_fallthru
          _
        // Predicated region
        $region109: #{tpu_custom_call.1} parent=87 // pred_check
          %p792 = pneg %p784
        $region110: #{tpu_custom_call.1} parent=87 // pred_check_branch
          %794 = sbr.rel (%p792) target = $region112
        $region111: #{tpu_custom_call.1} parent=87 // pred_region
          %v795 = vld [vmem:[%s1] sm:$0xf]
          %v796 = vld [vmem:[%s1 + $0x4] sm:$0xf]
          %v797 = vld [vmem:[%s1 + $0x8] sm:$0xf]
          %v798 = vld [vmem:[%s1 + $0xc] sm:$0xf]
          %v799 = vld [vmem:[%s1 + $0x10] sm:$0xf]
          %v800 = vld [vmem:[%s1 + $0x14] sm:$0xf]
          %v801 = vld [vmem:[%s1 + $0x18] sm:$0xf]
          %v802 = vld [vmem:[%s1 + $0x1c] sm:$0xf]
          %v803 = vld [vmem:[%s1 + $0x20] sm:$0xf]
          %v804 = vld [vmem:[%s1 + $0x24] sm:$0xf]
          %v805 = vld [vmem:[%s1 + $0x28] sm:$0xf]
          %v806 = vld [vmem:[%s1 + $0x2c] sm:$0xf]
          %v807 = vld [vmem:[%s1 + $0x30] sm:$0xf]
          %v808 = vld [vmem:[%s1 + $0x34] sm:$0xf]
          %v809 = vld [vmem:[%s1 + $0x38] sm:$0xf]
          %v810 = vld [vmem:[%s1 + $0x3c] sm:$0xf]
          %v811 = vld [vmem:[%s1 + $0x40] sm:$0xf]
          %v812 = vld [vmem:[%s1 + $0x44] sm:$0xf]
          %v813 = vld [vmem:[%s1 + $0x48] sm:$0xf]
          %v814 = vld [vmem:[%s1 + $0x4c] sm:$0xf]
          %v815 = vld [vmem:[%s1 + $0x50] sm:$0xf]
          %v816 = vld [vmem:[%s1 + $0x54] sm:$0xf]
          %v817 = vld [vmem:[%s1 + $0x58] sm:$0xf]
          %v818 = vld [vmem:[%s1 + $0x5c] sm:$0xf]
          %v819 = vld [vmem:[%s1 + $0x60] sm:$0xf]
          %v820 = vld [vmem:[%s1 + $0x64] sm:$0xf]
          %v821 = vld [vmem:[%s1 + $0x68] sm:$0xf]
          %v822 = vld [vmem:[%s1 + $0x6c] sm:$0xf]
          %v823 = vld [vmem:[%s1 + $0x70] sm:$0xf]
          %v824 = vld [vmem:[%s1 + $0x74] sm:$0xf]
          %v825 = vld [vmem:[%s1 + $0x78] sm:$0xf]
          %v826 = vld [vmem:[%s1 + $0x7c] sm:$0xf]
          %v827 = vld [vmem:[%s1 + $0x80] sm:$0xf]
          %v828 = vld [vmem:[%s1 + $0x84] sm:$0xf]
          %v829 = vld [vmem:[%s1 + $0x88] sm:$0xf]
          %v830 = vld [vmem:[%s1 + $0x8c] sm:$0xf]
          %v831 = vld [vmem:[%s1 + $0x90] sm:$0xf]
          %v832 = vld [vmem:[%s1 + $0x94] sm:$0xf]
          %v833 = vld [vmem:[%s1 + $0x98] sm:$0xf]
          %v834 = vld [vmem:[%s1 + $0x9c] sm:$0xf]
          %v835 = vld [vmem:[%s1 + $0xa0] sm:$0xf]
          %v836 = vld [vmem:[%s1 + $0xa4] sm:$0xf]
          %v837 = vld [vmem:[%s1 + $0xa8] sm:$0xf]
          %v838 = vld [vmem:[%s1 + $0xac] sm:$0xf]
          %v839 = vld [vmem:[%s1 + $0xb0] sm:$0xf]
          %v840 = vld [vmem:[%s1 + $0xb4] sm:$0xf]
          %v841 = vld [vmem:[%s1 + $0xb8] sm:$0xf]
          %v842 = vld [vmem:[%s1 + $0xbc] sm:$0xf]
          %v875 = vunpack.c.l.b16 %v736
          %v876 = vunpack.c.h.b16 %v736
          %v877 = vunpack.c.l.b16 %v737
          %v878 = vunpack.c.l.b16 %v738
          %v879 = vunpack.c.h.b16 %v738
          %v880 = vunpack.c.l.b16 %v739
          %v881 = vunpack.c.l.b16 %v740
          %v882 = vunpack.c.h.b16 %v740
          %v883 = vunpack.c.l.b16 %v741
          %v884 = vunpack.c.l.b16 %v742
          %v885 = vunpack.c.h.b16 %v742
          %v886 = vunpack.c.l.b16 %v743
          %v887 = vunpack.c.l.b16 %v744
          %v888 = vunpack.c.h.b16 %v744
          %v889 = vunpack.c.l.b16 %v745
          %v890 = vunpack.c.l.b16 %v746
          %v891 = vunpack.c.h.b16 %v746
          %v892 = vunpack.c.l.b16 %v747
          %v893 = vunpack.c.l.b16 %v748
          %v894 = vunpack.c.h.b16 %v748
          %v895 = vunpack.c.l.b16 %v749
          %v896 = vunpack.c.l.b16 %v750
          %v897 = vunpack.c.h.b16 %v750
          %v898 = vunpack.c.l.b16 %v751
          %v899 = vunpack.c.l.b16 %v752
          %v900 = vunpack.c.h.b16 %v752
          %v901 = vunpack.c.l.b16 %v753
          %v902 = vunpack.c.l.b16 %v754
          %v903 = vunpack.c.h.b16 %v754
          %v904 = vunpack.c.l.b16 %v755
          %v905 = vunpack.c.l.b16 %v756
          %v906 = vunpack.c.h.b16 %v756
          %v907 = vunpack.c.l.b16 %v757
          %v908 = vunpack.c.l.b16 %v758
          %v909 = vunpack.c.h.b16 %v758
          %v910 = vunpack.c.l.b16 %v759
          %v911 = vunpack.c.l.b16 %v760
          %v912 = vunpack.c.h.b16 %v760
          %v913 = vunpack.c.l.b16 %v761
          %v914 = vunpack.c.l.b16 %v762
          %v915 = vunpack.c.h.b16 %v762
          %v916 = vunpack.c.l.b16 %v763
          %v917 = vunpack.c.l.b16 %v764
          %v918 = vunpack.c.h.b16 %v764
          %v919 = vunpack.c.l.b16 %v765
          %v920 = vunpack.c.l.b16 %v766
          %v921 = vunpack.c.h.b16 %v766
          %v922 = vunpack.c.l.b16 %v767
          %v923 = vpack.c.b16 %v878, %v875
          %v924 = vpack.c.b16 %v879, %v876
          %v925 = vpack.c.b16 %v880, %v877
          %v926 = vpack.c.b16 %v884, %v881
          %v927 = vpack.c.b16 %v885, %v882
          %v928 = vpack.c.b16 %v886, %v883
          %v929 = vpack.c.b16 %v890, %v887
          %v930 = vpack.c.b16 %v891, %v888
          %v931 = vpack.c.b16 %v892, %v889
          %v932 = vpack.c.b16 %v896, %v893
          %v933 = vpack.c.b16 %v897, %v894
          %v934 = vpack.c.b16 %v898, %v895
          %v935 = vpack.c.b16 %v902, %v899
          %v936 = vpack.c.b16 %v903, %v900
          %v937 = vpack.c.b16 %v904, %v901
          %v938 = vpack.c.b16 %v908, %v905
          %v939 = vpack.c.b16 %v909, %v906
          %v940 = vpack.c.b16 %v910, %v907
          %v941 = vpack.c.b16 %v914, %v911
          %v942 = vpack.c.b16 %v915, %v912
          %v943 = vpack.c.b16 %v916, %v913
          %v944 = vpack.c.b16 %v920, %v917
          %v945 = vpack.c.b16 %v921, %v918
          %v946 = vpack.c.b16 %v922, %v919
          %v1019 = vunpack.c.l.b16 %v795
          %v1020 = vunpack.c.l.b16 %v796
          %v1021 = vunpack.c.l.b16 %v797
          %v1022 = vunpack.c.l.b16 %v798
          %v1023 = vunpack.c.l.b16 %v799
          %v1024 = vunpack.c.l.b16 %v800
          %v1025 = vunpack.c.l.b16 %v801
          %v1026 = vunpack.c.l.b16 %v802
          %v1027 = vunpack.c.l.b16 %v803
          %v1028 = vunpack.c.l.b16 %v804
          %v1029 = vunpack.c.l.b16 %v805
          %v1030 = vunpack.c.l.b16 %v806
          %v1031 = vunpack.c.l.b16 %v807
          %v1032 = vunpack.c.l.b16 %v808
          %v1033 = vunpack.c.l.b16 %v809
          %v1034 = vunpack.c.l.b16 %v810
          %v1035 = vunpack.c.l.b16 %v811
          %v1036 = vunpack.c.l.b16 %v812
          %v1037 = vunpack.c.l.b16 %v813
          %v1038 = vunpack.c.l.b16 %v814
          %v1039 = vunpack.c.l.b16 %v815
          %v1040 = vunpack.c.l.b16 %v816
          %v1041 = vunpack.c.l.b16 %v817
          %v1042 = vunpack.c.l.b16 %v818
          %v1043 = vunpack.c.l.b16 %v819
          %v1044 = vunpack.c.l.b16 %v820
          %v1045 = vunpack.c.l.b16 %v821
          %v1046 = vunpack.c.l.b16 %v822
          %v1047 = vunpack.c.l.b16 %v823
          %v1048 = vunpack.c.l.b16 %v824
          %v1049 = vunpack.c.l.b16 %v825
          %v1050 = vunpack.c.l.b16 %v826
          %v1051 = vunpack.c.l.b16 %v827
          %v1052 = vunpack.c.l.b16 %v828
          %v1053 = vunpack.c.l.b16 %v829
          %v1054 = vunpack.c.l.b16 %v830
          %v1055 = vunpack.c.l.b16 %v831
          %v1056 = vunpack.c.l.b16 %v832
          %v1057 = vunpack.c.l.b16 %v833
          %v1058 = vunpack.c.l.b16 %v834
          %v1059 = vunpack.c.l.b16 %v835
          %v1060 = vunpack.c.l.b16 %v836
          %v1061 = vunpack.c.l.b16 %v837
          %v1062 = vunpack.c.l.b16 %v838
          %v1063 = vunpack.c.l.b16 %v839
          %v1064 = vunpack.c.l.b16 %v840
          %v1065 = vunpack.c.l.b16 %v841
          %v1066 = vunpack.c.l.b16 %v842
          %v1067 = vpack.c.b16 %v1020, %v1019
          %v1068 = vpack.c.b16 %v1022, %v1021
          %v1069 = vpack.c.b16 %v1024, %v1023
          %v1070 = vpack.c.b16 %v1026, %v1025
          %v1071 = vpack.c.b16 %v1028, %v1027
          %v1072 = vpack.c.b16 %v1030, %v1029
          %v1073 = vpack.c.b16 %v1032, %v1031
          %v1074 = vpack.c.b16 %v1034, %v1033
          %v1075 = vpack.c.b16 %v1036, %v1035
          %v1076 = vpack.c.b16 %v1038, %v1037
          %v1077 = vpack.c.b16 %v1040, %v1039
          %v1078 = vpack.c.b16 %v1042, %v1041
          %v1079 = vpack.c.b16 %v1044, %v1043
          %v1080 = vpack.c.b16 %v1046, %v1045
          %v1081 = vpack.c.b16 %v1048, %v1047
          %v1082 = vpack.c.b16 %v1050, %v1049
          %v1083 = vpack.c.b16 %v1052, %v1051
          %v1084 = vpack.c.b16 %v1054, %v1053
          %v1085 = vpack.c.b16 %v1056, %v1055
          %v1086 = vpack.c.b16 %v1058, %v1057
          %v1087 = vpack.c.b16 %v1060, %v1059
          %v1088 = vpack.c.b16 %v1062, %v1061
          %v1089 = vpack.c.b16 %v1064, %v1063
          %v1090 = vpack.c.b16 %v1066, %v1065
          %1115 = vmatprep.subr.bf16.mxu0 0
          %1116 = vmatpush1.bf16.msra.mxu0 %v1067
          %1117 = vmatprep.subr.bf16.mxu0 0
          %1118 = vmatpush1.bf16.msra.mxu0 %v1068
          %1119 = vmatprep.subr.bf16.mxu0 0
          %1120 = vmatpush1.bf16.msra.mxu0 %v1069
          %1121 = vmatprep.subr.bf16.mxu0 0
          %1122 = vmatpush1.bf16.msra.mxu0 %v1070
          %1123 = vmatprep.subr.bf16.mxu0 0
          %1124 = vmatpush1.bf16.msra.mxu0 %v1071
          %1125 = vmatprep.subr.bf16.mxu0 0
          %1126 = vmatpush1.bf16.msra.mxu0 %v1072
          %1127 = vmatprep.subr.bf16.mxu0 0
          %1128 = vmatpush1.bf16.msra.mxu0 %v1073
          %1129 = vmatprep.subr.bf16.mxu0 0
          %1130 = vmatpush1.bf16.msra.mxu0 %v1074
          %1131 = vmatprep.subr.bf16.mxu0 0
          %1132 = vmatpush1.bf16.msra.mxu0 %v1075
          %1133 = vmatprep.subr.bf16.mxu0 0
          %1134 = vmatpush1.bf16.msra.mxu0 %v1076
          %1135 = vmatprep.subr.bf16.mxu0 0
          %1136 = vmatpush1.bf16.msra.mxu0 %v1077
          %1137 = vmatprep.subr.bf16.mxu0 0
          %1138 = vmatpush1.bf16.msra.mxu0 %v1078
          %1139 = vmatprep.subr.bf16.mxu0 0
          %1140 = vmatpush1.bf16.msra.mxu0 %v1079
          %1141 = vmatprep.subr.bf16.mxu0 0
          %1142 = vmatpush1.bf16.msra.mxu0 %v1080
          %1143 = vmatprep.subr.bf16.mxu0 0
          %1144 = vmatpush1.bf16.msra.mxu0 %v1081
          %1145 = vmatprep.subr.bf16.mxu0 0
          %1146 = vmatpush1.bf16.msra.mxu0 %v1082
          %1147 = vmatprep.mubr.bf16.mxu0 %v924
          %1148 = vmatmul.mubr.bf16.gmra.mrb[0].mxu0 %v923
          %v1149 = vpop.f32.mrb[0].mxu0
          %v1150 = vadd.f32 0.0, %v1149
          %v1151 = vpop.f32.mrb[0].mxu0
          %v1152 = vpop.f32.mrb[0].mxu0
          %v1153 = vadd.f32 0.0, %v1152
          %v1154 = vpop.f32.mrb[0].mxu0
          %1155 = vmatprep.mubr.bf16.mxu0 %v927
          %1156 = vmatmul.mubr.bf16.gmra.mrb[0].mxu0 %v926
          %v1157 = vpop.f32.mrb[0].mxu0
          %v1158 = vadd.f32 0.0, %v1157
          %v1159 = vpop.f32.mrb[0].mxu0
          %v1160 = vpop.f32.mrb[0].mxu0
          %v1161 = vadd.f32 0.0, %v1160
          %v1162 = vpop.f32.mrb[0].mxu0
          %1163 = vmatprep.mubr.bf16.mxu0 %v930
          %1164 = vmatmul.mubr.bf16.gmra.mrb[0].mxu0 %v929
          %v1165 = vpop.f32.mrb[0].mxu0
          %v1166 = vadd.f32 0.0, %v1165
          %v1167 = vpop.f32.mrb[0].mxu0
          %v1168 = vpop.f32.mrb[0].mxu0
          %v1169 = vadd.f32 0.0, %v1168
          %v1170 = vpop.f32.mrb[0].mxu0
          %1171 = vmatprep.mubr.bf16.mxu0 %v933
          %1172 = vmatmul.mubr.bf16.gmra.mrb[0].mxu0 %v932
          %v1173 = vpop.f32.mrb[0].mxu0
          %v1174 = vadd.f32 0.0, %v1173
          %v1175 = vpop.f32.mrb[0].mxu0
          %v1176 = vpop.f32.mrb[0].mxu0
          %v1177 = vadd.f32 0.0, %v1176
          %v1178 = vpop.f32.mrb[0].mxu0
          %1179 = vmatprep.mubr.bf16.mxu0 %v936
          %1180 = vmatmul.mubr.bf16.gmra.mrb[0].mxu0 %v935
          %v1181 = vpop.f32.mrb[0].mxu0
          %v1182 = vadd.f32 0.0, %v1181
          %v1183 = vpop.f32.mrb[0].mxu0
          %v1184 = vpop.f32.mrb[0].mxu0
          %v1185 = vadd.f32 0.0, %v1184
          %v1186 = vpop.f32.mrb[0].mxu0
          %1187 = vmatprep.mubr.bf16.mxu0 %v939
          %1188 = vmatmul.mubr.bf16.gmra.mrb[0].mxu0 %v938
          %v1189 = vpop.f32.mrb[0].mxu0
          %v1190 = vadd.f32 0.0, %v1189
          %v1191 = vpop.f32.mrb[0].mxu0
          %v1192 = vpop.f32.mrb[0].mxu0
          %v1193 = vadd.f32 0.0, %v1192
          %v1194 = vpop.f32.mrb[0].mxu0
          %1195 = vmatprep.mubr.bf16.mxu0 %v942
          %1196 = vmatmul.mubr.bf16.gmra.mrb[0].mxu0 %v941
          %v1197 = vpop.f32.mrb[0].mxu0
          %v1198 = vadd.f32 0.0, %v1197
          %v1199 = vpop.f32.mrb[0].mxu0
          %v1200 = vpop.f32.mrb[0].mxu0
          %v1201 = vadd.f32 0.0, %v1200
          %v1202 = vpop.f32.mrb[0].mxu0
          %1203 = vmatprep.mubr.bf16.mxu0 %v945
          %1204 = vmatmul.mubr.bf16.gmra.mrb[0].mxu0 %v944
          %v1205 = vpop.f32.mrb[0].mxu0
          %v1206 = vadd.f32 0.0, %v1205
          %v1207 = vpop.f32.mrb[0].mxu0
          %v1208 = vpop.f32.mrb[0].mxu0
          %v1209 = vadd.f32 0.0, %v1208
          %v1210 = vpop.f32.mrb[0].mxu0
          %1211 = vdwg.mxu0
          %1212 = vmatprep.subr.bf16.mxu0 0
          %1213 = vmatpush1.bf16.msra.mxu0 %v1083
          %1214 = vmatprep.subr.bf16.mxu0 0
          %1215 = vmatpush1.bf16.msra.mxu0 %v1084
          %1216 = vmatprep.subr.bf16.mxu0 0
          %1217 = vmatpush1.bf16.msra.mxu0 %v1085
          %1218 = vmatprep.subr.bf16.mxu0 0
          %1219 = vmatpush1.bf16.msra.mxu0 %v1086
          %1220 = vmatprep.subr.bf16.mxu0 0
          %1221 = vmatpush1.bf16.msra.mxu0 %v1087
          %1222 = vmatprep.subr.bf16.mxu0 0
          %1223 = vmatpush1.bf16.msra.mxu0 %v1088
          %1224 = vmatprep.subr.bf16.mxu0 0
          %1225 = vmatpush1.bf16.msra.mxu0 %v1089
          %1226 = vmatprep.subr.bf16.mxu0 0
          %1227 = vmatpush1.bf16.msra.mxu0 %v1090
          %1228 = vmatprep.subr.bf16.mxu0 0
          %1229 = vmatpush1.bf16.msra.mxu0 0
          %1230 = vmatprep.subr.bf16.mxu0 0
          %1231 = vmatpush1.bf16.msra.mxu0 0
          %1232 = vmatprep.subr.bf16.mxu0 0
          %1233 = vmatpush1.bf16.msra.mxu0 0
          %1234 = vmatprep.subr.bf16.mxu0 0
          %1235 = vmatpush1.bf16.msra.mxu0 0
          %1236 = vmatprep.subr.bf16.mxu0 0
          %1237 = vmatpush1.bf16.msra.mxu0 0
          %1238 = vmatprep.subr.bf16.mxu0 0
          %1239 = vmatpush1.bf16.msra.mxu0 0
          %1240 = vmatprep.subr.bf16.mxu0 0
          %1241 = vmatpush1.bf16.msra.mxu0 0
          %1242 = vmatprep.subr.bf16.mxu0 0
          %1243 = vmatpush1.bf16.msra.mxu0 0
          %1244 = vmatprep.mubr.bf16.mxu0 0
          %1245 = vmatmul.mubr.bf16.gmra.mrb[0].mxu0 %v925
          %v1246 = vpop.f32.mrb[0].mxu0
          %v1247 = vadd.f32 %v1150, %v1246
          %v1248 = vpop.f32.mrb[0].mxu0
          %v1249 = vpop.f32.mrb[0].mxu0
          %v1250 = vadd.f32 %v1153, %v1249
          %v1251 = vpop.f32.mrb[0].mxu0
          %1252 = vmatprep.mubr.bf16.mxu0 0
          %1253 = vmatmul.mubr.bf16.gmra.mrb[0].mxu0 %v928
          %v1254 = vpop.f32.mrb[0].mxu0
          %v1255 = vadd.f32 %v1158, %v1254
          %v1256 = vpop.f32.mrb[0].mxu0
          %v1257 = vpop.f32.mrb[0].mxu0
          %v1258 = vadd.f32 %v1161, %v1257
          %v1259 = vpop.f32.mrb[0].mxu0
          %1260 = vmatprep.mubr.bf16.mxu0 0
          %1261 = vmatmul.mubr.bf16.gmra.mrb[0].mxu0 %v931
          %v1262 = vpop.f32.mrb[0].mxu0
          %v1263 = vadd.f32 %v1166, %v1262
          %v1264 = vpop.f32.mrb[0].mxu0
          %v1265 = vpop.f32.mrb[0].mxu0
          %v1266 = vadd.f32 %v1169, %v1265
          %v1267 = vpop.f32.mrb[0].mxu0
          %1268 = vmatprep.mubr.bf16.mxu0 0
          %1269 = vmatmul.mubr.bf16.gmra.mrb[0].mxu0 %v934
          %v1270 = vpop.f32.mrb[0].mxu0
          %v1271 = vadd.f32 %v1174, %v1270
          %v1272 = vpop.f32.mrb[0].mxu0
          %v1273 = vpop.f32.mrb[0].mxu0
          %v1274 = vadd.f32 %v1177, %v1273
          %v1275 = vpop.f32.mrb[0].mxu0
          %1276 = vmatprep.mubr.bf16.mxu0 0
          %1277 = vmatmul.mubr.bf16.gmra.mrb[0].mxu0 %v937
          %v1278 = vpop.f32.mrb[0].mxu0
          %v1279 = vadd.f32 %v1182, %v1278
          %v1280 = vpop.f32.mrb[0].mxu0
          %v1281 = vpop.f32.mrb[0].mxu0
          %v1282 = vadd.f32 %v1185, %v1281
          %v1283 = vpop.f32.mrb[0].mxu0
          %1284 = vmatprep.mubr.bf16.mxu0 0
          %1285 = vmatmul.mubr.bf16.gmra.mrb[0].mxu0 %v940
          %v1286 = vpop.f32.mrb[0].mxu0
          %v1287 = vadd.f32 %v1190, %v1286
          %v1288 = vpop.f32.mrb[0].mxu0
          %v1289 = vpop.f32.mrb[0].mxu0
          %v1290 = vadd.f32 %v1193, %v1289
          %v1291 = vpop.f32.mrb[0].mxu0
          %1292 = vmatprep.mubr.bf16.mxu0 0
          %1293 = vmatmul.mubr.bf16.gmra.mrb[0].mxu0 %v943
          %v1294 = vpop.f32.mrb[0].mxu0
          %v1295 = vadd.f32 %v1198, %v1294
          %v1296 = vpop.f32.mrb[0].mxu0
          %v1297 = vpop.f32.mrb[0].mxu0
          %v1298 = vadd.f32 %v1201, %v1297
          %v1299 = vpop.f32.mrb[0].mxu0
          %1300 = vmatprep.mubr.bf16.mxu0 0
          %1301 = vmatmul.mubr.bf16.gmra.mrb[0].mxu0 %v946
          %v1302 = vpop.f32.mrb[0].mxu0
          %v1303 = vadd.f32 %v1206, %v1302
          %v1304 = vpop.f32.mrb[0].mxu0
          %v1305 = vpop.f32.mrb[0].mxu0
          %v1306 = vadd.f32 %v1209, %v1305
          %v1307 = vpop.f32.mrb[0].mxu0
          %1308 = vdwg.mxu0
          %s1309 = sshra.s32 %s653, 3
          %s1310 = sand.u32 %s653, 7
          %s1311 = smul.addr %s1309, 4
          %s1312 = scalar_lea.vmem %s1, %s1311
          %v1313 = vld [vmem:[%s1312] sm:$0xf]
          %v1314 = vld [vmem:[%s1312 + $0x4] sm:$0xf]
          %v1315 = vld [vmem:[%s1312 + $0x8] sm:$0xf]
          %v1316 = vld [vmem:[%s1312 + $0xc] sm:$0xf]
          %v1317 = vld [vmem:[%s1312 + $0x10] sm:$0xf]
          %v1318 = vld [vmem:[%s1312 + $0x14] sm:$0xf]
          %v1319 = vld [vmem:[%s1312 + $0x18] sm:$0xf]
          %v1320 = vld [vmem:[%s1312 + $0x1c] sm:$0xf]
          %v1321 = vld [vmem:[%s1312 + $0x20] sm:$0xf]
          %v1322 = vld [vmem:[%s1312 + $0x24] sm:$0xf]
          %v1323 = vld [vmem:[%s1312 + $0x28] sm:$0xf]
          %v1324 = vld [vmem:[%s1312 + $0x2c] sm:$0xf]
          %v1325 = vld [vmem:[%s1312 + $0x30] sm:$0xf]
          %v1326 = vld [vmem:[%s1312 + $0x34] sm:$0xf]
          %v1327 = vld [vmem:[%s1312 + $0x38] sm:$0xf]
          %v1328 = vld [vmem:[%s1312 + $0x3c] sm:$0xf]
          %v1329 = vpack.c.bf16 %v1250, %v1247
          %v1330 = vpack.c.bf16 %v1258, %v1255
          %v1331 = vpack.c.bf16 %v1266, %v1263
          %v1332 = vpack.c.bf16 %v1274, %v1271
          %v1333 = vpack.c.bf16 %v1282, %v1279
          %v1334 = vpack.c.bf16 %v1290, %v1287
          %v1335 = vpack.c.bf16 %v1298, %v1295
          %v1336 = vpack.c.bf16 %v1306, %v1303
          %v1337 = vld [vmem:[%s5] sm:$0xf]
          %v1338 = vld [vmem:[%s5 + $0x4] sm:$0xf]
          %v1339 = vld [vmem:[%s5 + $0x8] sm:$0xf]
          %v1340 = vld [vmem:[%s5 + $0xc] sm:$0xf]
          %v1341 = vld [vmem:[%s5 + $0x10] sm:$0xf]
          %v1342 = vld [vmem:[%s5 + $0x14] sm:$0xf]
          %v1343 = vld [vmem:[%s5 + $0x18] sm:$0xf]
          %v1344 = vld [vmem:[%s5 + $0x1c] sm:$0xf]
          %v1345 = vld [vmem:[%s5 + $0x20] sm:$0xf]
          %v1346 = vld [vmem:[%s5 + $0x24] sm:$0xf]
          %v1347 = vld [vmem:[%s5 + $0x28] sm:$0xf]
          %v1348 = vld [vmem:[%s5 + $0x2c] sm:$0xf]
          %v1349 = vld [vmem:[%s5 + $0x30] sm:$0xf]
          %v1350 = vld [vmem:[%s5 + $0x34] sm:$0xf]
          %v1351 = vld [vmem:[%s5 + $0x38] sm:$0xf]
          %v1352 = vld [vmem:[%s5 + $0x3c] sm:$0xf]
          %v1353 = vld [vmem:[#allocation11] sm:$0xf]
          %v1354 = vld [vmem:[#allocation11 + $0x4] sm:$0xf]
          %v1355 = vld [vmem:[#allocation11 + $0x8] sm:$0xf]
          %v1356 = vld [vmem:[#allocation11 + $0xc] sm:$0xf]
          %v1357 = vld [vmem:[#allocation11 + $0x10] sm:$0xf]
          %v1358 = vld [vmem:[#allocation11 + $0x14] sm:$0xf]
          %v1359 = vld [vmem:[#allocation11 + $0x18] sm:$0xf]
          %v1360 = vld [vmem:[#allocation11 + $0x1c] sm:$0xf]
          %v1361 = vld [vmem:[#allocation11 + $0x20] sm:$0xf]
          %v1362 = vld [vmem:[#allocation11 + $0x24] sm:$0xf]
          %v1363 = vld [vmem:[#allocation11 + $0x28] sm:$0xf]
          %v1364 = vld [vmem:[#allocation11 + $0x2c] sm:$0xf]
          %v1365 = vld [vmem:[#allocation11 + $0x30] sm:$0xf]
          %v1366 = vld [vmem:[#allocation11 + $0x34] sm:$0xf]
          %v1367 = vld [vmem:[#allocation11 + $0x38] sm:$0xf]
          %v1368 = vld [vmem:[#allocation11 + $0x3c] sm:$0xf]
          %v1385 = vunpack.c.l.b16 %v1313
          %v1386 = vunpack.c.l.b16 %v1314
          %v1387 = vunpack.c.l.b16 %v1315
          %v1388 = vunpack.c.l.b16 %v1316
          %v1389 = vunpack.c.l.b16 %v1317
          %v1390 = vunpack.c.l.b16 %v1318
          %v1391 = vunpack.c.l.b16 %v1319
          %v1392 = vunpack.c.l.b16 %v1320
          %v1393 = vunpack.c.l.b16 %v1321
          %v1394 = vunpack.c.l.b16 %v1322
          %v1395 = vunpack.c.l.b16 %v1323
          %v1396 = vunpack.c.l.b16 %v1324
          %v1397 = vunpack.c.l.b16 %v1325
          %v1398 = vunpack.c.l.b16 %v1326
          %v1399 = vunpack.c.l.b16 %v1327
          %v1400 = vunpack.c.l.b16 %v1328
          %v1401 = vpack.c.b16 %v1386, %v1385
          %v1402 = vpack.c.b16 %v1388, %v1387
          %v1403 = vpack.c.b16 %v1390, %v1389
          %v1404 = vpack.c.b16 %v1392, %v1391
          %v1405 = vpack.c.b16 %v1394, %v1393
          %v1406 = vpack.c.b16 %v1396, %v1395
          %v1407 = vpack.c.b16 %v1398, %v1397
          %v1408 = vpack.c.b16 %v1400, %v1399
          %v1433 = vunpack.c.l.b16 %v1353
          %v1434 = vunpack.c.l.b16 %v1354
          %v1435 = vunpack.c.l.b16 %v1355
          %v1436 = vunpack.c.l.b16 %v1356
          %v1437 = vunpack.c.l.b16 %v1357
          %v1438 = vunpack.c.l.b16 %v1358
          %v1439 = vunpack.c.l.b16 %v1359
          %v1440 = vunpack.c.l.b16 %v1360
          %v1441 = vunpack.c.l.b16 %v1361
          %v1442 = vunpack.c.l.b16 %v1362
          %v1443 = vunpack.c.l.b16 %v1363
          %v1444 = vunpack.c.l.b16 %v1364
          %v1445 = vunpack.c.l.b16 %v1365
          %v1446 = vunpack.c.l.b16 %v1366
          %v1447 = vunpack.c.l.b16 %v1367
          %v1448 = vunpack.c.l.b16 %v1368
          %v1449 = vpack.c.b16 %v1434, %v1433
          %v1450 = vpack.c.b16 %v1436, %v1435
          %v1451 = vpack.c.b16 %v1438, %v1437
          %v1452 = vpack.c.b16 %v1440, %v1439
          %v1453 = vpack.c.b16 %v1442, %v1441
          %v1454 = vpack.c.b16 %v1444, %v1443
          %v1455 = vpack.c.b16 %v1446, %v1445
          %v1456 = vpack.c.b16 %v1448, %v1447
          %1465 = vmatprep.subr.bf16.mxu0 0
          %1466 = vmatpush1.bf16.msra.mxu0 %v1449
          %1467 = vmatprep.subr.bf16.mxu0 0
          %1468 = vmatpush1.bf16.msra.mxu0 %v1450
          %1469 = vmatprep.subr.bf16.mxu0 0
          %1470 = vmatpush1.bf16.msra.mxu0 %v1451
          %1471 = vmatprep.subr.bf16.mxu0 0
          %1472 = vmatpush1.bf16.msra.mxu0 %v1452
          %1473 = vmatprep.subr.bf16.mxu0 0
          %1474 = vmatpush1.bf16.msra.mxu0 %v1453
          %1475 = vmatprep.subr.bf16.mxu0 0
          %1476 = vmatpush1.bf16.msra.mxu0 %v1454
          %1477 = vmatprep.subr.bf16.mxu0 0
          %1478 = vmatpush1.bf16.msra.mxu0 %v1455
          %1479 = vmatprep.subr.bf16.mxu0 0
          %1480 = vmatpush1.bf16.msra.mxu0 %v1456
          %1481 = vmatprep.subr.bf16.mxu0 0
          %1482 = vmatpush1.bf16.msra.mxu0 0
          %1483 = vmatprep.subr.bf16.mxu0 0
          %1484 = vmatpush1.bf16.msra.mxu0 0
          %1485 = vmatprep.subr.bf16.mxu0 0
          %1486 = vmatpush1.bf16.msra.mxu0 0
          %1487 = vmatprep.subr.bf16.mxu0 0
          %1488 = vmatpush1.bf16.msra.mxu0 0
          %1489 = vmatprep.subr.bf16.mxu0 0
          %1490 = vmatpush1.bf16.msra.mxu0 0
          %1491 = vmatprep.subr.bf16.mxu0 0
          %1492 = vmatpush1.bf16.msra.mxu0 0
          %1493 = vmatprep.subr.bf16.mxu0 0
          %1494 = vmatpush1.bf16.msra.mxu0 0
          %1495 = vmatprep.subr.bf16.mxu0 0
          %1496 = vmatpush1.bf16.msra.mxu0 0
          %1497 = vmatprep.mubr.bf16.mxu0 0
          %1498 = vmatmul.mubr.bf16.gmra.mrb[0].mxu0 %v1401
          %v1499 = vpop.f32.mrb[0].mxu0
          %v1500 = vadd.f32 0.0, %v1499
          %v1501 = vpop.f32.mrb[0].mxu0
          %v1502 = vpop.f32.mrb[0].mxu0
          %v1503 = vadd.f32 0.0, %v1502
          %v1504 = vpop.f32.mrb[0].mxu0
          %1505 = vmatprep.mubr.bf16.mxu0 0
          %1506 = vmatmul.mubr.bf16.gmra.mrb[0].mxu0 %v1402
          %v1507 = vpop.f32.mrb[0].mxu0
          %v1508 = vadd.f32 0.0, %v1507
          %v1509 = vpop.f32.mrb[0].mxu0
          %v1510 = vpop.f32.mrb[0].mxu0
          %v1511 = vadd.f32 0.0, %v1510
          %v1512 = vpop.f32.mrb[0].mxu0
          %1513 = vmatprep.mubr.bf16.mxu0 0
          %1514 = vmatmul.mubr.bf16.gmra.mrb[0].mxu0 %v1403
          %v1515 = vpop.f32.mrb[0].mxu0
          %v1516 = vadd.f32 0.0, %v1515
          %v1517 = vpop.f32.mrb[0].mxu0
          %v1518 = vpop.f32.mrb[0].mxu0
          %v1519 = vadd.f32 0.0, %v1518
          %v1520 = vpop.f32.mrb[0].mxu0
          %1521 = vmatprep.mubr.bf16.mxu0 0
          %1522 = vmatmul.mubr.bf16.gmra.mrb[0].mxu0 %v1404
          %v1523 = vpop.f32.mrb[0].mxu0
          %v1524 = vadd.f32 0.0, %v1523
          %v1525 = vpop.f32.mrb[0].mxu0
          %v1526 = vpop.f32.mrb[0].mxu0
          %v1527 = vadd.f32 0.0, %v1526
          %v1528 = vpop.f32.mrb[0].mxu0
          %1529 = vmatprep.mubr.bf16.mxu0 0
          %1530 = vmatmul.mubr.bf16.gmra.mrb[0].mxu0 %v1405
          %v1531 = vpop.f32.mrb[0].mxu0
          %v1532 = vadd.f32 0.0, %v1531
          %v1533 = vpop.f32.mrb[0].mxu0
          %v1534 = vpop.f32.mrb[0].mxu0
          %v1535 = vadd.f32 0.0, %v1534
          %v1536 = vpop.f32.mrb[0].mxu0
          %1537 = vmatprep.mubr.bf16.mxu0 0
          %1538 = vmatmul.mubr.bf16.gmra.mrb[0].mxu0 %v1406
          %v1539 = vpop.f32.mrb[0].mxu0
          %v1540 = vadd.f32 0.0, %v1539
          %v1541 = vpop.f32.mrb[0].mxu0
          %v1542 = vpop.f32.mrb[0].mxu0
          %v1543 = vadd.f32 0.0, %v1542
          %v1544 = vpop.f32.mrb[0].mxu0
          %1545 = vmatprep.mubr.bf16.mxu0 0
          %1546 = vmatmul.mubr.bf16.gmra.mrb[0].mxu0 %v1407
          %v1547 = vpop.f32.mrb[0].mxu0
          %v1548 = vadd.f32 0.0, %v1547
          %v1549 = vpop.f32.mrb[0].mxu0
          %v1550 = vpop.f32.mrb[0].mxu0
          %v1551 = vadd.f32 0.0, %v1550
          %v1552 = vpop.f32.mrb[0].mxu0
          %1553 = vmatprep.mubr.bf16.mxu0 0
          %1554 = vmatmul.mubr.bf16.gmra.mrb[0].mxu0 %v1408
          %v1555 = vpop.f32.mrb[0].mxu0
          %v1556 = vadd.f32 0.0, %v1555
          %v1557 = vpop.f32.mrb[0].mxu0
          %v1558 = vpop.f32.mrb[0].mxu0
          %v1559 = vadd.f32 0.0, %v1558
          %v1560 = vpop.f32.mrb[0].mxu0
          %1561 = vdwg.mxu0
          %v1578 = vunpack.c.l.b16 %v1337
          %v1579 = vunpack.c.l.b16 %v1338
          %v1580 = vunpack.c.l.b16 %v1339
          %v1581 = vunpack.c.l.b16 %v1340
          %v1582 = vunpack.c.l.b16 %v1341
          %v1583 = vunpack.c.l.b16 %v1342
          %v1584 = vunpack.c.l.b16 %v1343
          %v1585 = vunpack.c.l.b16 %v1344
          %v1586 = vunpack.c.l.b16 %v1345
          %v1587 = vunpack.c.l.b16 %v1346
          %v1588 = vunpack.c.l.b16 %v1347
          %v1589 = vunpack.c.l.b16 %v1348
          %v1590 = vunpack.c.l.b16 %v1349
          %v1591 = vunpack.c.l.b16 %v1350
          %v1592 = vunpack.c.l.b16 %v1351
          %v1593 = vunpack.c.l.b16 %v1352
          %v1594 = vpack.c.b16 %v1579, %v1578
          %v1595 = vpack.c.b16 %v1581, %v1580
          %v1596 = vpack.c.b16 %v1583, %v1582
          %v1597 = vpack.c.b16 %v1585, %v1584
          %v1598 = vpack.c.b16 %v1587, %v1586
          %v1599 = vpack.c.b16 %v1589, %v1588
          %v1600 = vpack.c.b16 %v1591, %v1590
          %v1601 = vpack.c.b16 %v1593, %v1592
          %1610 = vmatprep.subr.bf16.mxu0 0
          %1611 = vmatpush1.bf16.msra.mxu0 %v1594
          %1612 = vmatprep.subr.bf16.mxu0 0
          %1613 = vmatpush1.bf16.msra.mxu0 %v1595
          %1614 = vmatprep.subr.bf16.mxu0 0
          %1615 = vmatpush1.bf16.msra.mxu0 %v1596
          %1616 = vmatprep.subr.bf16.mxu0 0
          %1617 = vmatpush1.bf16.msra.mxu0 %v1597
          %1618 = vmatprep.subr.bf16.mxu0 0
          %1619 = vmatpush1.bf16.msra.mxu0 %v1598
          %1620 = vmatprep.subr.bf16.mxu0 0
          %1621 = vmatpush1.bf16.msra.mxu0 %v1599
          %1622 = vmatprep.subr.bf16.mxu0 0
          %1623 = vmatpush1.bf16.msra.mxu0 %v1600
          %1624 = vmatprep.subr.bf16.mxu0 0
          %1625 = vmatpush1.bf16.msra.mxu0 %v1601
          %1626 = vmatprep.subr.bf16.mxu0 0
          %1627 = vmatpush1.bf16.msra.mxu0 0
          %1628 = vmatprep.subr.bf16.mxu0 0
          %1629 = vmatpush1.bf16.msra.mxu0 0
          %1630 = vmatprep.subr.bf16.mxu0 0
          %1631 = vmatpush1.bf16.msra.mxu0 0
          %1632 = vmatprep.subr.bf16.mxu0 0
          %1633 = vmatpush1.bf16.msra.mxu0 0
          %1634 = vmatprep.subr.bf16.mxu0 0
          %1635 = vmatpush1.bf16.msra.mxu0 0
          %1636 = vmatprep.subr.bf16.mxu0 0
          %1637 = vmatpush1.bf16.msra.mxu0 0
          %1638 = vmatprep.subr.bf16.mxu0 0
          %1639 = vmatpush1.bf16.msra.mxu0 0
          %1640 = vmatprep.subr.bf16.mxu0 0
          %1641 = vmatpush1.bf16.msra.mxu0 0
          %1642 = vmatprep.mubr.bf16.mxu0 0
          %1643 = vmatmul.mubr.bf16.gmra.mrb[0].mxu0 %v1329
          %v1644 = vpop.f32.mrb[0].mxu0
          %v1645 = vadd.f32 %v1500, %v1644
          %v1646 = vpop.f32.mrb[0].mxu0
          %v1647 = vpop.f32.mrb[0].mxu0
          %v1648 = vadd.f32 %v1503, %v1647
          %v1649 = vpop.f32.mrb[0].mxu0
          %1650 = vmatprep.mubr.bf16.mxu0 0
          %1651 = vmatmul.mubr.bf16.gmra.mrb[0].mxu0 %v1330
          %v1652 = vpop.f32.mrb[0].mxu0
          %v1653 = vadd.f32 %v1508, %v1652
          %v1654 = vpop.f32.mrb[0].mxu0
          %v1655 = vpop.f32.mrb[0].mxu0
          %v1656 = vadd.f32 %v1511, %v1655
          %v1657 = vpop.f32.mrb[0].mxu0
          %1658 = vmatprep.mubr.bf16.mxu0 0
          %1659 = vmatmul.mubr.bf16.gmra.mrb[0].mxu0 %v1331
          %v1660 = vpop.f32.mrb[0].mxu0
          %v1661 = vadd.f32 %v1516, %v1660
          %v1662 = vpop.f32.mrb[0].mxu0
          %v1663 = vpop.f32.mrb[0].mxu0
          %v1664 = vadd.f32 %v1519, %v1663
          %v1665 = vpop.f32.mrb[0].mxu0
          %1666 = vmatprep.mubr.bf16.mxu0 0
          %1667 = vmatmul.mubr.bf16.gmra.mrb[0].mxu0 %v1332
          %v1668 = vpop.f32.mrb[0].mxu0
          %v1669 = vadd.f32 %v1524, %v1668
          %v1670 = vpop.f32.mrb[0].mxu0
          %v1671 = vpop.f32.mrb[0].mxu0
          %v1672 = vadd.f32 %v1527, %v1671
          %v1673 = vpop.f32.mrb[0].mxu0
          %1674 = vmatprep.mubr.bf16.mxu0 0
          %1675 = vmatmul.mubr.bf16.gmra.mrb[0].mxu0 %v1333
          %v1676 = vpop.f32.mrb[0].mxu0
          %v1677 = vadd.f32 %v1532, %v1676
          %v1678 = vpop.f32.mrb[0].mxu0
          %v1679 = vpop.f32.mrb[0].mxu0
          %v1680 = vadd.f32 %v1535, %v1679
          %v1681 = vpop.f32.mrb[0].mxu0
          %1682 = vmatprep.mubr.bf16.mxu0 0
          %1683 = vmatmul.mubr.bf16.gmra.mrb[0].mxu0 %v1334
          %v1684 = vpop.f32.mrb[0].mxu0
          %v1685 = vadd.f32 %v1540, %v1684
          %v1686 = vpop.f32.mrb[0].mxu0
          %v1687 = vpop.f32.mrb[0].mxu0
          %v1688 = vadd.f32 %v1543, %v1687
          %v1689 = vpop.f32.mrb[0].mxu0
          %1690 = vmatprep.mubr.bf16.mxu0 0
          %1691 = vmatmul.mubr.bf16.gmra.mrb[0].mxu0 %v1335
          %v1692 = vpop.f32.mrb[0].mxu0
          %v1693 = vadd.f32 %v1548, %v1692
          %v1694 = vpop.f32.mrb[0].mxu0
          %v1695 = vpop.f32.mrb[0].mxu0
          %v1696 = vadd.f32 %v1551, %v1695
          %v1697 = vpop.f32.mrb[0].mxu0
          %1698 = vmatprep.mubr.bf16.mxu0 0
          %1699 = vmatmul.mubr.bf16.gmra.mrb[0].mxu0 %v1336
          %v1700 = vpop.f32.mrb[0].mxu0
          %v1701 = vadd.f32 %v1556, %v1700
          %v1702 = vpop.f32.mrb[0].mxu0
          %v1703 = vpop.f32.mrb[0].mxu0
          %v1704 = vadd.f32 %v1559, %v1703
          %v1705 = vpop.f32.mrb[0].mxu0
          %1706 = vdwg.mxu0
          %v1707 = vld [vmem:[%s7] sm:$0x1]
          %v1709 = vlaneseq
          %v1710 = vshrl.u32 %v1709, 7
          %v1711 = vsub.s32 0, %v1710
          %v1712 = vrot.slane %v1707, %v1711
          %v1714 = vadd.f32 %v1645, %v1712
          %v1715 = vadd.f32 %v1648, %v1712
          %v1716 = vadd.f32 %v1653, %v1712
          %v1717 = vadd.f32 %v1656, %v1712
          %v1718 = vadd.f32 %v1661, %v1712
          %v1719 = vadd.f32 %v1664, %v1712
          %v1720 = vadd.f32 %v1669, %v1712
          %v1721 = vadd.f32 %v1672, %v1712
          %v1722 = vadd.f32 %v1677, %v1712
          %v1723 = vadd.f32 %v1680, %v1712
          %v1724 = vadd.f32 %v1685, %v1712
          %v1725 = vadd.f32 %v1688, %v1712
          %v1726 = vadd.f32 %v1693, %v1712
          %v1727 = vadd.f32 %v1696, %v1712
          %v1728 = vadd.f32 %v1701, %v1712
          %v1729 = vadd.f32 %v1704, %v1712
          %v1730 = vmax.f32 %v1714, 0.0
          %v1731 = vmax.f32 %v1715, 0.0
          %v1732 = vmax.f32 %v1716, 0.0
          %v1733 = vmax.f32 %v1717, 0.0
          %v1734 = vmax.f32 %v1718, 0.0
          %v1735 = vmax.f32 %v1719, 0.0
          %v1736 = vmax.f32 %v1720, 0.0
          %v1737 = vmax.f32 %v1721, 0.0
          %v1738 = vmax.f32 %v1722, 0.0
          %v1739 = vmax.f32 %v1723, 0.0
          %v1740 = vmax.f32 %v1724, 0.0
          %v1741 = vmax.f32 %v1725, 0.0
          %v1742 = vmax.f32 %v1726, 0.0
          %v1743 = vmax.f32 %v1727, 0.0
          %v1744 = vmax.f32 %v1728, 0.0
          %v1745 = vmax.f32 %v1729, 0.0
          %v1746 = vpack.c.bf16 %v1731, %v1730
          %v1747 = vpack.c.bf16 %v1733, %v1732
          %v1748 = vpack.c.bf16 %v1735, %v1734
          %v1749 = vpack.c.bf16 %v1737, %v1736
          %v1750 = vpack.c.bf16 %v1739, %v1738
          %v1751 = vpack.c.bf16 %v1741, %v1740
          %v1752 = vpack.c.bf16 %v1743, %v1742
          %v1753 = vpack.c.bf16 %v1745, %v1744
          %s1754 = sshra.s32 %s653, 4
          %s1755 = sand.u32 %s653, 15
          %s1756 = smul.addr %s1754, 8
          %s1757 = scalar_lea.vmem [#allocation2], %s1756
          %1758 = vst [vmem:[%s1757] sm:$0xff] %v1746
          %1759 = vst [vmem:[%s1757 + $0x8] sm:$0xff] %v1747
          %1760 = vst [vmem:[%s1757 + $0x10] sm:$0xff] %v1748
          %1761 = vst [vmem:[%s1757 + $0x18] sm:$0xff] %v1749
          %1762 = vst [vmem:[%s1757 + $0x20] sm:$0xff] %v1750
          %1763 = vst [vmem:[%s1757 + $0x28] sm:$0xff] %v1751
          %1764 = vst [vmem:[%s1757 + $0x30] sm:$0xff] %v1752
          %1765 = vst [vmem:[%s1757 + $0x38] sm:$0xff] %v1753
          %v1766 = vmul.f32 %v1730, %v720
          %v1767 = vmul.f32 %v1731, %v721
          %v1768 = vmul.f32 %v1732, %v722
          %v1769 = vmul.f32 %v1733, %v723
          %v1770 = vmul.f32 %v1734, %v724
          %v1771 = vmul.f32 %v1735, %v725
          %v1772 = vmul.f32 %v1736, %v726
          %v1773 = vmul.f32 %v1737, %v727
          %v1774 = vmul.f32 %v1738, %v728
          %v1775 = vmul.f32 %v1739, %v729
          %v1776 = vmul.f32 %v1740, %v730
          %v1777 = vmul.f32 %v1741, %v731
          %v1778 = vmul.f32 %v1742, %v732
          %v1779 = vmul.f32 %v1743, %v733
          %v1780 = vmul.f32 %v1744, %v734
          %v1781 = vmul.f32 %v1745, %v735
          %v1782 = vld [vmem:[#allocation3] sm:$0x1]
          %v1783 = vadd.f32 %v1766, %v1767
          %v1784 = vadd.f32 %v1783, %v1768
          %v1785 = vadd.f32 %v1784, %v1769
          %v1786 = vadd.f32 %v1785, %v1770
          %v1787 = vadd.f32 %v1786, %v1771
          %v1788 = vadd.f32 %v1787, %v1772
          %v1789 = vadd.f32 %v1788, %v1773
          %v1790 = vadd.f32 %v1789, %v1774
          %v1791 = vadd.f32 %v1790, %v1775
          %v1792 = vadd.f32 %v1791, %v1776
          %v1793 = vadd.f32 %v1792, %v1777
          %v1794 = vadd.f32 %v1793, %v1778
          %v1795 = vadd.f32 %v1794, %v1779
          %v1796 = vadd.f32 %v1795, %v1780
          %v1797 = vadd.f32 %v1796, %v1781
          %v1798 = vrot.slane %v1797, 4
          %v1799 = vadd.f32 %v1797, %v1798
          %v1800 = vrot.slane %v1799, 2
          %v1801 = vadd.f32 %v1799, %v1800
          %v1802 = vrot.slane %v1801, 1
          %v1803 = vadd.f32 %v1801, %v1802
          %v1804 = vadd.f32 %v1782, %v1803
          %1805 = vst [vmem:[#allocation3] sm:$0x1] %v1804
          %v1806 = vld [vmem:[#allocation4] sm:$0x1]
          %v1807 = vmul.f32 %v1766, %v1730
          %v1808 = vmul.f32 %v1767, %v1731
          %v1809 = vmul.f32 %v1768, %v1732
          %v1810 = vmul.f32 %v1769, %v1733
          %v1811 = vmul.f32 %v1770, %v1734
          %v1812 = vmul.f32 %v1771, %v1735
          %v1813 = vmul.f32 %v1772, %v1736
          %v1814 = vmul.f32 %v1773, %v1737
          %v1815 = vmul.f32 %v1774, %v1738
          %v1816 = vmul.f32 %v1775, %v1739
          %v1817 = vmul.f32 %v1776, %v1740
          %v1818 = vmul.f32 %v1777, %v1741
          %v1819 = vmul.f32 %v1778, %v1742
          %v1820 = vmul.f32 %v1779, %v1743
          %v1821 = vmul.f32 %v1780, %v1744
          %v1822 = vmul.f32 %v1781, %v1745
          %v1823 = vadd.f32 %v1807, %v1808
          %v1824 = vadd.f32 %v1823, %v1809
          %v1825 = vadd.f32 %v1824, %v1810
          %v1826 = vadd.f32 %v1825, %v1811
          %v1827 = vadd.f32 %v1826, %v1812
          %v1828 = vadd.f32 %v1827, %v1813
          %v1829 = vadd.f32 %v1828, %v1814
          %v1830 = vadd.f32 %v1829, %v1815
          %v1831 = vadd.f32 %v1830, %v1816
          %v1832 = vadd.f32 %v1831, %v1817
          %v1833 = vadd.f32 %v1832, %v1818
          %v1834 = vadd.f32 %v1833, %v1819
          %v1835 = vadd.f32 %v1834, %v1820
          %v1836 = vadd.f32 %v1835, %v1821
          %v1837 = vadd.f32 %v1836, %v1822
          %v1838 = vrot.slane %v1837, 4
          %v1839 = vadd.f32 %v1837, %v1838
          %v1840 = vrot.slane %v1839, 2
          %v1841 = vadd.f32 %v1839, %v1840
          %v1842 = vrot.slane %v1841, 1
          %v1843 = vadd.f32 %v1841, %v1842
          %v1844 = vadd.f32 %v1806, %v1843
          %1845 = vst [vmem:[#allocation4] sm:$0x1] %v1844
        $region112: #{tpu_custom_call.1} parent=87 // pred_fallthru
          _
        %p1846 = scmp.eq.s32.totalorder %s38, 1
        // Predicated region
        $region113: #{tpu_custom_call.1} parent=87 // pred_check
          %p1847 = pneg %p1846
        $region114: #{tpu_custom_call.1} parent=87 // pred_check_branch
          %1849 = sbr.rel (%p1847) target = $region116
        $region115: #{tpu_custom_call.1} parent=87 // pred_region
          // Predicated region
          $region117: #{tpu_custom_call.1} parent=115 // pred_check
            %p1850 = pneg %p785
          $region118: #{tpu_custom_call.1} parent=115 // pred_check_branch
            %1852 = sbr.rel (%p1850) target = $region120
          $region119: #{tpu_custom_call.1} parent=115 // pred_region
            %v1853 = vld [vmem:[#allocation3] sm:$0x1]
            %v1854 = vmul.f32 %v1853, 0.003125
            %v1855 = vld [vmem:[#allocation4] sm:$0x1]
            %v1856 = vmul.f32 %v1855, 0.003125
            %v1857 = vmul.f32 %v1854, %v1854
            %v1858 = vsub.f32 %v1856, %v1857
            %v1859 = vmax.f32 %v1858, 0.0
            %v1860 = vld [vmem:[%s8] sm:$0x1]
            %v1861 = vadd.f32 %v1859, 1e-05
            %v1862 = vrsqrt.pop %v1861
            %v1863 = vmul.f32 %v1860, %v1862
            %1864 = vst [vmem:[#allocation5] sm:$0x1] %v1863
            %v1865 = vld [vmem:[%s9] sm:$0x1]
            %v1866 = vmul.f32 %v1854, %v1863
            %v1867 = vsub.f32 %v1865, %v1866
            %1868 = vst [vmem:[#allocation6] sm:$0x1] %v1867
            %1869 = vst [vmem:[#allocation3] sm:$0x1] 0.0
            %1870 = vst [vmem:[#allocation4] sm:$0x1] 0.0
            %1871 = vst [vmem:[#allocation7] sm:$0xff] 0.0
          $region120: #{tpu_custom_call.1} parent=115 // pred_fallthru
            _
          %v1872 = vld [vmem:[#allocation5] sm:$0x1]
          %v1873 = vld [vmem:[#allocation6] sm:$0x1]
          %v1874 = vld [vmem:[#allocation2] sm:$0xff]
          %v1875 = vld [vmem:[#allocation2 + $0x8] sm:$0xff]
          %v1876 = vld [vmem:[#allocation2 + $0x10] sm:$0xff]
          %v1877 = vld [vmem:[#allocation2 + $0x18] sm:$0xff]
          %v1878 = vld [vmem:[#allocation2 + $0x20] sm:$0xff]
          %v1879 = vld [vmem:[#allocation2 + $0x28] sm:$0xff]
          %v1880 = vld [vmem:[#allocation2 + $0x30] sm:$0xff]
          %v1881 = vld [vmem:[#allocation2 + $0x38] sm:$0xff]
          %v1882 = vld [vmem:[#allocation2 + $0x40] sm:$0xff]
          %v1883 = vld [vmem:[#allocation2 + $0x48] sm:$0xff]
          %v1884 = vld [vmem:[#allocation2 + $0x50] sm:$0xff]
          %v1885 = vld [vmem:[#allocation2 + $0x58] sm:$0xff]
          %v1886 = vld [vmem:[#allocation2 + $0x60] sm:$0xff]
          %v1887 = vld [vmem:[#allocation2 + $0x68] sm:$0xff]
          %v1888 = vld [vmem:[#allocation2 + $0x70] sm:$0xff]
          %v1889 = vld [vmem:[#allocation2 + $0x78] sm:$0xff]
          %v1890 = vld [vmem:[#allocation2 + $0x80] sm:$0xff]
          %v1891 = vld [vmem:[#allocation2 + $0x88] sm:$0xff]
          %v1892 = vld [vmem:[#allocation2 + $0x90] sm:$0xff]
          %v1893 = vld [vmem:[#allocation2 + $0x98] sm:$0xff]
          %v1894 = vld [vmem:[#allocation2 + $0xa0] sm:$0xff]
          %v1895 = vld [vmem:[#allocation2 + $0xa8] sm:$0xff]
          %v1896 = vld [vmem:[#allocation2 + $0xb0] sm:$0xff]
          %v1897 = vld [vmem:[#allocation2 + $0xb8] sm:$0xff]
          %v1930 = vunpack.c.l.b16 %v736
          %v1931 = vunpack.c.h.b16 %v736
          %v1932 = vunpack.c.l.b16 %v737
          %v1933 = vunpack.c.l.b16 %v738
          %v1934 = vunpack.c.h.b16 %v738
          %v1935 = vunpack.c.l.b16 %v739
          %v1936 = vunpack.c.l.b16 %v740
          %v1937 = vunpack.c.h.b16 %v740
          %v1938 = vunpack.c.l.b16 %v741
          %v1939 = vunpack.c.l.b16 %v742
          %v1940 = vunpack.c.h.b16 %v742
          %v1941 = vunpack.c.l.b16 %v743
          %v1942 = vunpack.c.l.b16 %v744
          %v1943 = vunpack.c.h.b16 %v744
          %v1944 = vunpack.c.l.b16 %v745
          %v1945 = vunpack.c.l.b16 %v746
          %v1946 = vunpack.c.h.b16 %v746
          %v1947 = vunpack.c.l.b16 %v747
          %v1948 = vunpack.c.l.b16 %v748
          %v1949 = vunpack.c.h.b16 %v748
          %v1950 = vunpack.c.l.b16 %v749
          %v1951 = vunpack.c.l.b16 %v750
          %v1952 = vunpack.c.h.b16 %v750
          %v1953 = vunpack.c.l.b16 %v751
          %v1954 = vunpack.c.l.b16 %v752
          %v1955 = vunpack.c.h.b16 %v752
          %v1956 = vunpack.c.l.b16 %v753
          %v1957 = vunpack.c.l.b16 %v754
          %v1958 = vunpack.c.h.b16 %v754
          %v1959 = vunpack.c.l.b16 %v755
          %v1960 = vunpack.c.l.b16 %v756
          %v1961 = vunpack.c.h.b16 %v756
          %v1962 = vunpack.c.l.b16 %v757
          %v1963 = vunpack.c.l.b16 %v758
          %v1964 = vunpack.c.h.b16 %v758
          %v1965 = vunpack.c.l.b16 %v759
          %v1966 = vunpack.c.l.b16 %v760
          %v1967 = vunpack.c.h.b16 %v760
          %v1968 = vunpack.c.l.b16 %v761
          %v1969 = vunpack.c.l.b16 %v762
          %v1970 = vunpack.c.h.b16 %v762
          %v1971 = vunpack.c.l.b16 %v763
          %v1972 = vunpack.c.l.b16 %v764
          %v1973 = vunpack.c.h.b16 %v764
          %v1974 = vunpack.c.l.b16 %v765
          %v1975 = vunpack.c.l.b16 %v766
          %v1976 = vunpack.c.h.b16 %v766
          %v1977 = vunpack.c.l.b16 %v767
          %v1978 = vpack.c.b16 %v1933, %v1930
          %v1979 = vpack.c.b16 %v1934, %v1931
          %v1980 = vpack.c.b16 %v1935, %v1932
          %v1981 = vpack.c.b16 %v1939, %v1936
          %v1982 = vpack.c.b16 %v1940, %v1937
          %v1983 = vpack.c.b16 %v1941, %v1938
          %v1984 = vpack.c.b16 %v1945, %v1942
          %v1985 = vpack.c.b16 %v1946, %v1943
          %v1986 = vpack.c.b16 %v1947, %v1944
          %v1987 = vpack.c.b16 %v1951, %v1948
          %v1988 = vpack.c.b16 %v1952, %v1949
          %v1989 = vpack.c.b16 %v1953, %v1950
          %v1990 = vpack.c.b16 %v1957, %v1954
          %v1991 = vpack.c.b16 %v1958, %v1955
          %v1992 = vpack.c.b16 %v1959, %v1956
          %v1993 = vpack.c.b16 %v1963, %v1960
          %v1994 = vpack.c.b16 %v1964, %v1961
          %v1995 = vpack.c.b16 %v1965, %v1962
          %v1996 = vpack.c.b16 %v1969, %v1966
          %v1997 = vpack.c.b16 %v1970, %v1967
          %v1998 = vpack.c.b16 %v1971, %v1968
          %v1999 = vpack.c.b16 %v1975, %v1972
          %v2000 = vpack.c.b16 %v1976, %v1973
          %v2001 = vpack.c.b16 %v1977, %v1974
          %2026 = vmatprep.subr.bf16.mxu0 0
          %2027 = vmatpush1.bf16.msra.mxu0 %v1874
          %2028 = vmatprep.subr.bf16.mxu0 0
          %2029 = vmatpush1.bf16.msra.mxu0 %v1875
          %2030 = vmatprep.subr.bf16.mxu0 0
          %2031 = vmatpush1.bf16.msra.mxu0 %v1876
          %2032 = vmatprep.subr.bf16.mxu0 0
          %2033 = vmatpush1.bf16.msra.mxu0 %v1877
          %2034 = vmatprep.subr.bf16.mxu0 0
          %2035 = vmatpush1.bf16.msra.mxu0 %v1878
          %2036 = vmatprep.subr.bf16.mxu0 0
          %2037 = vmatpush1.bf16.msra.mxu0 %v1879
          %2038 = vmatprep.subr.bf16.mxu0 0
          %2039 = vmatpush1.bf16.msra.mxu0 %v1880
          %2040 = vmatprep.subr.bf16.mxu0 0
          %2041 = vmatpush1.bf16.msra.mxu0 %v1881
          %2042 = vmatprep.subr.bf16.mxu0 0
          %2043 = vmatpush1.bf16.msra.mxu0 %v1882
          %2044 = vmatprep.subr.bf16.mxu0 0
          %2045 = vmatpush1.bf16.msra.mxu0 %v1883
          %2046 = vmatprep.subr.bf16.mxu0 0
          %2047 = vmatpush1.bf16.msra.mxu0 %v1884
          %2048 = vmatprep.subr.bf16.mxu0 0
          %2049 = vmatpush1.bf16.msra.mxu0 %v1885
          %2050 = vmatprep.subr.bf16.mxu0 0
          %2051 = vmatpush1.bf16.msra.mxu0 %v1886
          %2052 = vmatprep.subr.bf16.mxu0 0
          %2053 = vmatpush1.bf16.msra.mxu0 %v1887
          %2054 = vmatprep.subr.bf16.mxu0 0
          %2055 = vmatpush1.bf16.msra.mxu0 %v1888
          %2056 = vmatprep.subr.bf16.mxu0 0
          %2057 = vmatpush1.bf16.msra.mxu0 %v1889
          %2058 = vmatprep.mubr.bf16.mxu0 %v1979
          %2059 = vmatmul.mubr.bf16.gmra.mrb[0].mxu0 %v1978
          %v2060 = vpop.f32.mrb[0].mxu0
          %v2061 = vadd.f32 0.0, %v2060
          %v2062 = vpop.f32.mrb[0].mxu0
          %v2063 = vpop.f32.mrb[0].mxu0
          %v2064 = vadd.f32 0.0, %v2063
          %v2065 = vpop.f32.mrb[0].mxu0
          %2066 = vmatprep.mubr.bf16.mxu0 %v1982
          %2067 = vmatmul.mubr.bf16.gmra.mrb[0].mxu0 %v1981
          %v2068 = vpop.f32.mrb[0].mxu0
          %v2069 = vadd.f32 0.0, %v2068
          %v2070 = vpop.f32.mrb[0].mxu0
          %v2071 = vpop.f32.mrb[0].mxu0
          %v2072 = vadd.f32 0.0, %v2071
          %v2073 = vpop.f32.mrb[0].mxu0
          %2074 = vmatprep.mubr.bf16.mxu0 %v1985
          %2075 = vmatmul.mubr.bf16.gmra.mrb[0].mxu0 %v1984
          %v2076 = vpop.f32.mrb[0].mxu0
          %v2077 = vadd.f32 0.0, %v2076
          %v2078 = vpop.f32.mrb[0].mxu0
          %v2079 = vpop.f32.mrb[0].mxu0
          %v2080 = vadd.f32 0.0, %v2079
          %v2081 = vpop.f32.mrb[0].mxu0
          %2082 = vmatprep.mubr.bf16.mxu0 %v1988
          %2083 = vmatmul.mubr.bf16.gmra.mrb[0].mxu0 %v1987
          %v2084 = vpop.f32.mrb[0].mxu0
          %v2085 = vadd.f32 0.0, %v2084
          %v2086 = vpop.f32.mrb[0].mxu0
          %v2087 = vpop.f32.mrb[0].mxu0
          %v2088 = vadd.f32 0.0, %v2087
          %v2089 = vpop.f32.mrb[0].mxu0
          %2090 = vmatprep.mubr.bf16.mxu0 %v1991
          %2091 = vmatmul.mubr.bf16.gmra.mrb[0].mxu0 %v1990
          %v2092 = vpop.f32.mrb[0].mxu0
          %v2093 = vadd.f32 0.0, %v2092
          %v2094 = vpop.f32.mrb[0].mxu0
          %v2095 = vpop.f32.mrb[0].mxu0
          %v2096 = vadd.f32 0.0, %v2095
          %v2097 = vpop.f32.mrb[0].mxu0
          %2098 = vmatprep.mubr.bf16.mxu0 %v1994
          %2099 = vmatmul.mubr.bf16.gmra.mrb[0].mxu0 %v1993
          %v2100 = vpop.f32.mrb[0].mxu0
          %v2101 = vadd.f32 0.0, %v2100
          %v2102 = vpop.f32.mrb[0].mxu0
          %v2103 = vpop.f32.mrb[0].mxu0
          %v2104 = vadd.f32 0.0, %v2103
          %v2105 = vpop.f32.mrb[0].mxu0
          %2106 = vmatprep.mubr.bf16.mxu0 %v1997
          %2107 = vmatmul.mubr.bf16.gmra.mrb[0].mxu0 %v1996
          %v2108 = vpop.f32.mrb[0].mxu0
          %v2109 = vadd.f32 0.0, %v2108
          %v2110 = vpop.f32.mrb[0].mxu0
          %v2111 = vpop.f32.mrb[0].mxu0
          %v2112 = vadd.f32 0.0, %v2111
          %v2113 = vpop.f32.mrb[0].mxu0
          %2114 = vmatprep.mubr.bf16.mxu0 %v2000
          %2115 = vmatmul.mubr.bf16.gmra.mrb[0].mxu0 %v1999
          %v2116 = vpop.f32.mrb[0].mxu0
          %v2117 = vadd.f32 0.0, %v2116
          %v2118 = vpop.f32.mrb[0].mxu0
          %v2119 = vpop.f32.mrb[0].mxu0
          %v2120 = vadd.f32 0.0, %v2119
          %v2121 = vpop.f32.mrb[0].mxu0
          %2122 = vdwg.mxu0
          %2123 = vmatprep.subr.bf16.mxu0 0
          %2124 = vmatpush1.bf16.msra.mxu0 %v1890
          %2125 = vmatprep.subr.bf16.mxu0 0
          %2126 = vmatpush1.bf16.msra.mxu0 %v1891
          %2127 = vmatprep.subr.bf16.mxu0 0
          %2128 = vmatpush1.bf16.msra.mxu0 %v1892
          %2129 = vmatprep.subr.bf16.mxu0 0
          %2130 = vmatpush1.bf16.msra.mxu0 %v1893
          %2131 = vmatprep.subr.bf16.mxu0 0
          %2132 = vmatpush1.bf16.msra.mxu0 %v1894
          %2133 = vmatprep.subr.bf16.mxu0 0
          %2134 = vmatpush1.bf16.msra.mxu0 %v1895
          %2135 = vmatprep.subr.bf16.mxu0 0
          %2136 = vmatpush1.bf16.msra.mxu0 %v1896
          %2137 = vmatprep.subr.bf16.mxu0 0
          %2138 = vmatpush1.bf16.msra.mxu0 %v1897
          %2139 = vmatprep.subr.bf16.mxu0 0
          %2140 = vmatpush1.bf16.msra.mxu0 0
          %2141 = vmatprep.subr.bf16.mxu0 0
          %2142 = vmatpush1.bf16.msra.mxu0 0
          %2143 = vmatprep.subr.bf16.mxu0 0
          %2144 = vmatpush1.bf16.msra.mxu0 0
          %2145 = vmatprep.subr.bf16.mxu0 0
          %2146 = vmatpush1.bf16.msra.mxu0 0
          %2147 = vmatprep.subr.bf16.mxu0 0
          %2148 = vmatpush1.bf16.msra.mxu0 0
          %2149 = vmatprep.subr.bf16.mxu0 0
          %2150 = vmatpush1.bf16.msra.mxu0 0
          %2151 = vmatprep.subr.bf16.mxu0 0
          %2152 = vmatpush1.bf16.msra.mxu0 0
          %2153 = vmatprep.subr.bf16.mxu0 0
          %2154 = vmatpush1.bf16.msra.mxu0 0
          %2155 = vmatprep.mubr.bf16.mxu0 0
          %2156 = vmatmul.mubr.bf16.gmra.mrb[0].mxu0 %v1980
          %v2157 = vpop.f32.mrb[0].mxu0
          %v2158 = vadd.f32 %v2061, %v2157
          %v2159 = vpop.f32.mrb[0].mxu0
          %v2160 = vpop.f32.mrb[0].mxu0
          %v2161 = vadd.f32 %v2064, %v2160
          %v2162 = vpop.f32.mrb[0].mxu0
          %2163 = vmatprep.mubr.bf16.mxu0 0
          %2164 = vmatmul.mubr.bf16.gmra.mrb[0].mxu0 %v1983
          %v2165 = vpop.f32.mrb[0].mxu0
          %v2166 = vadd.f32 %v2069, %v2165
          %v2167 = vpop.f32.mrb[0].mxu0
          %v2168 = vpop.f32.mrb[0].mxu0
          %v2169 = vadd.f32 %v2072, %v2168
          %v2170 = vpop.f32.mrb[0].mxu0
          %2171 = vmatprep.mubr.bf16.mxu0 0
          %2172 = vmatmul.mubr.bf16.gmra.mrb[0].mxu0 %v1986
          %v2173 = vpop.f32.mrb[0].mxu0
          %v2174 = vadd.f32 %v2077, %v2173
          %v2175 = vpop.f32.mrb[0].mxu0
          %v2176 = vpop.f32.mrb[0].mxu0
          %v2177 = vadd.f32 %v2080, %v2176
          %v2178 = vpop.f32.mrb[0].mxu0
          %2179 = vmatprep.mubr.bf16.mxu0 0
          %2180 = vmatmul.mubr.bf16.gmra.mrb[0].mxu0 %v1989
          %v2181 = vpop.f32.mrb[0].mxu0
          %v2182 = vadd.f32 %v2085, %v2181
          %v2183 = vpop.f32.mrb[0].mxu0
          %v2184 = vpop.f32.mrb[0].mxu0
          %v2185 = vadd.f32 %v2088, %v2184
          %v2186 = vpop.f32.mrb[0].mxu0
          %2187 = vmatprep.mubr.bf16.mxu0 0
          %2188 = vmatmul.mubr.bf16.gmra.mrb[0].mxu0 %v1992
          %v2189 = vpop.f32.mrb[0].mxu0
          %v2190 = vadd.f32 %v2093, %v2189
          %v2191 = vpop.f32.mrb[0].mxu0
          %v2192 = vpop.f32.mrb[0].mxu0
          %v2193 = vadd.f32 %v2096, %v2192
          %v2194 = vpop.f32.mrb[0].mxu0
          %2195 = vmatprep.mubr.bf16.mxu0 0
          %2196 = vmatmul.mubr.bf16.gmra.mrb[0].mxu0 %v1995
          %v2197 = vpop.f32.mrb[0].mxu0
          %v2198 = vadd.f32 %v2101, %v2197
          %v2199 = vpop.f32.mrb[0].mxu0
          %v2200 = vpop.f32.mrb[0].mxu0
          %v2201 = vadd.f32 %v2104, %v2200
          %v2202 = vpop.f32.mrb[0].mxu0
          %2203 = vmatprep.mubr.bf16.mxu0 0
          %2204 = vmatmul.mubr.bf16.gmra.mrb[0].mxu0 %v1998
          %v2205 = vpop.f32.mrb[0].mxu0
          %v2206 = vadd.f32 %v2109, %v2205
          %v2207 = vpop.f32.mrb[0].mxu0
          %v2208 = vpop.f32.mrb[0].mxu0
          %v2209 = vadd.f32 %v2112, %v2208
          %v2210 = vpop.f32.mrb[0].mxu0
          %2211 = vmatprep.mubr.bf16.mxu0 0
          %2212 = vmatmul.mubr.bf16.gmra.mrb[0].mxu0 %v2001
          %v2213 = vpop.f32.mrb[0].mxu0
          %v2214 = vadd.f32 %v2117, %v2213
          %v2215 = vpop.f32.mrb[0].mxu0
          %v2216 = vpop.f32.mrb[0].mxu0
          %v2217 = vadd.f32 %v2120, %v2216
          %v2218 = vpop.f32.mrb[0].mxu0
          %2219 = vdwg.mxu0
          %v2221 = vlaneseq
          %v2222 = vshrl.u32 %v2221, 7
          %v2223 = vsub.s32 0, %v2222
          %v2224 = vrot.slane %v1872, %v2223
          %v2226 = vmul.f32 %v2158, %v2224
          %v2227 = vmul.f32 %v2161, %v2224
          %v2228 = vmul.f32 %v2166, %v2224
          %v2229 = vmul.f32 %v2169, %v2224
          %v2230 = vmul.f32 %v2174, %v2224
          %v2231 = vmul.f32 %v2177, %v2224
          %v2232 = vmul.f32 %v2182, %v2224
          %v2233 = vmul.f32 %v2185, %v2224
          %v2234 = vmul.f32 %v2190, %v2224
          %v2235 = vmul.f32 %v2193, %v2224
          %v2236 = vmul.f32 %v2198, %v2224
          %v2237 = vmul.f32 %v2201, %v2224
          %v2238 = vmul.f32 %v2206, %v2224
          %v2239 = vmul.f32 %v2209, %v2224
          %v2240 = vmul.f32 %v2214, %v2224
          %v2241 = vmul.f32 %v2217, %v2224
          %2243 = vset.pattern.permute.xlu0 0
          %2244 = vperm.xlu0 %2243, %v768
          %v2245 = vpop.permute.xlu0 %2244
          %2248 = vset.pattern.permute.xlu0 0
          %2249 = vperm.xlu0 %2248, %v769
          %v2250 = vpop.permute.xlu0 %2249
          %2253 = vset.pattern.permute.xlu0 0
          %2254 = vperm.xlu0 %2253, %v770
          %v2255 = vpop.permute.xlu0 %2254
          %2258 = vset.pattern.permute.xlu0 0
          %2259 = vperm.xlu0 %2258, %v771
          %v2260 = vpop.permute.xlu0 %2259
          %2263 = vset.pattern.permute.xlu0 0
          %2264 = vperm.xlu0 %2263, %v772
          %v2265 = vpop.permute.xlu0 %2264
          %2268 = vset.pattern.permute.xlu0 0
          %2269 = vperm.xlu0 %2268, %v773
          %v2270 = vpop.permute.xlu0 %2269
          %2273 = vset.pattern.permute.xlu0 0
          %2274 = vperm.xlu0 %2273, %v774
          %v2275 = vpop.permute.xlu0 %2274
          %2278 = vset.pattern.permute.xlu0 0
          %2279 = vperm.xlu0 %2278, %v775
          %v2280 = vpop.permute.xlu0 %2279
          %2283 = vset.pattern.permute.xlu0 0
          %2284 = vperm.xlu0 %2283, %v776
          %v2285 = vpop.permute.xlu0 %2284
          %2288 = vset.pattern.permute.xlu0 0
          %2289 = vperm.xlu0 %2288, %v777
          %v2290 = vpop.permute.xlu0 %2289
          %2293 = vset.pattern.permute.xlu0 0
          %2294 = vperm.xlu0 %2293, %v778
          %v2295 = vpop.permute.xlu0 %2294
          %2298 = vset.pattern.permute.xlu0 0
          %2299 = vperm.xlu0 %2298, %v779
          %v2300 = vpop.permute.xlu0 %2299
          %2303 = vset.pattern.permute.xlu0 0
          %2304 = vperm.xlu0 %2303, %v780
          %v2305 = vpop.permute.xlu0 %2304
          %2308 = vset.pattern.permute.xlu0 0
          %2309 = vperm.xlu0 %2308, %v781
          %v2310 = vpop.permute.xlu0 %2309
          %2313 = vset.pattern.permute.xlu0 0
          %2314 = vperm.xlu0 %2313, %v782
          %v2315 = vpop.permute.xlu0 %2314
          %2318 = vset.pattern.permute.xlu0 0
          %2319 = vperm.xlu0 %2318, %v783
          %v2320 = vpop.permute.xlu0 %2319
          %v2323 = vlaneseq
          %v2324 = vshrl.u32 %v2323, 7
          %v2325 = vsub.s32 0, %v2324
          %v2326 = vrot.slane %v1873, %v2325
          %v2328 = vmul.f32 %v2245, %v2326
          %v2329 = vmul.f32 %v2250, %v2326
          %v2330 = vmul.f32 %v2255, %v2326
          %v2331 = vmul.f32 %v2260, %v2326
          %v2332 = vmul.f32 %v2265, %v2326
          %v2333 = vmul.f32 %v2270, %v2326
          %v2334 = vmul.f32 %v2275, %v2326
          %v2335 = vmul.f32 %v2280, %v2326
          %v2336 = vmul.f32 %v2285, %v2326
          %v2337 = vmul.f32 %v2290, %v2326
          %v2338 = vmul.f32 %v2295, %v2326
          %v2339 = vmul.f32 %v2300, %v2326
          %v2340 = vmul.f32 %v2305, %v2326
          %v2341 = vmul.f32 %v2310, %v2326
          %v2342 = vmul.f32 %v2315, %v2326
          %v2343 = vmul.f32 %v2320, %v2326
          %v2344 = vadd.f32 %v2226, %v2328
          %v2345 = vadd.f32 %v2227, %v2329
          %v2346 = vadd.f32 %v2228, %v2330
          %v2347 = vadd.f32 %v2229, %v2331
          %v2348 = vadd.f32 %v2230, %v2332
          %v2349 = vadd.f32 %v2231, %v2333
          %v2350 = vadd.f32 %v2232, %v2334
          %v2351 = vadd.f32 %v2233, %v2335
          %v2352 = vadd.f32 %v2234, %v2336
          %v2353 = vadd.f32 %v2235, %v2337
          %v2354 = vadd.f32 %v2236, %v2338
          %v2355 = vadd.f32 %v2237, %v2339
          %v2356 = vadd.f32 %v2238, %v2340
          %v2357 = vadd.f32 %v2239, %v2341
          %v2358 = vadd.f32 %v2240, %v2342
          %v2359 = vadd.f32 %v2241, %v2343
          %s2360 = sshra.s32 %s653, 4
          %s2361 = sand.u32 %s653, 15
          %s2362 = smul.addr %s2360, 8
          %s2363 = scalar_lea.vmem [#allocation2], %s2362
          %v2364 = vld [vmem:[%s2363] sm:$0xff]
          %v2365 = vld [vmem:[%s2363 + $0x8] sm:$0xff]
          %v2366 = vld [vmem:[%s2363 + $0x10] sm:$0xff]
          %v2367 = vld [vmem:[%s2363 + $0x18] sm:$0xff]
          %v2368 = vld [vmem:[%s2363 + $0x20] sm:$0xff]
          %v2369 = vld [vmem:[%s2363 + $0x28] sm:$0xff]
          %v2370 = vld [vmem:[%s2363 + $0x30] sm:$0xff]
          %v2371 = vld [vmem:[%s2363 + $0x38] sm:$0xff]
          %v2372 = vunpack.c.l.bf16 %v2364
          %v2373 = vunpack.c.h.bf16 %v2364
          %v2374 = vunpack.c.l.bf16 %v2365
          %v2375 = vunpack.c.h.bf16 %v2365
          %v2376 = vunpack.c.l.bf16 %v2366
          %v2377 = vunpack.c.h.bf16 %v2366
          %v2378 = vunpack.c.l.bf16 %v2367
          %v2379 = vunpack.c.h.bf16 %v2367
          %v2380 = vunpack.c.l.bf16 %v2368
          %v2381 = vunpack.c.h.bf16 %v2368
          %v2382 = vunpack.c.l.bf16 %v2369
          %v2383 = vunpack.c.h.bf16 %v2369
          %v2384 = vunpack.c.l.bf16 %v2370
          %v2385 = vunpack.c.h.bf16 %v2370
          %v2386 = vunpack.c.l.bf16 %v2371
          %v2387 = vunpack.c.h.bf16 %v2371
          %v2388 = vmul.f32 %v2372, %v2224
          %v2389 = vmul.f32 %v2373, %v2224
          %v2390 = vmul.f32 %v2374, %v2224
          %v2391 = vmul.f32 %v2375, %v2224
          %v2392 = vmul.f32 %v2376, %v2224
          %v2393 = vmul.f32 %v2377, %v2224
          %v2394 = vmul.f32 %v2378, %v2224
          %v2395 = vmul.f32 %v2379, %v2224
          %v2396 = vmul.f32 %v2380, %v2224
          %v2397 = vmul.f32 %v2381, %v2224
          %v2398 = vmul.f32 %v2382, %v2224
          %v2399 = vmul.f32 %v2383, %v2224
          %v2400 = vmul.f32 %v2384, %v2224
          %v2401 = vmul.f32 %v2385, %v2224
          %v2402 = vmul.f32 %v2386, %v2224
          %v2403 = vmul.f32 %v2387, %v2224
          %v2404 = vadd.f32 %v2388, %v2326
          %v2405 = vadd.f32 %v2389, %v2326
          %v2406 = vadd.f32 %v2390, %v2326
          %v2407 = vadd.f32 %v2391, %v2326
          %v2408 = vadd.f32 %v2392, %v2326
          %v2409 = vadd.f32 %v2393, %v2326
          %v2410 = vadd.f32 %v2394, %v2326
          %v2411 = vadd.f32 %v2395, %v2326
          %v2412 = vadd.f32 %v2396, %v2326
          %v2413 = vadd.f32 %v2397, %v2326
          %v2414 = vadd.f32 %v2398, %v2326
          %v2415 = vadd.f32 %v2399, %v2326
          %v2416 = vadd.f32 %v2400, %v2326
          %v2417 = vadd.f32 %v2401, %v2326
          %v2418 = vadd.f32 %v2402, %v2326
          %v2419 = vadd.f32 %v2403, %v2326
          %v2420 = vpack.c.bf16 %v2345, %v2344
          %v2421 = vpack.c.bf16 %v2347, %v2346
          %v2422 = vpack.c.bf16 %v2349, %v2348
          %v2423 = vpack.c.bf16 %v2351, %v2350
          %v2424 = vpack.c.bf16 %v2353, %v2352
          %v2425 = vpack.c.bf16 %v2355, %v2354
          %v2426 = vpack.c.bf16 %v2357, %v2356
          %v2427 = vpack.c.bf16 %v2359, %v2358
          %v2428 = vld [vmem:[#allocation13] sm:$0xf]
          %v2429 = vld [vmem:[#allocation13 + $0x4] sm:$0xf]
          %v2430 = vld [vmem:[#allocation13 + $0x8] sm:$0xf]
          %v2431 = vld [vmem:[#allocation13 + $0xc] sm:$0xf]
          %v2432 = vld [vmem:[#allocation13 + $0x10] sm:$0xf]
          %v2433 = vld [vmem:[#allocation13 + $0x14] sm:$0xf]
          %v2434 = vld [vmem:[#allocation13 + $0x18] sm:$0xf]
          %v2435 = vld [vmem:[#allocation13 + $0x1c] sm:$0xf]
          %v2436 = vld [vmem:[#allocation13 + $0x20] sm:$0xf]
          %v2437 = vld [vmem:[#allocation13 + $0x24] sm:$0xf]
          %v2438 = vld [vmem:[#allocation13 + $0x28] sm:$0xf]
          %v2439 = vld [vmem:[#allocation13 + $0x2c] sm:$0xf]
          %v2440 = vld [vmem:[#allocation13 + $0x30] sm:$0xf]
          %v2441 = vld [vmem:[#allocation13 + $0x34] sm:$0xf]
          %v2442 = vld [vmem:[#allocation13 + $0x38] sm:$0xf]
          %v2443 = vld [vmem:[#allocation13 + $0x3c] sm:$0xf]
          %v2444 = vpack.c.bf16 %v2405, %v2404
          %v2445 = vpack.c.bf16 %v2407, %v2406
          %v2446 = vpack.c.bf16 %v2409, %v2408
          %v2447 = vpack.c.bf16 %v2411, %v2410
          %v2448 = vpack.c.bf16 %v2413, %v2412
          %v2449 = vpack.c.bf16 %v2415, %v2414
          %v2450 = vpack.c.bf16 %v2417, %v2416
          %v2451 = vpack.c.bf16 %v2419, %v2418
          %v2452 = vld [vmem:[#allocation14] sm:$0xf]
          %v2453 = vld [vmem:[#allocation14 + $0x4] sm:$0xf]
          %v2454 = vld [vmem:[#allocation14 + $0x8] sm:$0xf]
          %v2455 = vld [vmem:[#allocation14 + $0xc] sm:$0xf]
          %v2456 = vld [vmem:[#allocation14 + $0x10] sm:$0xf]
          %v2457 = vld [vmem:[#allocation14 + $0x14] sm:$0xf]
          %v2458 = vld [vmem:[#allocation14 + $0x18] sm:$0xf]
          %v2459 = vld [vmem:[#allocation14 + $0x1c] sm:$0xf]
          %v2460 = vld [vmem:[#allocation14 + $0x20] sm:$0xf]
          %v2461 = vld [vmem:[#allocation14 + $0x24] sm:$0xf]
          %v2462 = vld [vmem:[#allocation14 + $0x28] sm:$0xf]
          %v2463 = vld [vmem:[#allocation14 + $0x2c] sm:$0xf]
          %v2464 = vld [vmem:[#allocation14 + $0x30] sm:$0xf]
          %v2465 = vld [vmem:[#allocation14 + $0x34] sm:$0xf]
          %v2466 = vld [vmem:[#allocation14 + $0x38] sm:$0xf]
          %v2467 = vld [vmem:[#allocation14 + $0x3c] sm:$0xf]
          %v2484 = vunpack.c.l.b16 %v2452
          %v2485 = vunpack.c.l.b16 %v2453
          %v2486 = vunpack.c.l.b16 %v2454
          %v2487 = vunpack.c.l.b16 %v2455
          %v2488 = vunpack.c.l.b16 %v2456
          %v2489 = vunpack.c.l.b16 %v2457
          %v2490 = vunpack.c.l.b16 %v2458
          %v2491 = vunpack.c.l.b16 %v2459
          %v2492 = vunpack.c.l.b16 %v2460
          %v2493 = vunpack.c.l.b16 %v2461
          %v2494 = vunpack.c.l.b16 %v2462
          %v2495 = vunpack.c.l.b16 %v2463
          %v2496 = vunpack.c.l.b16 %v2464
          %v2497 = vunpack.c.l.b16 %v2465
          %v2498 = vunpack.c.l.b16 %v2466
          %v2499 = vunpack.c.l.b16 %v2467
          %v2500 = vpack.c.b16 %v2485, %v2484
          %v2501 = vpack.c.b16 %v2487, %v2486
          %v2502 = vpack.c.b16 %v2489, %v2488
          %v2503 = vpack.c.b16 %v2491, %v2490
          %v2504 = vpack.c.b16 %v2493, %v2492
          %v2505 = vpack.c.b16 %v2495, %v2494
          %v2506 = vpack.c.b16 %v2497, %v2496
          %v2507 = vpack.c.b16 %v2499, %v2498
          %2516 = vmatprep.subr.bf16.mxu0 0
          %2517 = vmatpush1.bf16.msra.mxu0 %v2500
          %2518 = vmatprep.subr.bf16.mxu0 0
          %2519 = vmatpush1.bf16.msra.mxu0 %v2501
          %2520 = vmatprep.subr.bf16.mxu0 0
          %2521 = vmatpush1.bf16.msra.mxu0 %v2502
          %2522 = vmatprep.subr.bf16.mxu0 0
          %2523 = vmatpush1.bf16.msra.mxu0 %v2503
          %2524 = vmatprep.subr.bf16.mxu0 0
          %2525 = vmatpush1.bf16.msra.mxu0 %v2504
          %2526 = vmatprep.subr.bf16.mxu0 0
          %2527 = vmatpush1.bf16.msra.mxu0 %v2505
          %2528 = vmatprep.subr.bf16.mxu0 0
          %2529 = vmatpush1.bf16.msra.mxu0 %v2506
          %2530 = vmatprep.subr.bf16.mxu0 0
          %2531 = vmatpush1.bf16.msra.mxu0 %v2507
          %2532 = vmatprep.subr.bf16.mxu0 0
          %2533 = vmatpush1.bf16.msra.mxu0 0
          %2534 = vmatprep.subr.bf16.mxu0 0
          %2535 = vmatpush1.bf16.msra.mxu0 0
          %2536 = vmatprep.subr.bf16.mxu0 0
          %2537 = vmatpush1.bf16.msra.mxu0 0
          %2538 = vmatprep.subr.bf16.mxu0 0
          %2539 = vmatpush1.bf16.msra.mxu0 0
          %2540 = vmatprep.subr.bf16.mxu0 0
          %2541 = vmatpush1.bf16.msra.mxu0 0
          %2542 = vmatprep.subr.bf16.mxu0 0
          %2543 = vmatpush1.bf16.msra.mxu0 0
          %2544 = vmatprep.subr.bf16.mxu0 0
          %2545 = vmatpush1.bf16.msra.mxu0 0
          %2546 = vmatprep.subr.bf16.mxu0 0
          %2547 = vmatpush1.bf16.msra.mxu0 0
          %2548 = vmatprep.mubr.bf16.mxu0 0
          %2549 = vmatmul.mubr.bf16.gmra.mrb[0].mxu0 %v2444
          %v2550 = vpop.f32.mrb[0].mxu0
          %v2551 = vadd.f32 0.0, %v2550
          %v2552 = vpop.f32.mrb[0].mxu0
          %v2553 = vpop.f32.mrb[0].mxu0
          %v2554 = vadd.f32 0.0, %v2553
          %v2555 = vpop.f32.mrb[0].mxu0
          %2556 = vmatprep.mubr.bf16.mxu0 0
          %2557 = vmatmul.mubr.bf16.gmra.mrb[0].mxu0 %v2445
          %v2558 = vpop.f32.mrb[0].mxu0
          %v2559 = vadd.f32 0.0, %v2558
          %v2560 = vpop.f32.mrb[0].mxu0
          %v2561 = vpop.f32.mrb[0].mxu0
          %v2562 = vadd.f32 0.0, %v2561
          %v2563 = vpop.f32.mrb[0].mxu0
          %2564 = vmatprep.mubr.bf16.mxu0 0
          %2565 = vmatmul.mubr.bf16.gmra.mrb[0].mxu0 %v2446
          %v2566 = vpop.f32.mrb[0].mxu0
          %v2567 = vadd.f32 0.0, %v2566
          %v2568 = vpop.f32.mrb[0].mxu0
          %v2569 = vpop.f32.mrb[0].mxu0
          %v2570 = vadd.f32 0.0, %v2569
          %v2571 = vpop.f32.mrb[0].mxu0
          %2572 = vmatprep.mubr.bf16.mxu0 0
          %2573 = vmatmul.mubr.bf16.gmra.mrb[0].mxu0 %v2447
          %v2574 = vpop.f32.mrb[0].mxu0
          %v2575 = vadd.f32 0.0, %v2574
          %v2576 = vpop.f32.mrb[0].mxu0
          %v2577 = vpop.f32.mrb[0].mxu0
          %v2578 = vadd.f32 0.0, %v2577
          %v2579 = vpop.f32.mrb[0].mxu0
          %2580 = vmatprep.mubr.bf16.mxu0 0
          %2581 = vmatmul.mubr.bf16.gmra.mrb[0].mxu0 %v2448
          %v2582 = vpop.f32.mrb[0].mxu0
          %v2583 = vadd.f32 0.0, %v2582
          %v2584 = vpop.f32.mrb[0].mxu0
          %v2585 = vpop.f32.mrb[0].mxu0
          %v2586 = vadd.f32 0.0, %v2585
          %v2587 = vpop.f32.mrb[0].mxu0
          %2588 = vmatprep.mubr.bf16.mxu0 0
          %2589 = vmatmul.mubr.bf16.gmra.mrb[0].mxu0 %v2449
          %v2590 = vpop.f32.mrb[0].mxu0
          %v2591 = vadd.f32 0.0, %v2590
          %v2592 = vpop.f32.mrb[0].mxu0
          %v2593 = vpop.f32.mrb[0].mxu0
          %v2594 = vadd.f32 0.0, %v2593
          %v2595 = vpop.f32.mrb[0].mxu0
          %2596 = vmatprep.mubr.bf16.mxu0 0
          %2597 = vmatmul.mubr.bf16.gmra.mrb[0].mxu0 %v2450
          %v2598 = vpop.f32.mrb[0].mxu0
          %v2599 = vadd.f32 0.0, %v2598
          %v2600 = vpop.f32.mrb[0].mxu0
          %v2601 = vpop.f32.mrb[0].mxu0
          %v2602 = vadd.f32 0.0, %v2601
          %v2603 = vpop.f32.mrb[0].mxu0
          %2604 = vmatprep.mubr.bf16.mxu0 0
          %2605 = vmatmul.mubr.bf16.gmra.mrb[0].mxu0 %v2451
          %v2606 = vpop.f32.mrb[0].mxu0
          %v2607 = vadd.f32 0.0, %v2606
          %v2608 = vpop.f32.mrb[0].mxu0
          %v2609 = vpop.f32.mrb[0].mxu0
          %v2610 = vadd.f32 0.0, %v2609
          %v2611 = vpop.f32.mrb[0].mxu0
          %2612 = vdwg.mxu0
          %v2629 = vunpack.c.l.b16 %v2428
          %v2630 = vunpack.c.l.b16 %v2429
          %v2631 = vunpack.c.l.b16 %v2430
          %v2632 = vunpack.c.l.b16 %v2431
          %v2633 = vunpack.c.l.b16 %v2432
          %v2634 = vunpack.c.l.b16 %v2433
          %v2635 = vunpack.c.l.b16 %v2434
          %v2636 = vunpack.c.l.b16 %v2435
          %v2637 = vunpack.c.l.b16 %v2436
          %v2638 = vunpack.c.l.b16 %v2437
          %v2639 = vunpack.c.l.b16 %v2438
          %v2640 = vunpack.c.l.b16 %v2439
          %v2641 = vunpack.c.l.b16 %v2440
          %v2642 = vunpack.c.l.b16 %v2441
          %v2643 = vunpack.c.l.b16 %v2442
          %v2644 = vunpack.c.l.b16 %v2443
          %v2645 = vpack.c.b16 %v2630, %v2629
          %v2646 = vpack.c.b16 %v2632, %v2631
          %v2647 = vpack.c.b16 %v2634, %v2633
          %v2648 = vpack.c.b16 %v2636, %v2635
          %v2649 = vpack.c.b16 %v2638, %v2637
          %v2650 = vpack.c.b16 %v2640, %v2639
          %v2651 = vpack.c.b16 %v2642, %v2641
          %v2652 = vpack.c.b16 %v2644, %v2643
          %2661 = vmatprep.subr.bf16.mxu0 0
          %2662 = vmatpush1.bf16.msra.mxu0 %v2645
          %2663 = vmatprep.subr.bf16.mxu0 0
          %2664 = vmatpush1.bf16.msra.mxu0 %v2646
          %2665 = vmatprep.subr.bf16.mxu0 0
          %2666 = vmatpush1.bf16.msra.mxu0 %v2647
          %2667 = vmatprep.subr.bf16.mxu0 0
          %2668 = vmatpush1.bf16.msra.mxu0 %v2648
          %2669 = vmatprep.subr.bf16.mxu0 0
          %2670 = vmatpush1.bf16.msra.mxu0 %v2649
          %2671 = vmatprep.subr.bf16.mxu0 0
          %2672 = vmatpush1.bf16.msra.mxu0 %v2650
          %2673 = vmatprep.subr.bf16.mxu0 0
          %2674 = vmatpush1.bf16.msra.mxu0 %v2651
          %2675 = vmatprep.subr.bf16.mxu0 0
          %2676 = vmatpush1.bf16.msra.mxu0 %v2652
          %2677 = vmatprep.subr.bf16.mxu0 0
          %2678 = vmatpush1.bf16.msra.mxu0 0
          %2679 = vmatprep.subr.bf16.mxu0 0
          %2680 = vmatpush1.bf16.msra.mxu0 0
          %2681 = vmatprep.subr.bf16.mxu0 0
          %2682 = vmatpush1.bf16.msra.mxu0 0
          %2683 = vmatprep.subr.bf16.mxu0 0
          %2684 = vmatpush1.bf16.msra.mxu0 0
          %2685 = vmatprep.subr.bf16.mxu0 0
          %2686 = vmatpush1.bf16.msra.mxu0 0
          %2687 = vmatprep.subr.bf16.mxu0 0
          %2688 = vmatpush1.bf16.msra.mxu0 0
          %2689 = vmatprep.subr.bf16.mxu0 0
          %2690 = vmatpush1.bf16.msra.mxu0 0
          %2691 = vmatprep.subr.bf16.mxu0 0
          %2692 = vmatpush1.bf16.msra.mxu0 0
          %2693 = vmatprep.mubr.bf16.mxu0 0
          %2694 = vmatmul.mubr.bf16.gmra.mrb[0].mxu0 %v2420
          %v2695 = vpop.f32.mrb[0].mxu0
          %v2696 = vadd.f32 %v2551, %v2695
          %v2697 = vpop.f32.mrb[0].mxu0
          %v2698 = vpop.f32.mrb[0].mxu0
          %v2699 = vadd.f32 %v2554, %v2698
          %v2700 = vpop.f32.mrb[0].mxu0
          %2701 = vmatprep.mubr.bf16.mxu0 0
          %2702 = vmatmul.mubr.bf16.gmra.mrb[0].mxu0 %v2421
          %v2703 = vpop.f32.mrb[0].mxu0
          %v2704 = vadd.f32 %v2559, %v2703
          %v2705 = vpop.f32.mrb[0].mxu0
          %v2706 = vpop.f32.mrb[0].mxu0
          %v2707 = vadd.f32 %v2562, %v2706
          %v2708 = vpop.f32.mrb[0].mxu0
          %2709 = vmatprep.mubr.bf16.mxu0 0
          %2710 = vmatmul.mubr.bf16.gmra.mrb[0].mxu0 %v2422
          %v2711 = vpop.f32.mrb[0].mxu0
          %v2712 = vadd.f32 %v2567, %v2711
          %v2713 = vpop.f32.mrb[0].mxu0
          %v2714 = vpop.f32.mrb[0].mxu0
          %v2715 = vadd.f32 %v2570, %v2714
          %v2716 = vpop.f32.mrb[0].mxu0
          %2717 = vmatprep.mubr.bf16.mxu0 0
          %2718 = vmatmul.mubr.bf16.gmra.mrb[0].mxu0 %v2423
          %v2719 = vpop.f32.mrb[0].mxu0
          %v2720 = vadd.f32 %v2575, %v2719
          %v2721 = vpop.f32.mrb[0].mxu0
          %v2722 = vpop.f32.mrb[0].mxu0
          %v2723 = vadd.f32 %v2578, %v2722
          %v2724 = vpop.f32.mrb[0].mxu0
          %2725 = vmatprep.mubr.bf16.mxu0 0
          %2726 = vmatmul.mubr.bf16.gmra.mrb[0].mxu0 %v2424
          %v2727 = vpop.f32.mrb[0].mxu0
          %v2728 = vadd.f32 %v2583, %v2727
          %v2729 = vpop.f32.mrb[0].mxu0
          %v2730 = vpop.f32.mrb[0].mxu0
          %v2731 = vadd.f32 %v2586, %v2730
          %v2732 = vpop.f32.mrb[0].mxu0
          %2733 = vmatprep.mubr.bf16.mxu0 0
          %2734 = vmatmul.mubr.bf16.gmra.mrb[0].mxu0 %v2425
          %v2735 = vpop.f32.mrb[0].mxu0
          %v2736 = vadd.f32 %v2591, %v2735
          %v2737 = vpop.f32.mrb[0].mxu0
          %v2738 = vpop.f32.mrb[0].mxu0
          %v2739 = vadd.f32 %v2594, %v2738
          %v2740 = vpop.f32.mrb[0].mxu0
          %2741 = vmatprep.mubr.bf16.mxu0 0
          %2742 = vmatmul.mubr.bf16.gmra.mrb[0].mxu0 %v2426
          %v2743 = vpop.f32.mrb[0].mxu0
          %v2744 = vadd.f32 %v2599, %v2743
          %v2745 = vpop.f32.mrb[0].mxu0
          %v2746 = vpop.f32.mrb[0].mxu0
          %v2747 = vadd.f32 %v2602, %v2746
          %v2748 = vpop.f32.mrb[0].mxu0
          %2749 = vmatprep.mubr.bf16.mxu0 0
          %2750 = vmatmul.mubr.bf16.gmra.mrb[0].mxu0 %v2427
          %v2751 = vpop.f32.mrb[0].mxu0
          %v2752 = vadd.f32 %v2607, %v2751
          %v2753 = vpop.f32.mrb[0].mxu0
          %v2754 = vpop.f32.mrb[0].mxu0
          %v2755 = vadd.f32 %v2610, %v2754
          %v2756 = vpop.f32.mrb[0].mxu0
          %2757 = vdwg.mxu0
          %v2758 = vld [vmem:[%s12] sm:$0x1]
          %v2760 = vlaneseq
          %v2761 = vshrl.u32 %v2760, 7
          %v2762 = vsub.s32 0, %v2761
          %v2763 = vrot.slane %v2758, %v2762
          %v2765 = vadd.f32 %v2696, %v2763
          %v2766 = vadd.f32 %v2699, %v2763
          %v2767 = vadd.f32 %v2704, %v2763
          %v2768 = vadd.f32 %v2707, %v2763
          %v2769 = vadd.f32 %v2712, %v2763
          %v2770 = vadd.f32 %v2715, %v2763
          %v2771 = vadd.f32 %v2720, %v2763
          %v2772 = vadd.f32 %v2723, %v2763
          %v2773 = vadd.f32 %v2728, %v2763
          %v2774 = vadd.f32 %v2731, %v2763
          %v2775 = vadd.f32 %v2736, %v2763
          %v2776 = vadd.f32 %v2739, %v2763
          %v2777 = vadd.f32 %v2744, %v2763
          %v2778 = vadd.f32 %v2747, %v2763
          %v2779 = vadd.f32 %v2752, %v2763
          %v2780 = vadd.f32 %v2755, %v2763
          %v2781 = vmax.f32 %v2765, 0.0
          %v2782 = vmax.f32 %v2766, 0.0
          %v2783 = vmax.f32 %v2767, 0.0
          %v2784 = vmax.f32 %v2768, 0.0
          %v2785 = vmax.f32 %v2769, 0.0
          %v2786 = vmax.f32 %v2770, 0.0
          %v2787 = vmax.f32 %v2771, 0.0
          %v2788 = vmax.f32 %v2772, 0.0
          %v2789 = vmax.f32 %v2773, 0.0
          %v2790 = vmax.f32 %v2774, 0.0
          %v2791 = vmax.f32 %v2775, 0.0
          %v2792 = vmax.f32 %v2776, 0.0
          %v2793 = vmax.f32 %v2777, 0.0
          %v2794 = vmax.f32 %v2778, 0.0
          %v2795 = vmax.f32 %v2779, 0.0
          %v2796 = vmax.f32 %v2780, 0.0
          %v2797 = vmul.f32 %v2781, %v720
          %v2798 = vmul.f32 %v2782, %v721
          %v2799 = vmul.f32 %v2783, %v722
          %v2800 = vmul.f32 %v2784, %v723
          %v2801 = vmul.f32 %v2785, %v724
          %v2802 = vmul.f32 %v2786, %v725
          %v2803 = vmul.f32 %v2787, %v726
          %v2804 = vmul.f32 %v2788, %v727
          %v2805 = vmul.f32 %v2789, %v728
          %v2806 = vmul.f32 %v2790, %v729
          %v2807 = vmul.f32 %v2791, %v730
          %v2808 = vmul.f32 %v2792, %v731
          %v2809 = vmul.f32 %v2793, %v732
          %v2810 = vmul.f32 %v2794, %v733
          %v2811 = vmul.f32 %v2795, %v734
          %v2812 = vmul.f32 %v2796, %v735
          %v2813 = vld [vmem:[#allocation3] sm:$0x1]
          %v2814 = vadd.f32 %v2797, %v2798
          %v2815 = vadd.f32 %v2814, %v2799
          %v2816 = vadd.f32 %v2815, %v2800
          %v2817 = vadd.f32 %v2816, %v2801
          %v2818 = vadd.f32 %v2817, %v2802
          %v2819 = vadd.f32 %v2818, %v2803
          %v2820 = vadd.f32 %v2819, %v2804
          %v2821 = vadd.f32 %v2820, %v2805
          %v2822 = vadd.f32 %v2821, %v2806
          %v2823 = vadd.f32 %v2822, %v2807
          %v2824 = vadd.f32 %v2823, %v2808
          %v2825 = vadd.f32 %v2824, %v2809
          %v2826 = vadd.f32 %v2825, %v2810
          %v2827 = vadd.f32 %v2826, %v2811
          %v2828 = vadd.f32 %v2827, %v2812
          %v2829 = vrot.slane %v2828, 4
          %v2830 = vadd.f32 %v2828, %v2829
          %v2831 = vrot.slane %v2830, 2
          %v2832 = vadd.f32 %v2830, %v2831
          %v2833 = vrot.slane %v2832, 1
          %v2834 = vadd.f32 %v2832, %v2833
          %v2835 = vadd.f32 %v2813, %v2834
          %2836 = vst [vmem:[#allocation3] sm:$0x1] %v2835
          %v2837 = vld [vmem:[#allocation4] sm:$0x1]
          %v2838 = vmul.f32 %v2797, %v2781
          %v2839 = vmul.f32 %v2798, %v2782
          %v2840 = vmul.f32 %v2799, %v2783
          %v2841 = vmul.f32 %v2800, %v2784
          %v2842 = vmul.f32 %v2801, %v2785
          %v2843 = vmul.f32 %v2802, %v2786
          %v2844 = vmul.f32 %v2803, %v2787
          %v2845 = vmul.f32 %v2804, %v2788
          %v2846 = vmul.f32 %v2805, %v2789
          %v2847 = vmul.f32 %v2806, %v2790
          %v2848 = vmul.f32 %v2807, %v2791
          %v2849 = vmul.f32 %v2808, %v2792
          %v2850 = vmul.f32 %v2809, %v2793
          %v2851 = vmul.f32 %v2810, %v2794
          %v2852 = vmul.f32 %v2811, %v2795
          %v2853 = vmul.f32 %v2812, %v2796
          %v2854 = vadd.f32 %v2838, %v2839
          %v2855 = vadd.f32 %v2854, %v2840
          %v2856 = vadd.f32 %v2855, %v2841
          %v2857 = vadd.f32 %v2856, %v2842
          %v2858 = vadd.f32 %v2857, %v2843
          %v2859 = vadd.f32 %v2858, %v2844
          %v2860 = vadd.f32 %v2859, %v2845
          %v2861 = vadd.f32 %v2860, %v2846
          %v2862 = vadd.f32 %v2861, %v2847
          %v2863 = vadd.f32 %v2862, %v2848
          %v2864 = vadd.f32 %v2863, %v2849
          %v2865 = vadd.f32 %v2864, %v2850
          %v2866 = vadd.f32 %v2865, %v2851
          %v2867 = vadd.f32 %v2866, %v2852
          %v2868 = vadd.f32 %v2867, %v2853
          %v2869 = vrot.slane %v2868, 4
          %v2870 = vadd.f32 %v2868, %v2869
          %v2871 = vrot.slane %v2870, 2
          %v2872 = vadd.f32 %v2870, %v2871
          %v2873 = vrot.slane %v2872, 1
          %v2874 = vadd.f32 %v2872, %v2873
          %v2875 = vadd.f32 %v2837, %v2874
          %2876 = vst [vmem:[#allocation4] sm:$0x1] %v2875
          %v2877 = vld [vmem:[#allocation7] sm:$0xff]
          %v2878 = vld [vmem:[%s645] sm:$0xf]
          %v2879 = vpack.c.bf16 %v2782, %v2781
          %v2880 = vpack.c.bf16 %v2784, %v2783
          %v2881 = vpack.c.bf16 %v2786, %v2785
          %v2882 = vpack.c.bf16 %v2788, %v2787
          %v2883 = vpack.c.bf16 %v2790, %v2789
          %v2884 = vpack.c.bf16 %v2792, %v2791
          %v2885 = vpack.c.bf16 %v2794, %v2793
          %v2886 = vpack.c.bf16 %v2796, %v2795
          %2887 = vmatprep.subr.bf16.mxu0 0
          %2888 = vmatpush1.bf16.msra.mxu0 %v2879
          %2889 = vmatprep.subr.bf16.mxu0 0
          %2890 = vmatpush1.bf16.msra.mxu0 %v2880
          %2891 = vmatprep.subr.bf16.mxu0 0
          %2892 = vmatpush1.bf16.msra.mxu0 %v2881
          %2893 = vmatprep.subr.bf16.mxu0 0
          %2894 = vmatpush1.bf16.msra.mxu0 %v2882
          %2895 = vmatprep.subr.bf16.mxu0 0
          %2896 = vmatpush1.bf16.msra.mxu0 %v2883
          %2897 = vmatprep.subr.bf16.mxu0 0
          %2898 = vmatpush1.bf16.msra.mxu0 %v2884
          %2899 = vmatprep.subr.bf16.mxu0 0
          %2900 = vmatpush1.bf16.msra.mxu0 %v2885
          %2901 = vmatprep.subr.bf16.mxu0 0
          %2902 = vmatpush1.bf16.msra.mxu0 %v2886
          %2903 = vmatprep.subr.bf16.mxu0 0
          %2904 = vmatpush1.bf16.msra.mxu0 0
          %2905 = vmatprep.subr.bf16.mxu0 0
          %2906 = vmatpush1.bf16.msra.mxu0 0
          %2907 = vmatprep.subr.bf16.mxu0 0
          %2908 = vmatpush1.bf16.msra.mxu0 0
          %2909 = vmatprep.subr.bf16.mxu0 0
          %2910 = vmatpush1.bf16.msra.mxu0 0
          %2911 = vmatprep.subr.bf16.mxu0 0
          %2912 = vmatpush1.bf16.msra.mxu0 0
          %2913 = vmatprep.subr.bf16.mxu0 0
          %2914 = vmatpush1.bf16.msra.mxu0 0
          %2915 = vmatprep.subr.bf16.mxu0 0
          %2916 = vmatpush1.bf16.msra.mxu0 0
          %2917 = vmatprep.subr.bf16.mxu0 0
          %2918 = vmatpush1.bf16.msra.mxu0 0
          %2919 = vmatprep.mubr.bf16.mxu0 0
          %2920 = vmatmul.mubr.bf16.gmra.mrb[0].mxu0 %v2878
          %v2921 = vpop.f32.mrb[0].mxu0
          %v2922 = vadd.f32 0.0, %v2921
          %v2923 = vpop.f32.mrb[0].mxu0
          %v2924 = vpop.f32.mrb[0].mxu0
          %v2925 = vpop.f32.mrb[0].mxu0
          %2926 = vdwg.mxu0
          %v2927 = vadd.f32 %v2877, %v2922
          %2928 = vst [vmem:[#allocation7] sm:$0xff] %v2927
          %p2929 = scmp.eq.s32.totalorder %s39, 2
          // Predicated region
          $region121: #{tpu_custom_call.1} parent=115 // pred_check
            %p2930 = pneg %p2929
          $region122: #{tpu_custom_call.1} parent=115 // pred_check_branch
            %2932 = sbr.rel (%p2930) target = $region124
          $region123: #{tpu_custom_call.1} parent=115 // pred_region
            %v2933 = vld [vmem:[#allocation3] sm:$0x1]
            %v2934 = vmul.f32 %v2933, 0.003125
            %v2935 = vld [vmem:[#allocation4] sm:$0x1]
            %v2936 = vmul.f32 %v2935, 0.003125
            %v2937 = vmul.f32 %v2934, %v2934
            %v2938 = vsub.f32 %v2936, %v2937
            %v2939 = vmax.f32 %v2938, 0.0
            %v2940 = vld [vmem:[%s13] sm:$0x1]
            %v2941 = vadd.f32 %v2939, 1e-05
            %v2942 = vrsqrt.pop %v2941
            %v2943 = vmul.f32 %v2940, %v2942
            %v2944 = vld [vmem:[%s14] sm:$0x1]
            %v2945 = vmul.f32 %v2934, %v2943
            %v2946 = vsub.f32 %v2944, %v2945
            %v2947 = vld [vmem:[#allocation7] sm:$0xff]
            %v2949 = vlaneseq
            %v2950 = vshrl.u32 %v2949, 7
            %v2951 = vsub.s32 0, %v2950
            %v2952 = vrot.slane %v2943, %v2951
            %v2954 = vmul.f32 %v2947, %v2952
            %v2955 = vld [vmem:[%s4] sm:$0xff]
            %2957 = vset.pattern.permute.xlu0 0
            %2958 = vperm.xlu0 %2957, %v2955
            %v2959 = vpop.permute.xlu0 %2958
            %v2962 = vlaneseq
            %v2963 = vshrl.u32 %v2962, 7
            %v2964 = vsub.s32 0, %v2963
            %v2965 = vrot.slane %v2946, %v2964
            %v2967 = vmul.f32 %v2959, %v2965
            %v2968 = vadd.f32 %v2954, %v2967
            %v2969 = vld [vmem:[%s15] sm:$0xff]
            %v2970 = vld [vmem:[%s15 + $0x8] sm:$0xff]
            %v2971 = vld [vmem:[%s15 + $0x10] sm:$0xff]
            %v2972 = vld [vmem:[%s15 + $0x18] sm:$0xff]
            %v2973 = vld [vmem:[%s15 + $0x20] sm:$0xff]
            %v2974 = vld [vmem:[%s15 + $0x28] sm:$0xff]
            %v2975 = vld [vmem:[%s15 + $0x30] sm:$0xff]
            %v2976 = vld [vmem:[%s15 + $0x38] sm:$0xff]
            %v2977 = vld [vmem:[%s15 + $0x40] sm:$0xff]
            %v2978 = vld [vmem:[%s15 + $0x48] sm:$0xff]
            %v2979 = vld [vmem:[%s15 + $0x50] sm:$0xff]
            %v2980 = vld [vmem:[%s15 + $0x58] sm:$0xff]
            %v2981 = vld [vmem:[%s15 + $0x60] sm:$0xff]
            %v2982 = vld [vmem:[%s15 + $0x68] sm:$0xff]
            %v2983 = vld [vmem:[%s15 + $0x70] sm:$0xff]
            %v2984 = vld [vmem:[%s15 + $0x78] sm:$0xff]
            %v2985 = vld [vmem:[%s16] sm:$0x1]
            %v2987 = vlaneseq
            %v2988 = vshrl.u32 %v2987, 7
            %v2989 = vsub.s32 0, %v2988
            %v2990 = vrot.slane %v2985, %v2989
            %2992 = vmatprep.subr.mxu0 0.0
            %2993 = vmatpush1.msra.mxu0 %v2969
            %2994 = vmatprep.subr.mxu0 0.0
            %2995 = vmatpush1.msra.mxu0 %v2970
            %2996 = vmatprep.subr.mxu0 0.0
            %2997 = vmatpush1.msra.mxu0 %v2971
            %2998 = vmatprep.subr.mxu0 0.0
            %2999 = vmatpush1.msra.mxu0 %v2972
            %3000 = vmatprep.subr.mxu0 0.0
            %3001 = vmatpush1.msra.mxu0 %v2973
            %3002 = vmatprep.subr.mxu0 0.0
            %3003 = vmatpush1.msra.mxu0 %v2974
            %3004 = vmatprep.subr.mxu0 0.0
            %3005 = vmatpush1.msra.mxu0 %v2975
            %3006 = vmatprep.subr.mxu0 0.0
            %3007 = vmatpush1.msra.mxu0 %v2976
            %3008 = vmatprep.subr.mxu0 0.0
            %3009 = vmatpush1.msra.mxu0 %v2977
            %3010 = vmatprep.subr.mxu0 0.0
            %3011 = vmatpush1.msra.mxu0 %v2978
            %3012 = vmatprep.subr.mxu0 0.0
            %3013 = vmatpush1.msra.mxu0 %v2979
            %3014 = vmatprep.subr.mxu0 0.0
            %3015 = vmatpush1.msra.mxu0 %v2980
            %3016 = vmatprep.subr.mxu0 0.0
            %3017 = vmatpush1.msra.mxu0 %v2981
            %3018 = vmatprep.subr.mxu0 0.0
            %3019 = vmatpush1.msra.mxu0 %v2982
            %3020 = vmatprep.subr.mxu0 0.0
            %3021 = vmatpush1.msra.mxu0 %v2983
            %3022 = vmatprep.subr.mxu0 0.0
            %3023 = vmatpush1.msra.mxu0 %v2984
            %3024 = vmatprep.subr.mxu0 0.0
            %3025 = vmatpush1.msra.mxu0 0.0
            %3026 = vmatprep.subr.mxu0 0.0
            %3027 = vmatpush1.msra.mxu0 0.0
            %3028 = vmatprep.subr.mxu0 0.0
            %3029 = vmatpush1.msra.mxu0 0.0
            %3030 = vmatprep.subr.mxu0 0.0
            %3031 = vmatpush1.msra.mxu0 0.0
            %3032 = vmatprep.subr.mxu0 0.0
            %3033 = vmatpush1.msra.mxu0 0.0
            %3034 = vmatprep.subr.mxu0 0.0
            %3035 = vmatpush1.msra.mxu0 0.0
            %3036 = vmatprep.subr.mxu0 0.0
            %3037 = vmatpush1.msra.mxu0 0.0
            %3038 = vmatprep.subr.mxu0 0.0
            %3039 = vmatpush1.msra.mxu0 0.0
            %3040 = vmatprep.subr.mxu0 0.0
            %3041 = vmatpush1.msra.mxu0 0.0
            %3042 = vmatprep.subr.mxu0 0.0
            %3043 = vmatpush1.msra.mxu0 0.0
            %3044 = vmatprep.subr.mxu0 0.0
            %3045 = vmatpush1.msra.mxu0 0.0
            %3046 = vmatprep.subr.mxu0 0.0
            %3047 = vmatpush1.msra.mxu0 0.0
            %3048 = vmatprep.subr.mxu0 0.0
            %3049 = vmatpush1.msra.mxu0 0.0
            %3050 = vmatprep.subr.mxu0 0.0
            %3051 = vmatpush1.msra.mxu0 0.0
            %3052 = vmatprep.subr.mxu0 0.0
            %3053 = vmatpush1.msra.mxu0 0.0
            %3054 = vmatprep.subr.mxu0 0.0
            %3055 = vmatpush1.msra.mxu0 0.0
            %3056 = vmatprep.mubr.f32.mxu0 0.0
            %3057 = vmatmul.mubr.f32.gmra.mrb[0].mxu0 %v2968
            %v3058 = vpop.f32.mrb[0].mxu0
            %v3059 = vadd.f32 %v2990, %v3058
            %v3060 = vpop.f32.mrb[0].mxu0
            %3061 = vdwg.mxu0
            %v3062 = vxor.u32 %v3059, 2147483648
            %v3063 = vmul.f32 %v3062, 1.442695
            %v3064 = vpow.pop %v3063
            %v3065 = vadd.f32 %v3064, 1.0
            %v3066 = vrcp.pop %v3065
            %v3067 = vmul.f32 1.0, %v3066
            %3068 = vst [vmem:[#allocation16] sm:$0xff] %v3067
          $region124: #{tpu_custom_call.1} parent=115 // pred_fallthru
            _
        $region116: #{tpu_custom_call.1} parent=87 // pred_fallthru
          _
        // Predicated region
        $region125: #{tpu_custom_call.1} parent=87 // pred_check
          %p3069 = pneg %p431
        $region126: #{tpu_custom_call.1} parent=87 // pred_check_branch
          %3071 = sbr.rel (%p3069) target = $region128
        $region127: #{tpu_custom_call.1} parent=87 // pred_region
          %s3073 = ssub.s32 128, 128
          %3074 = vsyncadd [#allocation10], %s3073
          %s3076 = sshll.u32 [#allocation16], 4
          %s3077 = int_to_ptr.vmem [resolvable:$true] %s3076
          %3079 = dma.vmem_to_hbm [thread:$0]  %s3077, 128, %s17, [#allocation10]
        $region128: #{tpu_custom_call.1} parent=87 // pred_fallthru
          _
        // Predicated region
        $region129: #{tpu_custom_call.1} parent=87 // pred_check
          %p3080 = pneg %p431
        $region130: #{tpu_custom_call.1} parent=87 // pred_check_branch
          %3082 = sbr.rel (%p3080) target = $region132
        $region131: #{tpu_custom_call.1} parent=87 // pred_region
          %3083 = dma.done [#allocation10], 128
        $region132: #{tpu_custom_call.1} parent=87 // pred_fallthru
          _
      $region88: #{tpu_custom_call.1} parent=5 // pred_fallthru
        _
      %p3084 = scmp.le.s32.totalorder 2, %s29
      // Predicated region
      $region133: #{tpu_custom_call.1} parent=5 // pred_check
        %p3085 = pneg %p3084
      $region134: #{tpu_custom_call.1} parent=5 // pred_check_branch
        %3087 = sbr.rel (%p3085) target = $region136
      $region135: #{tpu_custom_call.1} parent=5 // pred_region
        %s3088 = ssub.s32 %s29, 2
      $region136: #{tpu_custom_call.1} parent=5 // pred_fallthru
        _
    $region6: #{tpu_custom_call.1} parent=1 // loop_footer
      %s33 = sadd.s32 1, %s29
    $region7: #{tpu_custom_call.1} parent=1 // loop_footer_branch
      %28 = sbr.rel target = $region3
    $region8: #{tpu_custom_call.1} parent=1 // loop_exit
      _
    %3089 = vsyncpa [#allocation9], 1
    %s3090 = scalar_lea.sflag [#allocation9], 1
    %3091 = vsyncpa %s3090, 1
    %3092 = vsyncpa [#allocation12], 1
    %3093 = vsyncpa [#allocation15], 1
    %3094 = vsyncpa [#allocation10], 1
    %s3095 = scalar_lea.sflag [#allocation10], 1
    %3096 = vsyncpa %s3095, 1

</llo_original>
